<compile_context>
chip_gen: v6e
topology: v6e:2x2x1
jax: 0.10.0
libtpu: 0.0.40
codegen_flags: <defaults>
</compile_context>

<pallas_src>
import jax
import jax.numpy as jnp
from jax.experimental import pallas as pl
from jax.experimental.pallas import tpu as pltpu


# -----------------------------------------------------------------------------
# Pallas kernel: full 2-layer LSTM recurrence + final Linear, fully in VMEM.
# -----------------------------------------------------------------------------
def char_rnn_kernel(x_ref,                         # (T*Bp, E)   bf16, time-major, batch-padded
                    wih0_ref, whh0_ref, b0_ref,    # (E,4H) bf16, (H,4H) bf16, (1,4H) f32
                    wcat1_ref, b1_ref,             # (2H,4H) bf16, (1,4H) f32
                    wfc_ref, bfc_ref,              # (H,Vp) bf16, (1,Vp) f32
                    out_ref,                       # (Bp, Vp) f32
                    xproj_s):                      # scratch (T*Bp, 4H) f32
    Bp = out_ref.shape[0]          # sublane-padded batch (multiple of 8)
    H = whh0_ref.shape[0]
    T = x_ref.shape[0] // Bp       # static
    wdt = whh0_ref.dtype           # bf16 MXU inputs, f32 accumulation

    # Hoisted weight / bias reads (loaded once, reused by every unrolled step).
    whh0 = whh0_ref[...]
    wcat1 = wcat1_ref[...]
    b1 = jnp.broadcast_to(b1_ref[...], (Bp, 4 * H))

    # (1) Layer-0 input projection hoisted out of the recurrence:
    #     one (T*Bp, E) @ (E, 4H) MXU matmul with b0 folded in.
    xproj_s[...] = (jnp.dot(x_ref[...], wih0_ref[...],
                            preferred_element_type=jnp.float32)
                    + b0_ref[...])

    def apply_gates(gates, c):
        # gate columns pre-permuted to [i, f, o, g] in the wrapper: a single
        # sigmoid over a contiguous 3H slab and a single tanh over the last H.
        s = jax.nn.sigmoid(gates[:, :3 * H])
        g = jnp.tanh(gates[:, 3 * H:])
        i_g = s[:, 0 * H:1 * H]
        f_g = s[:, 1 * H:2 * H]
        o_g = s[:, 2 * H:3 * H]
        c_new = f_g * c + i_g * g
        h_new = o_g * jnp.tanh(c_new)
        return h_new, c_new

    zeros = jnp.zeros((Bp, H), jnp.float32)
    h0, c0, h1, c1 = zeros, zeros, zeros, zeros

    # (2) Fully-unrolled static time loop: every index below is a static,
    #     8-sublane-aligned slice; h/c live in vregs across steps.
    for t in range(T):
        # layer 0: only the recurrent matmul is on the serial path.
        g0 = (xproj_s[t * Bp:(t + 1) * Bp, :]
              + jnp.dot(h0.astype(wdt), whh0,
                        preferred_element_type=jnp.float32))
        h0, c0 = apply_gates(g0, c0)

        # layer 1: input + recurrent matmuls fused into one MXU op via the
        # concatenated (2H, 4H) weight matrix.
        xh = jnp.concatenate([h0, h1], axis=-1).astype(wdt)        # (Bp, 2H)
        g1 = jnp.dot(xh, wcat1, preferred_element_type=jnp.float32) + b1
        h1, c1 = apply_gates(g1, c1)

    # fc on the last hidden state of the top layer (lane-padded vocab -> dense stores).
    out_ref[...] = (jnp.dot(h1.astype(wdt), wfc_ref[...],
                            preferred_element_type=jnp.float32)
                    + bfc_ref[...])


# -----------------------------------------------------------------------------
# Wrapper: embedding gather + weight prep (glue, plain JAX) + pallas_call.
# -----------------------------------------------------------------------------
@jax.jit
def char_rnn_forward(tokens, params):
    """tokens: (B, T) int32 ids. Returns (B, vocab) float32 logits."""
    emb_tbl = params["embedding"]                      # (V, E)
    B, T = tokens.shape
    E = emb_tbl.shape[1]
    H = params["W_hh0"].shape[1]
    V = params["W_fc"].shape[0]

    Bp = ((B + 7) // 8) * 8          # sublane-pad batch
    Vp = ((V + 127) // 128) * 128    # lane-pad vocab for dense stores
    wdt = jnp.bfloat16               # MXU-input dtype (f32 accumulation in-kernel)

    def perm_gates(w):
        # permute 4H columns from PyTorch order [i,f,g,o] to [i,f,o,g]
        i, f, g, o = jnp.split(w, 4, axis=-1)
        return jnp.concatenate([i, f, o, g], axis=-1)

    # layer 0 (pre-transposed to (in, out), biases folded, gates permuted)
    wih0 = perm_gates(params["W_ih0"].T).astype(wdt)                    # (E, 4H)
    whh0 = perm_gates(params["W_hh0"].T).astype(wdt)                    # (H, 4H)
    b0 = perm_gates((params["b_ih0"] + params["b_hh0"])[None, :])       # (1, 4H) f32
    # layer 1 (input + recurrent weights concatenated for the fused matmul)
    wih1 = perm_gates(params["W_ih1"].T)                                # (H, 4H)
    whh1 = perm_gates(params["W_hh1"].T)                                # (H, 4H)
    wcat1 = jnp.concatenate([wih1, whh1], axis=0).astype(wdt)           # (2H, 4H)
    b1 = perm_gates((params["b_ih1"] + params["b_hh1"])[None, :])       # (1, 4H) f32
    # fc, lane-padded to Vp
    wfc = jnp.zeros((H, Vp), jnp.float32).at[:, :V].set(params["W_fc"].T).astype(wdt)
    bfc = jnp.zeros((1, Vp), jnp.float32).at[:, :V].set(params["b_fc"][None, :])

    # Time-major gather (no separate transpose), batch padded to Bp, flattened.
    x_tm = jnp.take(emb_tbl, tokens.T, axis=0)         # (T, B, E)
    if Bp != B:
        x_tm = jnp.pad(x_tm, ((0, 0), (0, Bp - B), (0, 0)))
    x_flat = x_tm.reshape(T * Bp, E).astype(wdt)       # (T*Bp, E)

    vmem = pl.BlockSpec(memory_space=pltpu.MemorySpace.VMEM)

    out = pl.pallas_call(
        char_rnn_kernel,
        out_shape=jax.ShapeDtypeStruct((Bp, Vp), jnp.float32),
        in_specs=[vmem] * 8,
        out_specs=vmem,
        scratch_shapes=[pltpu.VMEM((T * Bp, 4 * H), jnp.float32)],
    )(x_flat, wih0, whh0, b0, wcat1, b1, wfc, bfc)

    return out[:B, :V]


# -----------------------------------------------------------------------------
# Pure-JAX reference (mirrors torch.nn.LSTM eval-mode math) for validation.
# -----------------------------------------------------------------------------
def char_rnn_reference(tokens, params):
    emb = jnp.take(params["embedding"], tokens, axis=0)   # (B, T, E)
    B, T, _ = emb.shape
    H = params["W_hh0"].shape[1]

    def cell(x, h, c, wih, whh, b_ih, b_hh):
        g = x @ wih.T + b_ih + h @ whh.T + b_hh
        i_g, f_g, g_g, o_g = jnp.split(g, 4, axis=-1)
        c = jax.nn.sigmoid(f_g) * c + jax.nn.sigmoid(i_g) * jnp.tanh(g_g)
        h = jax.nn.sigmoid(o_g) * jnp.tanh(c)
        return h, c

    h0 = jnp.zeros((B, H), jnp.float32)
    c0 = jnp.zeros((B, H), jnp.float32)
    h1 = jnp.zeros((B, H), jnp.float32)
    c1 = jnp.zeros((B, H), jnp.float32)
    for t in range(T):
        h0, c0 = cell(emb[:, t], h0, c0,
                      params["W_ih0"], params["W_hh0"],
                      params["b_ih0"], params["b_hh0"])
        h1, c1 = cell(h0, h1, c1,
                      params["W_ih1"], params["W_hh1"],
                      params["b_ih1"], params["b_hh1"])
    return h1 @ params["W_fc"].T + params["b_fc"]


# -----------------------------------------------------------------------------
# Deterministic parameter init (PyTorch-style uniform(-1/sqrt(H), 1/sqrt(H))).
# -----------------------------------------------------------------------------
def init_params(key, vocab, emb_size, hidden):
    keys = jax.random.split(key, 12)
    k = 1.0 / jnp.sqrt(hidden)

    def u(kk, shape):
        return jax.random.uniform(kk, shape, jnp.float32, -k, k)

    return {
        "embedding": jax.random.normal(keys[0], (vocab, emb_size), jnp.float32),
        # layer 0
        "W_ih0": u(keys[1], (4 * hidden, emb_size)),
        "W_hh0": u(keys[2], (4 * hidden, hidden)),
        "b_ih0": u(keys[3], (4 * hidden,)),
        "b_hh0": u(keys[4], (4 * hidden,)),
        # layer 1
        "W_ih1": u(keys[5], (4 * hidden, hidden)),
        "W_hh1": u(keys[6], (4 * hidden, hidden)),
        "b_ih1": u(keys[7], (4 * hidden,)),
        "b_hh1": u(keys[8], (4 * hidden,)),
        # fc
        "W_fc": u(keys[9], (vocab, hidden)),
        "b_fc": u(keys[10], (vocab,)),
    }


if __name__ == "__main__":
    VOCAB = 16        # input_size
    EMB = 128         # embedding_size
    HIDDEN = 128      # hidden_size (small variant of the default 256)
    B, T = 2, 8

    key = jax.random.PRNGKey(0)
    pkey, xkey = jax.random.split(key)
    params = init_params(pkey, VOCAB, EMB, HIDDEN)
    tokens = jax.random.randint(xkey, (B, T), 0, VOCAB, dtype=jnp.int32)

    logits = char_rnn_forward(tokens, params)
    logits = jax.block_until_ready(logits)

    ref = char_rnn_reference(tokens, params)
    assert logits.shape == (B, VOCAB)
    # bf16 MXU inputs with f32 accumulation -> loosened tolerance vs the f32 reference.
    assert jnp.allclose(logits, ref, atol=2e-2, rtol=2e-2), (
        f"mismatch: max abs err = {jnp.max(jnp.abs(logits - ref))}")

    print("KERNEL_OK")
</pallas_src>

<mosaic_0001>
module attributes {stable_mosaic.version = 11 : i64} {
  func.func @char_rnn_kernel(%arg0: memref<64x128xbf16, #tpu.memory_space<vmem>>, %arg1: memref<128x512xbf16, #tpu.memory_space<vmem>>, %arg2: memref<128x512xbf16, #tpu.memory_space<vmem>>, %arg3: memref<1x512xf32, #tpu.memory_space<vmem>>, %arg4: memref<256x512xbf16, #tpu.memory_space<vmem>>, %arg5: memref<1x512xf32, #tpu.memory_space<vmem>>, %arg6: memref<128x128xbf16, #tpu.memory_space<vmem>>, %arg7: memref<1x128xf32, #tpu.memory_space<vmem>>, %arg8: memref<8x128xf32, #tpu.memory_space<vmem>>, %arg9: memref<64x512xf32, #tpu.memory_space<vmem>>) attributes {dimension_semantics = [], scalar_prefetch = 0 : i64, scratch_operands = 1 : i64, tpu.core_type = #tpu.core_type<tc>} {
    %c0 = arith.constant 0 : index
    %c0_0 = arith.constant 0 : index
    %0 = vector.load %arg2[%c0, %c0_0] : memref<128x512xbf16, #tpu.memory_space<vmem>>, vector<128x512xbf16>
    %c0_1 = arith.constant 0 : index
    %c0_2 = arith.constant 0 : index
    %1 = vector.load %arg4[%c0_1, %c0_2] : memref<256x512xbf16, #tpu.memory_space<vmem>>, vector<256x512xbf16>
    %c0_3 = arith.constant 0 : index
    %c0_4 = arith.constant 0 : index
    %2 = vector.load %arg5[%c0_3, %c0_4] : memref<1x512xf32, #tpu.memory_space<vmem>>, vector<1x512xf32>
    %3 = vector.shape_cast %2 : vector<1x512xf32> to vector<1x512xf32>
    %4 = vector.broadcast %3 : vector<1x512xf32> to vector<8x512xf32>
    %c0_5 = arith.constant 0 : index
    %c0_6 = arith.constant 0 : index
    %5 = vector.load %arg0[%c0_5, %c0_6] : memref<64x128xbf16, #tpu.memory_space<vmem>>, vector<64x128xbf16>
    %c0_7 = arith.constant 0 : index
    %c0_8 = arith.constant 0 : index
    %6 = vector.load %arg1[%c0_7, %c0_8] : memref<128x512xbf16, #tpu.memory_space<vmem>>, vector<128x512xbf16>
    %cst = arith.constant dense<0.000000e+00> : vector<64x512xf32>
    %7 = tpu.matmul %5, %6, %cst {dimension_numbers = #tpu.dot_dimension_numbers<[1], [0], [0], [1], [0, 0, 1, 1], [], []>} : vector<64x128xbf16>, vector<128x512xbf16>, vector<64x512xf32> -> vector<64x512xf32>
    %c0_9 = arith.constant 0 : index
    %c0_10 = arith.constant 0 : index
    %8 = vector.load %arg3[%c0_9, %c0_10] : memref<1x512xf32, #tpu.memory_space<vmem>>, vector<1x512xf32>
    %9 = vector.broadcast %8 : vector<1x512xf32> to vector<64x512xf32>
    %10 = arith.addf %7, %9 : vector<64x512xf32>
    %c0_11 = arith.constant 0 : index
    %c0_12 = arith.constant 0 : index
    %11 = vector.load %arg9[%c0_11, %c0_12] : memref<64x512xf32, #tpu.memory_space<vmem>>, vector<64x512xf32>
    tpu.vector_store %arg9[%c0_11, %c0_12], %10 {strides = array<i32>} : memref<64x512xf32, #tpu.memory_space<vmem>>, vector<64x512xf32>,
    %cst_13 = arith.constant 0.000000e+00 : f32
    %12 = vector.broadcast %cst_13 : f32 to vector<8x128xf32>
    %c0_14 = arith.constant 0 : index
    %c0_15 = arith.constant 0 : index
    %13 = vector.load %arg9[%c0_14, %c0_15] : memref<64x512xf32, #tpu.memory_space<vmem>>, vector<8x512xf32>
    %14 = arith.truncf %12 : vector<8x128xf32> to vector<8x128xbf16>
    %cst_16 = arith.constant dense<0.000000e+00> : vector<8x512xf32>
    %15 = tpu.matmul %14, %0, %cst_16 {dimension_numbers = #tpu.dot_dimension_numbers<[1], [0], [0], [1], [0, 0, 1, 1], [], []>} : vector<8x128xbf16>, vector<128x512xbf16>, vector<8x512xf32> -> vector<8x512xf32>
    %16 = arith.addf %13, %15 : vector<8x512xf32>
    %17 = vector.extract_strided_slice %16 {offsets = [0, 0], sizes = [8, 384], strides = [1, 1]} : vector<8x512xf32> to vector<8x384xf32>
    %18 = arith.negf %17 : vector<8x384xf32>
    %19 = math.exp %18 : vector<8x384xf32>
    %cst_17 = arith.constant 1.000000e+00 : f32
    %20 = vector.broadcast %cst_17 : f32 to vector<8x384xf32>
    %21 = arith.addf %20, %19 : vector<8x384xf32>
    %22 = arith.divf %20, %21 : vector<8x384xf32>
    %23 = vector.extract_strided_slice %16 {offsets = [0, 384], sizes = [8, 128], strides = [1, 1]} : vector<8x512xf32> to vector<8x128xf32>
    %24 = math.tanh %23 : vector<8x128xf32>
    %25 = vector.extract_strided_slice %22 {offsets = [0, 0], sizes = [8, 128], strides = [1, 1]} : vector<8x384xf32> to vector<8x128xf32>
    %26 = vector.extract_strided_slice %22 {offsets = [0, 128], sizes = [8, 128], strides = [1, 1]} : vector<8x384xf32> to vector<8x128xf32>
    %27 = vector.extract_strided_slice %22 {offsets = [0, 256], sizes = [8, 128], strides = [1, 1]} : vector<8x384xf32> to vector<8x128xf32>
    %28 = arith.mulf %26, %12 : vector<8x128xf32>
    %29 = arith.mulf %25, %24 : vector<8x128xf32>
    %30 = arith.addf %28, %29 : vector<8x128xf32>
    %31 = math.tanh %30 : vector<8x128xf32>
    %32 = arith.mulf %27, %31 : vector<8x128xf32>
    %33 = tpu.concatenate %32, %12 in 1 : vector<8x128xf32>, vector<8x128xf32> -> vector<8x256xf32>
    %34 = arith.truncf %33 : vector<8x256xf32> to vector<8x256xbf16>
    %cst_18 = arith.constant dense<0.000000e+00> : vector<8x512xf32>
    %35 = tpu.matmul %34, %1, %cst_18 {dimension_numbers = #tpu.dot_dimension_numbers<[1], [0], [0], [1], [0, 0, 1, 1], [], []>} : vector<8x256xbf16>, vector<256x512xbf16>, vector<8x512xf32> -> vector<8x512xf32>
    %36 = arith.addf %35, %4 : vector<8x512xf32>
    %37 = vector.extract_strided_slice %36 {offsets = [0, 0], sizes = [8, 384], strides = [1, 1]} : vector<8x512xf32> to vector<8x384xf32>
    %38 = arith.negf %37 : vector<8x384xf32>
    %39 = math.exp %38 : vector<8x384xf32>
    %cst_19 = arith.constant 1.000000e+00 : f32
    %40 = vector.broadcast %cst_19 : f32 to vector<8x384xf32>
    %41 = arith.addf %40, %39 : vector<8x384xf32>
    %42 = arith.divf %40, %41 : vector<8x384xf32>
    %43 = vector.extract_strided_slice %36 {offsets = [0, 384], sizes = [8, 128], strides = [1, 1]} : vector<8x512xf32> to vector<8x128xf32>
    %44 = math.tanh %43 : vector<8x128xf32>
    %45 = vector.extract_strided_slice %42 {offsets = [0, 0], sizes = [8, 128], strides = [1, 1]} : vector<8x384xf32> to vector<8x128xf32>
    %46 = vector.extract_strided_slice %42 {offsets = [0, 128], sizes = [8, 128], strides = [1, 1]} : vector<8x384xf32> to vector<8x128xf32>
    %47 = vector.extract_strided_slice %42 {offsets = [0, 256], sizes = [8, 128], strides = [1, 1]} : vector<8x384xf32> to vector<8x128xf32>
    %48 = arith.mulf %46, %12 : vector<8x128xf32>
    %49 = arith.mulf %45, %44 : vector<8x128xf32>
    %50 = arith.addf %48, %49 : vector<8x128xf32>
    %51 = math.tanh %50 : vector<8x128xf32>
    %52 = arith.mulf %47, %51 : vector<8x128xf32>
    %c8 = arith.constant 8 : index
    %c0_20 = arith.constant 0 : index
    %53 = vector.load %arg9[%c8, %c0_20] : memref<64x512xf32, #tpu.memory_space<vmem>>, vector<8x512xf32>
    %54 = arith.truncf %32 : vector<8x128xf32> to vector<8x128xbf16>
    %cst_21 = arith.constant dense<0.000000e+00> : vector<8x512xf32>
    %55 = tpu.matmul %54, %0, %cst_21 {dimension_numbers = #tpu.dot_dimension_numbers<[1], [0], [0], [1], [0, 0, 1, 1], [], []>} : vector<8x128xbf16>, vector<128x512xbf16>, vector<8x512xf32> -> vector<8x512xf32>
    %56 = arith.addf %53, %55 : vector<8x512xf32>
    %57 = vector.extract_strided_slice %56 {offsets = [0, 0], sizes = [8, 384], strides = [1, 1]} : vector<8x512xf32> to vector<8x384xf32>
    %58 = arith.negf %57 : vector<8x384xf32>
    %59 = math.exp %58 : vector<8x384xf32>
    %cst_22 = arith.constant 1.000000e+00 : f32
    %60 = vector.broadcast %cst_22 : f32 to vector<8x384xf32>
    %61 = arith.addf %60, %59 : vector<8x384xf32>
    %62 = arith.divf %60, %61 : vector<8x384xf32>
    %63 = vector.extract_strided_slice %56 {offsets = [0, 384], sizes = [8, 128], strides = [1, 1]} : vector<8x512xf32> to vector<8x128xf32>
    %64 = math.tanh %63 : vector<8x128xf32>
    %65 = vector.extract_strided_slice %62 {offsets = [0, 0], sizes = [8, 128], strides = [1, 1]} : vector<8x384xf32> to vector<8x128xf32>
    %66 = vector.extract_strided_slice %62 {offsets = [0, 128], sizes = [8, 128], strides = [1, 1]} : vector<8x384xf32> to vector<8x128xf32>
    %67 = vector.extract_strided_slice %62 {offsets = [0, 256], sizes = [8, 128], strides = [1, 1]} : vector<8x384xf32> to vector<8x128xf32>
    %68 = arith.mulf %66, %30 : vector<8x128xf32>
    %69 = arith.mulf %65, %64 : vector<8x128xf32>
    %70 = arith.addf %68, %69 : vector<8x128xf32>
    %71 = math.tanh %70 : vector<8x128xf32>
    %72 = arith.mulf %67, %71 : vector<8x128xf32>
    %73 = tpu.concatenate %72, %52 in 1 : vector<8x128xf32>, vector<8x128xf32> -> vector<8x256xf32>
    %74 = arith.truncf %73 : vector<8x256xf32> to vector<8x256xbf16>
    %cst_23 = arith.constant dense<0.000000e+00> : vector<8x512xf32>
    %75 = tpu.matmul %74, %1, %cst_23 {dimension_numbers = #tpu.dot_dimension_numbers<[1], [0], [0], [1], [0, 0, 1, 1], [], []>} : vector<8x256xbf16>, vector<256x512xbf16>, vector<8x512xf32> -> vector<8x512xf32>
    %76 = arith.addf %75, %4 : vector<8x512xf32>
    %77 = vector.extract_strided_slice %76 {offsets = [0, 0], sizes = [8, 384], strides = [1, 1]} : vector<8x512xf32> to vector<8x384xf32>
    %78 = arith.negf %77 : vector<8x384xf32>
    %79 = math.exp %78 : vector<8x384xf32>
    %cst_24 = arith.constant 1.000000e+00 : f32
    %80 = vector.broadcast %cst_24 : f32 to vector<8x384xf32>
    %81 = arith.addf %80, %79 : vector<8x384xf32>
    %82 = arith.divf %80, %81 : vector<8x384xf32>
    %83 = vector.extract_strided_slice %76 {offsets = [0, 384], sizes = [8, 128], strides = [1, 1]} : vector<8x512xf32> to vector<8x128xf32>
    %84 = math.tanh %83 : vector<8x128xf32>
    %85 = vector.extract_strided_slice %82 {offsets = [0, 0], sizes = [8, 128], strides = [1, 1]} : vector<8x384xf32> to vector<8x128xf32>
    %86 = vector.extract_strided_slice %82 {offsets = [0, 128], sizes = [8, 128], strides = [1, 1]} : vector<8x384xf32> to vector<8x128xf32>
    %87 = vector.extract_strided_slice %82 {offsets = [0, 256], sizes = [8, 128], strides = [1, 1]} : vector<8x384xf32> to vector<8x128xf32>
    %88 = arith.mulf %86, %50 : vector<8x128xf32>
    %89 = arith.mulf %85, %84 : vector<8x128xf32>
    %90 = arith.addf %88, %89 : vector<8x128xf32>
    %91 = math.tanh %90 : vector<8x128xf32>
    %92 = arith.mulf %87, %91 : vector<8x128xf32>
    %c16 = arith.constant 16 : index
    %c0_25 = arith.constant 0 : index
    %93 = vector.load %arg9[%c16, %c0_25] : memref<64x512xf32, #tpu.memory_space<vmem>>, vector<8x512xf32>
    %94 = arith.truncf %72 : vector<8x128xf32> to vector<8x128xbf16>
    %cst_26 = arith.constant dense<0.000000e+00> : vector<8x512xf32>
    %95 = tpu.matmul %94, %0, %cst_26 {dimension_numbers = #tpu.dot_dimension_numbers<[1], [0], [0], [1], [0, 0, 1, 1], [], []>} : vector<8x128xbf16>, vector<128x512xbf16>, vector<8x512xf32> -> vector<8x512xf32>
    %96 = arith.addf %93, %95 : vector<8x512xf32>
    %97 = vector.extract_strided_slice %96 {offsets = [0, 0], sizes = [8, 384], strides = [1, 1]} : vector<8x512xf32> to vector<8x384xf32>
    %98 = arith.negf %97 : vector<8x384xf32>
    %99 = math.exp %98 : vector<8x384xf32>
    %cst_27 = arith.constant 1.000000e+00 : f32
    %100 = vector.broadcast %cst_27 : f32 to vector<8x384xf32>
    %101 = arith.addf %100, %99 : vector<8x384xf32>
    %102 = arith.divf %100, %101 : vector<8x384xf32>
    %103 = vector.extract_strided_slice %96 {offsets = [0, 384], sizes = [8, 128], strides = [1, 1]} : vector<8x512xf32> to vector<8x128xf32>
    %104 = math.tanh %103 : vector<8x128xf32>
    %105 = vector.extract_strided_slice %102 {offsets = [0, 0], sizes = [8, 128], strides = [1, 1]} : vector<8x384xf32> to vector<8x128xf32>
    %106 = vector.extract_strided_slice %102 {offsets = [0, 128], sizes = [8, 128], strides = [1, 1]} : vector<8x384xf32> to vector<8x128xf32>
    %107 = vector.extract_strided_slice %102 {offsets = [0, 256], sizes = [8, 128], strides = [1, 1]} : vector<8x384xf32> to vector<8x128xf32>
    %108 = arith.mulf %106, %70 : vector<8x128xf32>
    %109 = arith.mulf %105, %104 : vector<8x128xf32>
    %110 = arith.addf %108, %109 : vector<8x128xf32>
    %111 = math.tanh %110 : vector<8x128xf32>
    %112 = arith.mulf %107, %111 : vector<8x128xf32>
    %113 = tpu.concatenate %112, %92 in 1 : vector<8x128xf32>, vector<8x128xf32> -> vector<8x256xf32>
    %114 = arith.truncf %113 : vector<8x256xf32> to vector<8x256xbf16>
    %cst_28 = arith.constant dense<0.000000e+00> : vector<8x512xf32>
    %115 = tpu.matmul %114, %1, %cst_28 {dimension_numbers = #tpu.dot_dimension_numbers<[1], [0], [0], [1], [0, 0, 1, 1], [], []>} : vector<8x256xbf16>, vector<256x512xbf16>, vector<8x512xf32> -> vector<8x512xf32>
    %116 = arith.addf %115, %4 : vector<8x512xf32>
    %117 = vector.extract_strided_slice %116 {offsets = [0, 0], sizes = [8, 384], strides = [1, 1]} : vector<8x512xf32> to vector<8x384xf32>
    %118 = arith.negf %117 : vector<8x384xf32>
    %119 = math.exp %118 : vector<8x384xf32>
    %cst_29 = arith.constant 1.000000e+00 : f32
    %120 = vector.broadcast %cst_29 : f32 to vector<8x384xf32>
    %121 = arith.addf %120, %119 : vector<8x384xf32>
    %122 = arith.divf %120, %121 : vector<8x384xf32>
    %123 = vector.extract_strided_slice %116 {offsets = [0, 384], sizes = [8, 128], strides = [1, 1]} : vector<8x512xf32> to vector<8x128xf32>
    %124 = math.tanh %123 : vector<8x128xf32>
    %125 = vector.extract_strided_slice %122 {offsets = [0, 0], sizes = [8, 128], strides = [1, 1]} : vector<8x384xf32> to vector<8x128xf32>
    %126 = vector.extract_strided_slice %122 {offsets = [0, 128], sizes = [8, 128], strides = [1, 1]} : vector<8x384xf32> to vector<8x128xf32>
    %127 = vector.extract_strided_slice %122 {offsets = [0, 256], sizes = [8, 128], strides = [1, 1]} : vector<8x384xf32> to vector<8x128xf32>
    %128 = arith.mulf %126, %90 : vector<8x128xf32>
    %129 = arith.mulf %125, %124 : vector<8x128xf32>
    %130 = arith.addf %128, %129 : vector<8x128xf32>
    %131 = math.tanh %130 : vector<8x128xf32>
    %132 = arith.mulf %127, %131 : vector<8x128xf32>
    %c24 = arith.constant 24 : index
    %c0_30 = arith.constant 0 : index
    %133 = vector.load %arg9[%c24, %c0_30] : memref<64x512xf32, #tpu.memory_space<vmem>>, vector<8x512xf32>
    %134 = arith.truncf %112 : vector<8x128xf32> to vector<8x128xbf16>
    %cst_31 = arith.constant dense<0.000000e+00> : vector<8x512xf32>
    %135 = tpu.matmul %134, %0, %cst_31 {dimension_numbers = #tpu.dot_dimension_numbers<[1], [0], [0], [1], [0, 0, 1, 1], [], []>} : vector<8x128xbf16>, vector<128x512xbf16>, vector<8x512xf32> -> vector<8x512xf32>
    %136 = arith.addf %133, %135 : vector<8x512xf32>
    %137 = vector.extract_strided_slice %136 {offsets = [0, 0], sizes = [8, 384], strides = [1, 1]} : vector<8x512xf32> to vector<8x384xf32>
    %138 = arith.negf %137 : vector<8x384xf32>
    %139 = math.exp %138 : vector<8x384xf32>
    %cst_32 = arith.constant 1.000000e+00 : f32
    %140 = vector.broadcast %cst_32 : f32 to vector<8x384xf32>
    %141 = arith.addf %140, %139 : vector<8x384xf32>
    %142 = arith.divf %140, %141 : vector<8x384xf32>
    %143 = vector.extract_strided_slice %136 {offsets = [0, 384], sizes = [8, 128], strides = [1, 1]} : vector<8x512xf32> to vector<8x128xf32>
    %144 = math.tanh %143 : vector<8x128xf32>
    %145 = vector.extract_strided_slice %142 {offsets = [0, 0], sizes = [8, 128], strides = [1, 1]} : vector<8x384xf32> to vector<8x128xf32>
    %146 = vector.extract_strided_slice %142 {offsets = [0, 128], sizes = [8, 128], strides = [1, 1]} : vector<8x384xf32> to vector<8x128xf32>
    %147 = vector.extract_strided_slice %142 {offsets = [0, 256], sizes = [8, 128], strides = [1, 1]} : vector<8x384xf32> to vector<8x128xf32>
    %148 = arith.mulf %146, %110 : vector<8x128xf32>
    %149 = arith.mulf %145, %144 : vector<8x128xf32>
    %150 = arith.addf %148, %149 : vector<8x128xf32>
    %151 = math.tanh %150 : vector<8x128xf32>
    %152 = arith.mulf %147, %151 : vector<8x128xf32>
    %153 = tpu.concatenate %152, %132 in 1 : vector<8x128xf32>, vector<8x128xf32> -> vector<8x256xf32>
    %154 = arith.truncf %153 : vector<8x256xf32> to vector<8x256xbf16>
    %cst_33 = arith.constant dense<0.000000e+00> : vector<8x512xf32>
    %155 = tpu.matmul %154, %1, %cst_33 {dimension_numbers = #tpu.dot_dimension_numbers<[1], [0], [0], [1], [0, 0, 1, 1], [], []>} : vector<8x256xbf16>, vector<256x512xbf16>, vector<8x512xf32> -> vector<8x512xf32>
    %156 = arith.addf %155, %4 : vector<8x512xf32>
    %157 = vector.extract_strided_slice %156 {offsets = [0, 0], sizes = [8, 384], strides = [1, 1]} : vector<8x512xf32> to vector<8x384xf32>
    %158 = arith.negf %157 : vector<8x384xf32>
    %159 = math.exp %158 : vector<8x384xf32>
    %cst_34 = arith.constant 1.000000e+00 : f32
    %160 = vector.broadcast %cst_34 : f32 to vector<8x384xf32>
    %161 = arith.addf %160, %159 : vector<8x384xf32>
    %162 = arith.divf %160, %161 : vector<8x384xf32>
    %163 = vector.extract_strided_slice %156 {offsets = [0, 384], sizes = [8, 128], strides = [1, 1]} : vector<8x512xf32> to vector<8x128xf32>
    %164 = math.tanh %163 : vector<8x128xf32>
    %165 = vector.extract_strided_slice %162 {offsets = [0, 0], sizes = [8, 128], strides = [1, 1]} : vector<8x384xf32> to vector<8x128xf32>
    %166 = vector.extract_strided_slice %162 {offsets = [0, 128], sizes = [8, 128], strides = [1, 1]} : vector<8x384xf32> to vector<8x128xf32>
    %167 = vector.extract_strided_slice %162 {offsets = [0, 256], sizes = [8, 128], strides = [1, 1]} : vector<8x384xf32> to vector<8x128xf32>
    %168 = arith.mulf %166, %130 : vector<8x128xf32>
    %169 = arith.mulf %165, %164 : vector<8x128xf32>
    %170 = arith.addf %168, %169 : vector<8x128xf32>
    %171 = math.tanh %170 : vector<8x128xf32>
    %172 = arith.mulf %167, %171 : vector<8x128xf32>
    %c32 = arith.constant 32 : index
    %c0_35 = arith.constant 0 : index
    %173 = vector.load %arg9[%c32, %c0_35] : memref<64x512xf32, #tpu.memory_space<vmem>>, vector<8x512xf32>
    %174 = arith.truncf %152 : vector<8x128xf32> to vector<8x128xbf16>
    %cst_36 = arith.constant dense<0.000000e+00> : vector<8x512xf32>
    %175 = tpu.matmul %174, %0, %cst_36 {dimension_numbers = #tpu.dot_dimension_numbers<[1], [0], [0], [1], [0, 0, 1, 1], [], []>} : vector<8x128xbf16>, vector<128x512xbf16>, vector<8x512xf32> -> vector<8x512xf32>
    %176 = arith.addf %173, %175 : vector<8x512xf32>
    %177 = vector.extract_strided_slice %176 {offsets = [0, 0], sizes = [8, 384], strides = [1, 1]} : vector<8x512xf32> to vector<8x384xf32>
    %178 = arith.negf %177 : vector<8x384xf32>
    %179 = math.exp %178 : vector<8x384xf32>
    %cst_37 = arith.constant 1.000000e+00 : f32
    %180 = vector.broadcast %cst_37 : f32 to vector<8x384xf32>
    %181 = arith.addf %180, %179 : vector<8x384xf32>
    %182 = arith.divf %180, %181 : vector<8x384xf32>
    %183 = vector.extract_strided_slice %176 {offsets = [0, 384], sizes = [8, 128], strides = [1, 1]} : vector<8x512xf32> to vector<8x128xf32>
    %184 = math.tanh %183 : vector<8x128xf32>
    %185 = vector.extract_strided_slice %182 {offsets = [0, 0], sizes = [8, 128], strides = [1, 1]} : vector<8x384xf32> to vector<8x128xf32>
    %186 = vector.extract_strided_slice %182 {offsets = [0, 128], sizes = [8, 128], strides = [1, 1]} : vector<8x384xf32> to vector<8x128xf32>
    %187 = vector.extract_strided_slice %182 {offsets = [0, 256], sizes = [8, 128], strides = [1, 1]} : vector<8x384xf32> to vector<8x128xf32>
    %188 = arith.mulf %186, %150 : vector<8x128xf32>
    %189 = arith.mulf %185, %184 : vector<8x128xf32>
    %190 = arith.addf %188, %189 : vector<8x128xf32>
    %191 = math.tanh %190 : vector<8x128xf32>
    %192 = arith.mulf %187, %191 : vector<8x128xf32>
    %193 = tpu.concatenate %192, %172 in 1 : vector<8x128xf32>, vector<8x128xf32> -> vector<8x256xf32>
    %194 = arith.truncf %193 : vector<8x256xf32> to vector<8x256xbf16>
    %cst_38 = arith.constant dense<0.000000e+00> : vector<8x512xf32>
    %195 = tpu.matmul %194, %1, %cst_38 {dimension_numbers = #tpu.dot_dimension_numbers<[1], [0], [0], [1], [0, 0, 1, 1], [], []>} : vector<8x256xbf16>, vector<256x512xbf16>, vector<8x512xf32> -> vector<8x512xf32>
    %196 = arith.addf %195, %4 : vector<8x512xf32>
    %197 = vector.extract_strided_slice %196 {offsets = [0, 0], sizes = [8, 384], strides = [1, 1]} : vector<8x512xf32> to vector<8x384xf32>
    %198 = arith.negf %197 : vector<8x384xf32>
    %199 = math.exp %198 : vector<8x384xf32>
    %cst_39 = arith.constant 1.000000e+00 : f32
    %200 = vector.broadcast %cst_39 : f32 to vector<8x384xf32>
    %201 = arith.addf %200, %199 : vector<8x384xf32>
    %202 = arith.divf %200, %201 : vector<8x384xf32>
    %203 = vector.extract_strided_slice %196 {offsets = [0, 384], sizes = [8, 128], strides = [1, 1]} : vector<8x512xf32> to vector<8x128xf32>
    %204 = math.tanh %203 : vector<8x128xf32>
    %205 = vector.extract_strided_slice %202 {offsets = [0, 0], sizes = [8, 128], strides = [1, 1]} : vector<8x384xf32> to vector<8x128xf32>
    %206 = vector.extract_strided_slice %202 {offsets = [0, 128], sizes = [8, 128], strides = [1, 1]} : vector<8x384xf32> to vector<8x128xf32>
    %207 = vector.extract_strided_slice %202 {offsets = [0, 256], sizes = [8, 128], strides = [1, 1]} : vector<8x384xf32> to vector<8x128xf32>
    %208 = arith.mulf %206, %170 : vector<8x128xf32>
    %209 = arith.mulf %205, %204 : vector<8x128xf32>
    %210 = arith.addf %208, %209 : vector<8x128xf32>
    %211 = math.tanh %210 : vector<8x128xf32>
    %212 = arith.mulf %207, %211 : vector<8x128xf32>
    %c40 = arith.constant 40 : index
    %c0_40 = arith.constant 0 : index
    %213 = vector.load %arg9[%c40, %c0_40] : memref<64x512xf32, #tpu.memory_space<vmem>>, vector<8x512xf32>
    %214 = arith.truncf %192 : vector<8x128xf32> to vector<8x128xbf16>
    %cst_41 = arith.constant dense<0.000000e+00> : vector<8x512xf32>
    %215 = tpu.matmul %214, %0, %cst_41 {dimension_numbers = #tpu.dot_dimension_numbers<[1], [0], [0], [1], [0, 0, 1, 1], [], []>} : vector<8x128xbf16>, vector<128x512xbf16>, vector<8x512xf32> -> vector<8x512xf32>
    %216 = arith.addf %213, %215 : vector<8x512xf32>
    %217 = vector.extract_strided_slice %216 {offsets = [0, 0], sizes = [8, 384], strides = [1, 1]} : vector<8x512xf32> to vector<8x384xf32>
    %218 = arith.negf %217 : vector<8x384xf32>
    %219 = math.exp %218 : vector<8x384xf32>
    %cst_42 = arith.constant 1.000000e+00 : f32
    %220 = vector.broadcast %cst_42 : f32 to vector<8x384xf32>
    %221 = arith.addf %220, %219 : vector<8x384xf32>
    %222 = arith.divf %220, %221 : vector<8x384xf32>
    %223 = vector.extract_strided_slice %216 {offsets = [0, 384], sizes = [8, 128], strides = [1, 1]} : vector<8x512xf32> to vector<8x128xf32>
    %224 = math.tanh %223 : vector<8x128xf32>
    %225 = vector.extract_strided_slice %222 {offsets = [0, 0], sizes = [8, 128], strides = [1, 1]} : vector<8x384xf32> to vector<8x128xf32>
    %226 = vector.extract_strided_slice %222 {offsets = [0, 128], sizes = [8, 128], strides = [1, 1]} : vector<8x384xf32> to vector<8x128xf32>
    %227 = vector.extract_strided_slice %222 {offsets = [0, 256], sizes = [8, 128], strides = [1, 1]} : vector<8x384xf32> to vector<8x128xf32>
    %228 = arith.mulf %226, %190 : vector<8x128xf32>
    %229 = arith.mulf %225, %224 : vector<8x128xf32>
    %230 = arith.addf %228, %229 : vector<8x128xf32>
    %231 = math.tanh %230 : vector<8x128xf32>
    %232 = arith.mulf %227, %231 : vector<8x128xf32>
    %233 = tpu.concatenate %232, %212 in 1 : vector<8x128xf32>, vector<8x128xf32> -> vector<8x256xf32>
    %234 = arith.truncf %233 : vector<8x256xf32> to vector<8x256xbf16>
    %cst_43 = arith.constant dense<0.000000e+00> : vector<8x512xf32>
    %235 = tpu.matmul %234, %1, %cst_43 {dimension_numbers = #tpu.dot_dimension_numbers<[1], [0], [0], [1], [0, 0, 1, 1], [], []>} : vector<8x256xbf16>, vector<256x512xbf16>, vector<8x512xf32> -> vector<8x512xf32>
    %236 = arith.addf %235, %4 : vector<8x512xf32>
    %237 = vector.extract_strided_slice %236 {offsets = [0, 0], sizes = [8, 384], strides = [1, 1]} : vector<8x512xf32> to vector<8x384xf32>
    %238 = arith.negf %237 : vector<8x384xf32>
    %239 = math.exp %238 : vector<8x384xf32>
    %cst_44 = arith.constant 1.000000e+00 : f32
    %240 = vector.broadcast %cst_44 : f32 to vector<8x384xf32>
    %241 = arith.addf %240, %239 : vector<8x384xf32>
    %242 = arith.divf %240, %241 : vector<8x384xf32>
    %243 = vector.extract_strided_slice %236 {offsets = [0, 384], sizes = [8, 128], strides = [1, 1]} : vector<8x512xf32> to vector<8x128xf32>
    %244 = math.tanh %243 : vector<8x128xf32>
    %245 = vector.extract_strided_slice %242 {offsets = [0, 0], sizes = [8, 128], strides = [1, 1]} : vector<8x384xf32> to vector<8x128xf32>
    %246 = vector.extract_strided_slice %242 {offsets = [0, 128], sizes = [8, 128], strides = [1, 1]} : vector<8x384xf32> to vector<8x128xf32>
    %247 = vector.extract_strided_slice %242 {offsets = [0, 256], sizes = [8, 128], strides = [1, 1]} : vector<8x384xf32> to vector<8x128xf32>
    %248 = arith.mulf %246, %210 : vector<8x128xf32>
    %249 = arith.mulf %245, %244 : vector<8x128xf32>
    %250 = arith.addf %248, %249 : vector<8x128xf32>
    %251 = math.tanh %250 : vector<8x128xf32>
    %252 = arith.mulf %247, %251 : vector<8x128xf32>
    %c48 = arith.constant 48 : index
    %c0_45 = arith.constant 0 : index
    %253 = vector.load %arg9[%c48, %c0_45] : memref<64x512xf32, #tpu.memory_space<vmem>>, vector<8x512xf32>
    %254 = arith.truncf %232 : vector<8x128xf32> to vector<8x128xbf16>
    %cst_46 = arith.constant dense<0.000000e+00> : vector<8x512xf32>
    %255 = tpu.matmul %254, %0, %cst_46 {dimension_numbers = #tpu.dot_dimension_numbers<[1], [0], [0], [1], [0, 0, 1, 1], [], []>} : vector<8x128xbf16>, vector<128x512xbf16>, vector<8x512xf32> -> vector<8x512xf32>
    %256 = arith.addf %253, %255 : vector<8x512xf32>
    %257 = vector.extract_strided_slice %256 {offsets = [0, 0], sizes = [8, 384], strides = [1, 1]} : vector<8x512xf32> to vector<8x384xf32>
    %258 = arith.negf %257 : vector<8x384xf32>
    %259 = math.exp %258 : vector<8x384xf32>
    %cst_47 = arith.constant 1.000000e+00 : f32
    %260 = vector.broadcast %cst_47 : f32 to vector<8x384xf32>
    %261 = arith.addf %260, %259 : vector<8x384xf32>
    %262 = arith.divf %260, %261 : vector<8x384xf32>
    %263 = vector.extract_strided_slice %256 {offsets = [0, 384], sizes = [8, 128], strides = [1, 1]} : vector<8x512xf32> to vector<8x128xf32>
    %264 = math.tanh %263 : vector<8x128xf32>
    %265 = vector.extract_strided_slice %262 {offsets = [0, 0], sizes = [8, 128], strides = [1, 1]} : vector<8x384xf32> to vector<8x128xf32>
    %266 = vector.extract_strided_slice %262 {offsets = [0, 128], sizes = [8, 128], strides = [1, 1]} : vector<8x384xf32> to vector<8x128xf32>
    %267 = vector.extract_strided_slice %262 {offsets = [0, 256], sizes = [8, 128], strides = [1, 1]} : vector<8x384xf32> to vector<8x128xf32>
    %268 = arith.mulf %266, %230 : vector<8x128xf32>
    %269 = arith.mulf %265, %264 : vector<8x128xf32>
    %270 = arith.addf %268, %269 : vector<8x128xf32>
    %271 = math.tanh %270 : vector<8x128xf32>
    %272 = arith.mulf %267, %271 : vector<8x128xf32>
    %273 = tpu.concatenate %272, %252 in 1 : vector<8x128xf32>, vector<8x128xf32> -> vector<8x256xf32>
    %274 = arith.truncf %273 : vector<8x256xf32> to vector<8x256xbf16>
    %cst_48 = arith.constant dense<0.000000e+00> : vector<8x512xf32>
    %275 = tpu.matmul %274, %1, %cst_48 {dimension_numbers = #tpu.dot_dimension_numbers<[1], [0], [0], [1], [0, 0, 1, 1], [], []>} : vector<8x256xbf16>, vector<256x512xbf16>, vector<8x512xf32> -> vector<8x512xf32>
    %276 = arith.addf %275, %4 : vector<8x512xf32>
    %277 = vector.extract_strided_slice %276 {offsets = [0, 0], sizes = [8, 384], strides = [1, 1]} : vector<8x512xf32> to vector<8x384xf32>
    %278 = arith.negf %277 : vector<8x384xf32>
    %279 = math.exp %278 : vector<8x384xf32>
    %cst_49 = arith.constant 1.000000e+00 : f32
    %280 = vector.broadcast %cst_49 : f32 to vector<8x384xf32>
    %281 = arith.addf %280, %279 : vector<8x384xf32>
    %282 = arith.divf %280, %281 : vector<8x384xf32>
    %283 = vector.extract_strided_slice %276 {offsets = [0, 384], sizes = [8, 128], strides = [1, 1]} : vector<8x512xf32> to vector<8x128xf32>
    %284 = math.tanh %283 : vector<8x128xf32>
    %285 = vector.extract_strided_slice %282 {offsets = [0, 0], sizes = [8, 128], strides = [1, 1]} : vector<8x384xf32> to vector<8x128xf32>
    %286 = vector.extract_strided_slice %282 {offsets = [0, 128], sizes = [8, 128], strides = [1, 1]} : vector<8x384xf32> to vector<8x128xf32>
    %287 = vector.extract_strided_slice %282 {offsets = [0, 256], sizes = [8, 128], strides = [1, 1]} : vector<8x384xf32> to vector<8x128xf32>
    %288 = arith.mulf %286, %250 : vector<8x128xf32>
    %289 = arith.mulf %285, %284 : vector<8x128xf32>
    %290 = arith.addf %288, %289 : vector<8x128xf32>
    %291 = math.tanh %290 : vector<8x128xf32>
    %292 = arith.mulf %287, %291 : vector<8x128xf32>
    %c56 = arith.constant 56 : index
    %c0_50 = arith.constant 0 : index
    %293 = vector.load %arg9[%c56, %c0_50] : memref<64x512xf32, #tpu.memory_space<vmem>>, vector<8x512xf32>
    %294 = arith.truncf %272 : vector<8x128xf32> to vector<8x128xbf16>
    %cst_51 = arith.constant dense<0.000000e+00> : vector<8x512xf32>
    %295 = tpu.matmul %294, %0, %cst_51 {dimension_numbers = #tpu.dot_dimension_numbers<[1], [0], [0], [1], [0, 0, 1, 1], [], []>} : vector<8x128xbf16>, vector<128x512xbf16>, vector<8x512xf32> -> vector<8x512xf32>
    %296 = arith.addf %293, %295 : vector<8x512xf32>
    %297 = vector.extract_strided_slice %296 {offsets = [0, 0], sizes = [8, 384], strides = [1, 1]} : vector<8x512xf32> to vector<8x384xf32>
    %298 = arith.negf %297 : vector<8x384xf32>
    %299 = math.exp %298 : vector<8x384xf32>
    %cst_52 = arith.constant 1.000000e+00 : f32
    %300 = vector.broadcast %cst_52 : f32 to vector<8x384xf32>
    %301 = arith.addf %300, %299 : vector<8x384xf32>
    %302 = arith.divf %300, %301 : vector<8x384xf32>
    %303 = vector.extract_strided_slice %296 {offsets = [0, 384], sizes = [8, 128], strides = [1, 1]} : vector<8x512xf32> to vector<8x128xf32>
    %304 = math.tanh %303 : vector<8x128xf32>
    %305 = vector.extract_strided_slice %302 {offsets = [0, 0], sizes = [8, 128], strides = [1, 1]} : vector<8x384xf32> to vector<8x128xf32>
    %306 = vector.extract_strided_slice %302 {offsets = [0, 128], sizes = [8, 128], strides = [1, 1]} : vector<8x384xf32> to vector<8x128xf32>
    %307 = vector.extract_strided_slice %302 {offsets = [0, 256], sizes = [8, 128], strides = [1, 1]} : vector<8x384xf32> to vector<8x128xf32>
    %308 = arith.mulf %306, %270 : vector<8x128xf32>
    %309 = arith.mulf %305, %304 : vector<8x128xf32>
    %310 = arith.addf %308, %309 : vector<8x128xf32>
    %311 = math.tanh %310 : vector<8x128xf32>
    %312 = arith.mulf %307, %311 : vector<8x128xf32>
    %313 = tpu.concatenate %312, %292 in 1 : vector<8x128xf32>, vector<8x128xf32> -> vector<8x256xf32>
    %314 = arith.truncf %313 : vector<8x256xf32> to vector<8x256xbf16>
    %cst_53 = arith.constant dense<0.000000e+00> : vector<8x512xf32>
    %315 = tpu.matmul %314, %1, %cst_53 {dimension_numbers = #tpu.dot_dimension_numbers<[1], [0], [0], [1], [0, 0, 1, 1], [], []>} : vector<8x256xbf16>, vector<256x512xbf16>, vector<8x512xf32> -> vector<8x512xf32>
    %316 = arith.addf %315, %4 : vector<8x512xf32>
    %317 = vector.extract_strided_slice %316 {offsets = [0, 0], sizes = [8, 384], strides = [1, 1]} : vector<8x512xf32> to vector<8x384xf32>
    %318 = arith.negf %317 : vector<8x384xf32>
    %319 = math.exp %318 : vector<8x384xf32>
    %cst_54 = arith.constant 1.000000e+00 : f32
    %320 = vector.broadcast %cst_54 : f32 to vector<8x384xf32>
    %321 = arith.addf %320, %319 : vector<8x384xf32>
    %322 = arith.divf %320, %321 : vector<8x384xf32>
    %323 = vector.extract_strided_slice %316 {offsets = [0, 384], sizes = [8, 128], strides = [1, 1]} : vector<8x512xf32> to vector<8x128xf32>
    %324 = math.tanh %323 : vector<8x128xf32>
    %325 = vector.extract_strided_slice %322 {offsets = [0, 0], sizes = [8, 128], strides = [1, 1]} : vector<8x384xf32> to vector<8x128xf32>
    %326 = vector.extract_strided_slice %322 {offsets = [0, 128], sizes = [8, 128], strides = [1, 1]} : vector<8x384xf32> to vector<8x128xf32>
    %327 = vector.extract_strided_slice %322 {offsets = [0, 256], sizes = [8, 128], strides = [1, 1]} : vector<8x384xf32> to vector<8x128xf32>
    %328 = arith.mulf %326, %290 : vector<8x128xf32>
    %329 = arith.mulf %325, %324 : vector<8x128xf32>
    %330 = arith.addf %328, %329 : vector<8x128xf32>
    %331 = math.tanh %330 : vector<8x128xf32>
    %332 = arith.mulf %327, %331 : vector<8x128xf32>
    %333 = arith.truncf %332 : vector<8x128xf32> to vector<8x128xbf16>
    %c0_55 = arith.constant 0 : index
    %c0_56 = arith.constant 0 : index
    %334 = vector.load %arg6[%c0_55, %c0_56] : memref<128x128xbf16, #tpu.memory_space<vmem>>, vector<128x128xbf16>
    %cst_57 = arith.constant dense<0.000000e+00> : vector<8x128xf32>
    %335 = tpu.matmul %333, %334, %cst_57 {dimension_numbers = #tpu.dot_dimension_numbers<[1], [0], [0], [1], [0, 0, 1, 1], [], []>} : vector<8x128xbf16>, vector<128x128xbf16>, vector<8x128xf32> -> vector<8x128xf32>
    %c0_58 = arith.constant 0 : index
    %c0_59 = arith.constant 0 : index
    %336 = vector.load %arg7[%c0_58, %c0_59] : memref<1x128xf32, #tpu.memory_space<vmem>>, vector<1x128xf32>
    %337 = vector.broadcast %336 : vector<1x128xf32> to vector<8x128xf32>
    %338 = arith.addf %335, %337 : vector<8x128xf32>
    %c0_60 = arith.constant 0 : index
    %c0_61 = arith.constant 0 : index
    %339 = vector.load %arg8[%c0_60, %c0_61] : memref<8x128xf32, #tpu.memory_space<vmem>>, vector<8x128xf32>
    tpu.vector_store %arg8[%c0_60, %c0_61], %338 {strides = array<i32>} : memref<8x128xf32, #tpu.memory_space<vmem>>, vector<8x128xf32>,
    return
  }
}

</mosaic_0001>

<llo_original>
// kernel: char_rnn_forward.1
$region0: #{char_rnn_forward.1}
  #allocation0 [shape = 'u32[]', space=smem, size = 0x4, offset = 0x4, fixed_abs, tag = 'smem constant byte address 0x4 - core index']
  #allocation1 [shape = 'u32[144,128]{1,0:T(1,128)}', space=vmem, size = 0x12000, scoped, tag = 'internal scratch']
  #allocation2 [shape = 'f32[64,512]{1,0:T(8,128)}', space=vmem, size = 0x20000, scoped, tag = 'scratch operand']
  %s0 = inlined_call_operand.vmem [shape: bf16[64,128], index: 0, kind: input, shape index: {}]
  %s1 = inlined_call_operand.vmem [shape: bf16[128,512], index: 1, kind: input, shape index: {}]
  %s2 = inlined_call_operand.vmem [shape: bf16[128,512], index: 2, kind: input, shape index: {}]
  %s3 = inlined_call_operand.vmem [shape: f32[1,512], index: 3, kind: input, shape index: {}]
  %s4 = inlined_call_operand.vmem [shape: bf16[256,512], index: 4, kind: input, shape index: {}]
  %s5 = inlined_call_operand.vmem [shape: f32[1,512], index: 5, kind: input, shape index: {}]
  %s6 = inlined_call_operand.vmem [shape: bf16[128,128], index: 6, kind: input, shape index: {}]
  %s7 = inlined_call_operand.vmem [shape: f32[1,128], index: 7, kind: input, shape index: {}]
  %s8 = inlined_call_operand.vmem [shape: f32[8,128], index: 8, kind: output, shape index: {}]
  %s9 = sld [smem:[#allocation0]]
  $region42: #{char_rnn_forward.1} parent=0
    _
  %s11 = ssub.s32 1, %s9
  %s12 = scalar_select 0, %s11, %s9
  // Predicated region
  $region2: #{char_rnn_forward.1} parent=0 // pred_check
    _
  $region3: #{char_rnn_forward.1} parent=0 // pred_check_branch
    %14 = sbr.rel (0) target = $region5
  $region4: #{char_rnn_forward.1} parent=0 // pred_region
    _
  $region5: #{char_rnn_forward.1} parent=0 // pred_fallthru
    _
  // Predicated region
  $region6: #{char_rnn_forward.1} parent=0 // pred_check
    _
  $region7: #{char_rnn_forward.1} parent=0 // pred_check_branch
    %16 = sbr.rel (0) target = $region9
  $region8: #{char_rnn_forward.1} parent=0 // pred_region
    _
  $region9: #{char_rnn_forward.1} parent=0 // pred_fallthru
    _
  // Predicated region
  $region10: #{char_rnn_forward.1} parent=0 // pred_check
    _
  $region11: #{char_rnn_forward.1} parent=0 // pred_check_branch
    %18 = sbr.rel (0) target = $region13
  $region12: #{char_rnn_forward.1} parent=0 // pred_region
    _
  $region13: #{char_rnn_forward.1} parent=0 // pred_fallthru
    _
  // Predicated region
  $region14: #{char_rnn_forward.1} parent=0 // pred_check
    _
  $region15: #{char_rnn_forward.1} parent=0 // pred_check_branch
    %20 = sbr.rel (0) target = $region17
  $region16: #{char_rnn_forward.1} parent=0 // pred_region
    _
  $region17: #{char_rnn_forward.1} parent=0 // pred_fallthru
    _
  // Predicated region
  $region18: #{char_rnn_forward.1} parent=0 // pred_check
    _
  $region19: #{char_rnn_forward.1} parent=0 // pred_check_branch
    %22 = sbr.rel (0) target = $region21
  $region20: #{char_rnn_forward.1} parent=0 // pred_region
    _
  $region21: #{char_rnn_forward.1} parent=0 // pred_fallthru
    _
  // Predicated region
  $region22: #{char_rnn_forward.1} parent=0 // pred_check
    _
  $region23: #{char_rnn_forward.1} parent=0 // pred_check_branch
    %24 = sbr.rel (0) target = $region25
  $region24: #{char_rnn_forward.1} parent=0 // pred_region
    _
  $region25: #{char_rnn_forward.1} parent=0 // pred_fallthru
    _
  // Predicated region
  $region26: #{char_rnn_forward.1} parent=0 // pred_check
    _
  $region27: #{char_rnn_forward.1} parent=0 // pred_check_branch
    %26 = sbr.rel (0) target = $region29
  $region28: #{char_rnn_forward.1} parent=0 // pred_region
    _
  $region29: #{char_rnn_forward.1} parent=0 // pred_fallthru
    _
  // Predicated region
  $region30: #{char_rnn_forward.1} parent=0 // pred_check
    _
  $region31: #{char_rnn_forward.1} parent=0 // pred_check_branch
    %28 = sbr.rel (0) target = $region33
  $region32: #{char_rnn_forward.1} parent=0 // pred_region
    _
  $region33: #{char_rnn_forward.1} parent=0 // pred_fallthru
    _
  %v30 = vld [vmem:[%s2] sm:$0xff]
  %v31 = vld [vmem:[%s2 + $0x8] sm:$0xff]
  %v32 = vld [vmem:[%s2 + $0x10] sm:$0xff]
  %v33 = vld [vmem:[%s2 + $0x18] sm:$0xff]
  %v34 = vld [vmem:[%s2 + $0x20] sm:$0xff]
  %v35 = vld [vmem:[%s2 + $0x28] sm:$0xff]
  %v36 = vld [vmem:[%s2 + $0x30] sm:$0xff]
  %v37 = vld [vmem:[%s2 + $0x38] sm:$0xff]
  %v38 = vld [vmem:[%s2 + $0x40] sm:$0xff]
  %v39 = vld [vmem:[%s2 + $0x48] sm:$0xff]
  %v40 = vld [vmem:[%s2 + $0x50] sm:$0xff]
  %v41 = vld [vmem:[%s2 + $0x58] sm:$0xff]
  %v42 = vld [vmem:[%s2 + $0x60] sm:$0xff]
  %v43 = vld [vmem:[%s2 + $0x68] sm:$0xff]
  %v44 = vld [vmem:[%s2 + $0x70] sm:$0xff]
  %v45 = vld [vmem:[%s2 + $0x78] sm:$0xff]
  %v46 = vld [vmem:[%s2 + $0x80] sm:$0xff]
  %v47 = vld [vmem:[%s2 + $0x88] sm:$0xff]
  %v48 = vld [vmem:[%s2 + $0x90] sm:$0xff]
  %v49 = vld [vmem:[%s2 + $0x98] sm:$0xff]
  %v50 = vld [vmem:[%s2 + $0xa0] sm:$0xff]
  %v51 = vld [vmem:[%s2 + $0xa8] sm:$0xff]
  %v52 = vld [vmem:[%s2 + $0xb0] sm:$0xff]
  %v53 = vld [vmem:[%s2 + $0xb8] sm:$0xff]
  %v54 = vld [vmem:[%s2 + $0xc0] sm:$0xff]
  %v55 = vld [vmem:[%s2 + $0xc8] sm:$0xff]
  %v56 = vld [vmem:[%s2 + $0xd0] sm:$0xff]
  %v57 = vld [vmem:[%s2 + $0xd8] sm:$0xff]
  %v58 = vld [vmem:[%s2 + $0xe0] sm:$0xff]
  %v59 = vld [vmem:[%s2 + $0xe8] sm:$0xff]
  %v60 = vld [vmem:[%s2 + $0xf0] sm:$0xff]
  %v61 = vld [vmem:[%s2 + $0xf8] sm:$0xff]
  %v62 = vld [vmem:[%s4] sm:$0xff]
  %v63 = vld [vmem:[%s4 + $0x8] sm:$0xff]
  %v64 = vld [vmem:[%s4 + $0x10] sm:$0xff]
  %v65 = vld [vmem:[%s4 + $0x18] sm:$0xff]
  %v66 = vld [vmem:[%s4 + $0x20] sm:$0xff]
  %v67 = vld [vmem:[%s4 + $0x28] sm:$0xff]
  %v68 = vld [vmem:[%s4 + $0x30] sm:$0xff]
  %v69 = vld [vmem:[%s4 + $0x38] sm:$0xff]
  %v70 = vld [vmem:[%s4 + $0x40] sm:$0xff]
  %v71 = vld [vmem:[%s4 + $0x48] sm:$0xff]
  %v72 = vld [vmem:[%s4 + $0x50] sm:$0xff]
  %v73 = vld [vmem:[%s4 + $0x58] sm:$0xff]
  %v74 = vld [vmem:[%s4 + $0x60] sm:$0xff]
  %v75 = vld [vmem:[%s4 + $0x68] sm:$0xff]
  %v76 = vld [vmem:[%s4 + $0x70] sm:$0xff]
  %v77 = vld [vmem:[%s4 + $0x78] sm:$0xff]
  %v78 = vld [vmem:[%s4 + $0x80] sm:$0xff]
  %v79 = vld [vmem:[%s4 + $0x88] sm:$0xff]
  %v80 = vld [vmem:[%s4 + $0x90] sm:$0xff]
  %v81 = vld [vmem:[%s4 + $0x98] sm:$0xff]
  %v82 = vld [vmem:[%s4 + $0xa0] sm:$0xff]
  %v83 = vld [vmem:[%s4 + $0xa8] sm:$0xff]
  %v84 = vld [vmem:[%s4 + $0xb0] sm:$0xff]
  %v85 = vld [vmem:[%s4 + $0xb8] sm:$0xff]
  %v86 = vld [vmem:[%s4 + $0xc0] sm:$0xff]
  %v87 = vld [vmem:[%s4 + $0xc8] sm:$0xff]
  %v88 = vld [vmem:[%s4 + $0xd0] sm:$0xff]
  %v89 = vld [vmem:[%s4 + $0xd8] sm:$0xff]
  %v90 = vld [vmem:[%s4 + $0xe0] sm:$0xff]
  %v91 = vld [vmem:[%s4 + $0xe8] sm:$0xff]
  %v92 = vld [vmem:[%s4 + $0xf0] sm:$0xff]
  %v93 = vld [vmem:[%s4 + $0xf8] sm:$0xff]
  %v94 = vld [vmem:[%s4 + $0x100] sm:$0xff]
  %v95 = vld [vmem:[%s4 + $0x108] sm:$0xff]
  %v96 = vld [vmem:[%s4 + $0x110] sm:$0xff]
  %v97 = vld [vmem:[%s4 + $0x118] sm:$0xff]
  %v98 = vld [vmem:[%s4 + $0x120] sm:$0xff]
  %v99 = vld [vmem:[%s4 + $0x128] sm:$0xff]
  %v100 = vld [vmem:[%s4 + $0x130] sm:$0xff]
  %v101 = vld [vmem:[%s4 + $0x138] sm:$0xff]
  %v102 = vld [vmem:[%s4 + $0x140] sm:$0xff]
  %v103 = vld [vmem:[%s4 + $0x148] sm:$0xff]
  %v104 = vld [vmem:[%s4 + $0x150] sm:$0xff]
  %v105 = vld [vmem:[%s4 + $0x158] sm:$0xff]
  %v106 = vld [vmem:[%s4 + $0x160] sm:$0xff]
  %v107 = vld [vmem:[%s4 + $0x168] sm:$0xff]
  %v108 = vld [vmem:[%s4 + $0x170] sm:$0xff]
  %v109 = vld [vmem:[%s4 + $0x178] sm:$0xff]
  %v110 = vld [vmem:[%s4 + $0x180] sm:$0xff]
  %v111 = vld [vmem:[%s4 + $0x188] sm:$0xff]
  %v112 = vld [vmem:[%s4 + $0x190] sm:$0xff]
  %v113 = vld [vmem:[%s4 + $0x198] sm:$0xff]
  %v114 = vld [vmem:[%s4 + $0x1a0] sm:$0xff]
  %v115 = vld [vmem:[%s4 + $0x1a8] sm:$0xff]
  %v116 = vld [vmem:[%s4 + $0x1b0] sm:$0xff]
  %v117 = vld [vmem:[%s4 + $0x1b8] sm:$0xff]
  %v118 = vld [vmem:[%s4 + $0x1c0] sm:$0xff]
  %v119 = vld [vmem:[%s4 + $0x1c8] sm:$0xff]
  %v120 = vld [vmem:[%s4 + $0x1d0] sm:$0xff]
  %v121 = vld [vmem:[%s4 + $0x1d8] sm:$0xff]
  %v122 = vld [vmem:[%s4 + $0x1e0] sm:$0xff]
  %v123 = vld [vmem:[%s4 + $0x1e8] sm:$0xff]
  %v124 = vld [vmem:[%s4 + $0x1f0] sm:$0xff]
  %v125 = vld [vmem:[%s4 + $0x1f8] sm:$0xff]
  %v126 = vld [vmem:[%s5] sm:$0xf]
  %v128 = vlaneseq
  %v129 = vshrl.u32 %v128, 7
  %v130 = vsub.s32 0, %v129
  %v131 = vrot.slane %v126, %v130
  %v132 = vlaneseq
  %v133 = vshrl.u32 %v132, 7
  %v134 = vsub.s32 1, %v133
  %v135 = vrot.slane %v126, %v134
  %v136 = vlaneseq
  %v137 = vshrl.u32 %v136, 7
  %v138 = vsub.s32 2, %v137
  %v139 = vrot.slane %v126, %v138
  %v140 = vlaneseq
  %v141 = vshrl.u32 %v140, 7
  %v142 = vsub.s32 3, %v141
  %v143 = vrot.slane %v126, %v142
  %v148 = vld [vmem:[%s0] sm:$0xf]
  %v149 = vld [vmem:[%s0 + $0x4] sm:$0xf]
  %v150 = vld [vmem:[%s0 + $0x8] sm:$0xf]
  %v151 = vld [vmem:[%s0 + $0xc] sm:$0xf]
  %v152 = vld [vmem:[%s0 + $0x10] sm:$0xf]
  %v153 = vld [vmem:[%s0 + $0x14] sm:$0xf]
  %v154 = vld [vmem:[%s0 + $0x18] sm:$0xf]
  %v155 = vld [vmem:[%s0 + $0x1c] sm:$0xf]
  %v156 = vld [vmem:[%s1] sm:$0xff]
  %v157 = vld [vmem:[%s1 + $0x8] sm:$0xff]
  %v158 = vld [vmem:[%s1 + $0x10] sm:$0xff]
  %v159 = vld [vmem:[%s1 + $0x18] sm:$0xff]
  %v160 = vld [vmem:[%s1 + $0x20] sm:$0xff]
  %v161 = vld [vmem:[%s1 + $0x28] sm:$0xff]
  %v162 = vld [vmem:[%s1 + $0x30] sm:$0xff]
  %v163 = vld [vmem:[%s1 + $0x38] sm:$0xff]
  %v164 = vld [vmem:[%s1 + $0x40] sm:$0xff]
  %v165 = vld [vmem:[%s1 + $0x48] sm:$0xff]
  %v166 = vld [vmem:[%s1 + $0x50] sm:$0xff]
  %v167 = vld [vmem:[%s1 + $0x58] sm:$0xff]
  %v168 = vld [vmem:[%s1 + $0x60] sm:$0xff]
  %v169 = vld [vmem:[%s1 + $0x68] sm:$0xff]
  %v170 = vld [vmem:[%s1 + $0x70] sm:$0xff]
  %v171 = vld [vmem:[%s1 + $0x78] sm:$0xff]
  %v172 = vld [vmem:[%s1 + $0x80] sm:$0xff]
  %v173 = vld [vmem:[%s1 + $0x88] sm:$0xff]
  %v174 = vld [vmem:[%s1 + $0x90] sm:$0xff]
  %v175 = vld [vmem:[%s1 + $0x98] sm:$0xff]
  %v176 = vld [vmem:[%s1 + $0xa0] sm:$0xff]
  %v177 = vld [vmem:[%s1 + $0xa8] sm:$0xff]
  %v178 = vld [vmem:[%s1 + $0xb0] sm:$0xff]
  %v179 = vld [vmem:[%s1 + $0xb8] sm:$0xff]
  %v180 = vld [vmem:[%s1 + $0xc0] sm:$0xff]
  %v181 = vld [vmem:[%s1 + $0xc8] sm:$0xff]
  %v182 = vld [vmem:[%s1 + $0xd0] sm:$0xff]
  %v183 = vld [vmem:[%s1 + $0xd8] sm:$0xff]
  %v184 = vld [vmem:[%s1 + $0xe0] sm:$0xff]
  %v185 = vld [vmem:[%s1 + $0xe8] sm:$0xff]
  %v186 = vld [vmem:[%s1 + $0xf0] sm:$0xff]
  %v187 = vld [vmem:[%s1 + $0xf8] sm:$0xff]
  %v188 = vld [vmem:[%s3] sm:$0xf]
  %v190 = vlaneseq
  %v191 = vshrl.u32 %v190, 7
  %v192 = vsub.s32 0, %v191
  %v193 = vrot.slane %v188, %v192
  %v194 = vlaneseq
  %v195 = vshrl.u32 %v194, 7
  %v196 = vsub.s32 1, %v195
  %v197 = vrot.slane %v188, %v196
  %v198 = vlaneseq
  %v199 = vshrl.u32 %v198, 7
  %v200 = vsub.s32 2, %v199
  %v201 = vrot.slane %v188, %v200
  %v202 = vlaneseq
  %v203 = vshrl.u32 %v202, 7
  %v204 = vsub.s32 3, %v203
  %v205 = vrot.slane %v188, %v204
  %v218 = vunpack.c.l.b16 %v148
  %v219 = vunpack.c.l.b16 %v149
  %v220 = vunpack.c.l.b16 %v150
  %v221 = vunpack.c.l.b16 %v151
  %v222 = vunpack.c.l.b16 %v152
  %v223 = vunpack.c.l.b16 %v153
  %v224 = vunpack.c.l.b16 %v154
  %v225 = vunpack.c.l.b16 %v155
  %v226 = vpack.c.b16 %v219, %v218
  %v227 = vpack.c.b16 %v221, %v220
  %v228 = vpack.c.b16 %v223, %v222
  %v229 = vpack.c.b16 %v225, %v224
  %v266 = vunpack.c.l.b16 %v156
  %v267 = vunpack.c.h.b16 %v156
  %v268 = vunpack.c.l.b16 %v157
  %v269 = vunpack.c.h.b16 %v157
  %v270 = vunpack.c.l.b16 %v158
  %v271 = vunpack.c.h.b16 %v158
  %v272 = vunpack.c.l.b16 %v159
  %v273 = vunpack.c.h.b16 %v159
  %v274 = vunpack.c.l.b16 %v160
  %v275 = vunpack.c.h.b16 %v160
  %v276 = vunpack.c.l.b16 %v161
  %v277 = vunpack.c.h.b16 %v161
  %v278 = vunpack.c.l.b16 %v162
  %v279 = vunpack.c.h.b16 %v162
  %v280 = vunpack.c.l.b16 %v163
  %v281 = vunpack.c.h.b16 %v163
  %v282 = vunpack.c.l.b16 %v164
  %v283 = vunpack.c.h.b16 %v164
  %v284 = vunpack.c.l.b16 %v165
  %v285 = vunpack.c.h.b16 %v165
  %v286 = vunpack.c.l.b16 %v166
  %v287 = vunpack.c.h.b16 %v166
  %v288 = vunpack.c.l.b16 %v167
  %v289 = vunpack.c.h.b16 %v167
  %v290 = vunpack.c.l.b16 %v168
  %v291 = vunpack.c.h.b16 %v168
  %v292 = vunpack.c.l.b16 %v169
  %v293 = vunpack.c.h.b16 %v169
  %v294 = vunpack.c.l.b16 %v170
  %v295 = vunpack.c.h.b16 %v170
  %v296 = vunpack.c.l.b16 %v171
  %v297 = vunpack.c.h.b16 %v171
  %v298 = vunpack.c.l.b16 %v172
  %v299 = vunpack.c.h.b16 %v172
  %v300 = vunpack.c.l.b16 %v173
  %v301 = vunpack.c.h.b16 %v173
  %v302 = vunpack.c.l.b16 %v174
  %v303 = vunpack.c.h.b16 %v174
  %v304 = vunpack.c.l.b16 %v175
  %v305 = vunpack.c.h.b16 %v175
  %v306 = vunpack.c.l.b16 %v176
  %v307 = vunpack.c.h.b16 %v176
  %v308 = vunpack.c.l.b16 %v177
  %v309 = vunpack.c.h.b16 %v177
  %v310 = vunpack.c.l.b16 %v178
  %v311 = vunpack.c.h.b16 %v178
  %v312 = vunpack.c.l.b16 %v179
  %v313 = vunpack.c.h.b16 %v179
  %v314 = vunpack.c.l.b16 %v180
  %v315 = vunpack.c.h.b16 %v180
  %v316 = vunpack.c.l.b16 %v181
  %v317 = vunpack.c.h.b16 %v181
  %v318 = vunpack.c.l.b16 %v182
  %v319 = vunpack.c.h.b16 %v182
  %v320 = vunpack.c.l.b16 %v183
  %v321 = vunpack.c.h.b16 %v183
  %v322 = vunpack.c.l.b16 %v184
  %v323 = vunpack.c.h.b16 %v184
  %v324 = vunpack.c.l.b16 %v185
  %v325 = vunpack.c.h.b16 %v185
  %v326 = vunpack.c.l.b16 %v186
  %v327 = vunpack.c.h.b16 %v186
  %v328 = vunpack.c.l.b16 %v187
  %v329 = vunpack.c.h.b16 %v187
  %v330 = vpack.c.b16 %v270, %v266
  %v331 = vpack.c.b16 %v271, %v267
  %v332 = vpack.c.b16 %v272, %v268
  %v333 = vpack.c.b16 %v273, %v269
  %v334 = vpack.c.b16 %v278, %v274
  %v335 = vpack.c.b16 %v279, %v275
  %v336 = vpack.c.b16 %v280, %v276
  %v337 = vpack.c.b16 %v281, %v277
  %v338 = vpack.c.b16 %v286, %v282
  %v339 = vpack.c.b16 %v287, %v283
  %v340 = vpack.c.b16 %v288, %v284
  %v341 = vpack.c.b16 %v289, %v285
  %v342 = vpack.c.b16 %v294, %v290
  %v343 = vpack.c.b16 %v295, %v291
  %v344 = vpack.c.b16 %v296, %v292
  %v345 = vpack.c.b16 %v297, %v293
  %v346 = vpack.c.b16 %v302, %v298
  %v347 = vpack.c.b16 %v303, %v299
  %v348 = vpack.c.b16 %v304, %v300
  %v349 = vpack.c.b16 %v305, %v301
  %v350 = vpack.c.b16 %v310, %v306
  %v351 = vpack.c.b16 %v311, %v307
  %v352 = vpack.c.b16 %v312, %v308
  %v353 = vpack.c.b16 %v313, %v309
  %v354 = vpack.c.b16 %v318, %v314
  %v355 = vpack.c.b16 %v319, %v315
  %v356 = vpack.c.b16 %v320, %v316
  %v357 = vpack.c.b16 %v321, %v317
  %v358 = vpack.c.b16 %v326, %v322
  %v359 = vpack.c.b16 %v327, %v323
  %v360 = vpack.c.b16 %v328, %v324
  %v361 = vpack.c.b16 %v329, %v325
  %394 = vmatprep.subr.bf16.mxu0 %v359
  %395 = vmatpush1.bf16.msra.mxu0 %v358
  %396 = vmatprep.subr.bf16.mxu0 %v355
  %397 = vmatpush1.bf16.msra.mxu0 %v354
  %398 = vmatprep.subr.bf16.mxu0 %v351
  %399 = vmatpush1.bf16.msra.mxu0 %v350
  %400 = vmatprep.subr.bf16.mxu0 %v347
  %401 = vmatpush1.bf16.msra.mxu0 %v346
  %402 = vmatprep.subr.bf16.mxu0 %v343
  %403 = vmatpush1.bf16.msra.mxu0 %v342
  %404 = vmatprep.subr.bf16.mxu0 %v339
  %405 = vmatpush1.bf16.msra.mxu0 %v338
  %406 = vmatprep.subr.bf16.mxu0 %v335
  %407 = vmatpush1.bf16.msra.mxu0 %v334
  %408 = vmatprep.subr.bf16.mxu0 %v331
  %409 = vmatpush1.bf16.msra.mxu0 %v330
  %410 = vmatprep.subr.bf16.mxu0 0
  %411 = vmatpush2.bf16.msra.mxu0 0
  %412 = vmatprep.subr.bf16.mxu0 0
  %413 = vmatpush2.bf16.msra.mxu0 0
  %414 = vmatprep.subr.bf16.mxu0 0
  %415 = vmatpush2.bf16.msra.mxu0 0
  %416 = vmatprep.subr.bf16.mxu0 0
  %417 = vmatpush2.bf16.msra.mxu0 0
  %418 = vmatprep.subr.bf16.mxu0 0
  %419 = vmatpush2.bf16.msra.mxu0 0
  %420 = vmatprep.subr.bf16.mxu0 0
  %421 = vmatpush2.bf16.msra.mxu0 0
  %422 = vmatprep.subr.bf16.mxu0 0
  %423 = vmatpush2.bf16.msra.mxu0 0
  %424 = vmatprep.subr.bf16.mxu0 0
  %425 = vmatpush2.bf16.msra.mxu0 0
  %426 = vmatprep.mubr.bf16.mxu0 0
  %427 = vmatmul.mubr.bf16.gmra.mxu0 %v226
  %v428 = vpop.f32.mrf.mxu0
  %v429 = vadd.f32 %v193, %v428
  %v430 = vpop.f32.mrf.mxu0
  %v431 = vadd.f32 %v197, %v430
  %v432 = vpop.f32.mrf.mxu0
  %v433 = vadd.f32 %v193, %v432
  %v434 = vpop.f32.mrf.mxu0
  %v435 = vadd.f32 %v197, %v434
  %436 = vmatprep.mubr.bf16.mxu0 0
  %437 = vmatmul.mubr.bf16.gmra.mxu0 %v227
  %v438 = vpop.f32.mrf.mxu0
  %v439 = vadd.f32 %v193, %v438
  %v440 = vpop.f32.mrf.mxu0
  %v441 = vadd.f32 %v197, %v440
  %v442 = vpop.f32.mrf.mxu0
  %v443 = vadd.f32 %v193, %v442
  %v444 = vpop.f32.mrf.mxu0
  %v445 = vadd.f32 %v197, %v444
  %446 = vmatprep.mubr.bf16.mxu0 0
  %447 = vmatmul.mubr.bf16.gmra.mxu0 %v228
  %v448 = vpop.f32.mrf.mxu0
  %v449 = vadd.f32 %v193, %v448
  %v450 = vpop.f32.mrf.mxu0
  %v451 = vadd.f32 %v197, %v450
  %v452 = vpop.f32.mrf.mxu0
  %v453 = vadd.f32 %v193, %v452
  %v454 = vpop.f32.mrf.mxu0
  %v455 = vadd.f32 %v197, %v454
  %456 = vmatprep.mubr.bf16.mxu0 0
  %457 = vmatmul.mubr.bf16.gmra.mxu0 %v229
  %v458 = vpop.f32.mrf.mxu0
  %v459 = vadd.f32 %v193, %v458
  %v460 = vpop.f32.mrf.mxu0
  %v461 = vadd.f32 %v197, %v460
  %v462 = vpop.f32.mrf.mxu0
  %v463 = vadd.f32 %v193, %v462
  %v464 = vpop.f32.mrf.mxu0
  %v465 = vadd.f32 %v197, %v464
  %466 = vdwg.mxu0
  %467 = vmatprep.subr.bf16.mxu0 %v361
  %468 = vmatpush1.bf16.msra.mxu0 %v360
  %469 = vmatprep.subr.bf16.mxu0 %v357
  %470 = vmatpush1.bf16.msra.mxu0 %v356
  %471 = vmatprep.subr.bf16.mxu0 %v353
  %472 = vmatpush1.bf16.msra.mxu0 %v352
  %473 = vmatprep.subr.bf16.mxu0 %v349
  %474 = vmatpush1.bf16.msra.mxu0 %v348
  %475 = vmatprep.subr.bf16.mxu0 %v345
  %476 = vmatpush1.bf16.msra.mxu0 %v344
  %477 = vmatprep.subr.bf16.mxu0 %v341
  %478 = vmatpush1.bf16.msra.mxu0 %v340
  %479 = vmatprep.subr.bf16.mxu0 %v337
  %480 = vmatpush1.bf16.msra.mxu0 %v336
  %481 = vmatprep.subr.bf16.mxu0 %v333
  %482 = vmatpush1.bf16.msra.mxu0 %v332
  %483 = vmatprep.subr.bf16.mxu0 0
  %484 = vmatpush2.bf16.msra.mxu0 0
  %485 = vmatprep.subr.bf16.mxu0 0
  %486 = vmatpush2.bf16.msra.mxu0 0
  %487 = vmatprep.subr.bf16.mxu0 0
  %488 = vmatpush2.bf16.msra.mxu0 0
  %489 = vmatprep.subr.bf16.mxu0 0
  %490 = vmatpush2.bf16.msra.mxu0 0
  %491 = vmatprep.subr.bf16.mxu0 0
  %492 = vmatpush2.bf16.msra.mxu0 0
  %493 = vmatprep.subr.bf16.mxu0 0
  %494 = vmatpush2.bf16.msra.mxu0 0
  %495 = vmatprep.subr.bf16.mxu0 0
  %496 = vmatpush2.bf16.msra.mxu0 0
  %497 = vmatprep.subr.bf16.mxu0 0
  %498 = vmatpush2.bf16.msra.mxu0 0
  %499 = vmatprep.mubr.bf16.mxu0 0
  %500 = vmatmul.mubr.bf16.gmra.mxu0 %v226
  %v501 = vpop.f32.mrf.mxu0
  %v502 = vadd.f32 %v201, %v501
  %v503 = vpop.f32.mrf.mxu0
  %v504 = vadd.f32 %v205, %v503
  %v505 = vpop.f32.mrf.mxu0
  %v506 = vadd.f32 %v201, %v505
  %v507 = vpop.f32.mrf.mxu0
  %v508 = vadd.f32 %v205, %v507
  %509 = vmatprep.mubr.bf16.mxu0 0
  %510 = vmatmul.mubr.bf16.gmra.mxu0 %v227
  %v511 = vpop.f32.mrf.mxu0
  %v512 = vadd.f32 %v201, %v511
  %v513 = vpop.f32.mrf.mxu0
  %v514 = vadd.f32 %v205, %v513
  %v515 = vpop.f32.mrf.mxu0
  %v516 = vadd.f32 %v201, %v515
  %v517 = vpop.f32.mrf.mxu0
  %v518 = vadd.f32 %v205, %v517
  %519 = vmatprep.mubr.bf16.mxu0 0
  %520 = vmatmul.mubr.bf16.gmra.mxu0 %v228
  %v521 = vpop.f32.mrf.mxu0
  %v522 = vadd.f32 %v201, %v521
  %v523 = vpop.f32.mrf.mxu0
  %v524 = vadd.f32 %v205, %v523
  %v525 = vpop.f32.mrf.mxu0
  %v526 = vadd.f32 %v201, %v525
  %v527 = vpop.f32.mrf.mxu0
  %v528 = vadd.f32 %v205, %v527
  %529 = vmatprep.mubr.bf16.mxu0 0
  %530 = vmatmul.mubr.bf16.gmra.mxu0 %v229
  %v531 = vpop.f32.mrf.mxu0
  %v532 = vadd.f32 %v201, %v531
  %v533 = vpop.f32.mrf.mxu0
  %v534 = vadd.f32 %v205, %v533
  %v535 = vpop.f32.mrf.mxu0
  %v536 = vadd.f32 %v201, %v535
  %v537 = vpop.f32.mrf.mxu0
  %v538 = vadd.f32 %v205, %v537
  %539 = vdwg.mxu0
  %540 = vst [vmem:[#allocation2] sm:$0xff] %v429
  %541 = vst [vmem:[#allocation2 + $0x8] sm:$0xff] %v431
  %542 = vst [vmem:[#allocation2 + $0x10] sm:$0xff] %v502
  %543 = vst [vmem:[#allocation2 + $0x18] sm:$0xff] %v504
  %544 = vst [vmem:[#allocation2 + $0x20] sm:$0xff] %v433
  %545 = vst [vmem:[#allocation2 + $0x28] sm:$0xff] %v435
  %546 = vst [vmem:[#allocation2 + $0x30] sm:$0xff] %v506
  %547 = vst [vmem:[#allocation2 + $0x38] sm:$0xff] %v508
  %548 = vst [vmem:[#allocation2 + $0x40] sm:$0xff] %v439
  %549 = vst [vmem:[#allocation2 + $0x48] sm:$0xff] %v441
  %550 = vst [vmem:[#allocation2 + $0x50] sm:$0xff] %v512
  %551 = vst [vmem:[#allocation2 + $0x58] sm:$0xff] %v514
  %552 = vst [vmem:[#allocation2 + $0x60] sm:$0xff] %v443
  %553 = vst [vmem:[#allocation2 + $0x68] sm:$0xff] %v445
  %554 = vst [vmem:[#allocation2 + $0x70] sm:$0xff] %v516
  %555 = vst [vmem:[#allocation2 + $0x78] sm:$0xff] %v518
  %556 = vst [vmem:[#allocation2 + $0x80] sm:$0xff] %v449
  %557 = vst [vmem:[#allocation2 + $0x88] sm:$0xff] %v451
  %558 = vst [vmem:[#allocation2 + $0x90] sm:$0xff] %v522
  %559 = vst [vmem:[#allocation2 + $0x98] sm:$0xff] %v524
  %560 = vst [vmem:[#allocation2 + $0xa0] sm:$0xff] %v453
  %561 = vst [vmem:[#allocation2 + $0xa8] sm:$0xff] %v455
  %562 = vst [vmem:[#allocation2 + $0xb0] sm:$0xff] %v526
  %563 = vst [vmem:[#allocation2 + $0xb8] sm:$0xff] %v528
  %564 = vst [vmem:[#allocation2 + $0xc0] sm:$0xff] %v459
  %565 = vst [vmem:[#allocation2 + $0xc8] sm:$0xff] %v461
  %566 = vst [vmem:[#allocation2 + $0xd0] sm:$0xff] %v532
  %567 = vst [vmem:[#allocation2 + $0xd8] sm:$0xff] %v534
  %568 = vst [vmem:[#allocation2 + $0xe0] sm:$0xff] %v463
  %569 = vst [vmem:[#allocation2 + $0xe8] sm:$0xff] %v465
  %570 = vst [vmem:[#allocation2 + $0xf0] sm:$0xff] %v536
  %571 = vst [vmem:[#allocation2 + $0xf8] sm:$0xff] %v538
  %v572 = vld [vmem:[#allocation2] sm:$0xff]
  %v573 = vld [vmem:[#allocation2 + $0x8] sm:$0xff]
  %v574 = vld [vmem:[#allocation2 + $0x10] sm:$0xff]
  %v575 = vld [vmem:[#allocation2 + $0x18] sm:$0xff]
  %v608 = vunpack.c.l.b16 %v30
  %v609 = vunpack.c.h.b16 %v30
  %v610 = vunpack.c.l.b16 %v31
  %v611 = vunpack.c.h.b16 %v31
  %v612 = vunpack.c.l.b16 %v32
  %v613 = vunpack.c.h.b16 %v32
  %v614 = vunpack.c.l.b16 %v33
  %v615 = vunpack.c.h.b16 %v33
  %v616 = vunpack.c.l.b16 %v34
  %v617 = vunpack.c.h.b16 %v34
  %v618 = vunpack.c.l.b16 %v35
  %v619 = vunpack.c.h.b16 %v35
  %v620 = vunpack.c.l.b16 %v36
  %v621 = vunpack.c.h.b16 %v36
  %v622 = vunpack.c.l.b16 %v37
  %v623 = vunpack.c.h.b16 %v37
  %v624 = vunpack.c.l.b16 %v38
  %v625 = vunpack.c.h.b16 %v38
  %v626 = vunpack.c.l.b16 %v39
  %v627 = vunpack.c.h.b16 %v39
  %v628 = vunpack.c.l.b16 %v40
  %v629 = vunpack.c.h.b16 %v40
  %v630 = vunpack.c.l.b16 %v41
  %v631 = vunpack.c.h.b16 %v41
  %v632 = vunpack.c.l.b16 %v42
  %v633 = vunpack.c.h.b16 %v42
  %v634 = vunpack.c.l.b16 %v43
  %v635 = vunpack.c.h.b16 %v43
  %v636 = vunpack.c.l.b16 %v44
  %v637 = vunpack.c.h.b16 %v44
  %v638 = vunpack.c.l.b16 %v45
  %v639 = vunpack.c.h.b16 %v45
  %v640 = vunpack.c.l.b16 %v46
  %v641 = vunpack.c.h.b16 %v46
  %v642 = vunpack.c.l.b16 %v47
  %v643 = vunpack.c.h.b16 %v47
  %v644 = vunpack.c.l.b16 %v48
  %v645 = vunpack.c.h.b16 %v48
  %v646 = vunpack.c.l.b16 %v49
  %v647 = vunpack.c.h.b16 %v49
  %v648 = vunpack.c.l.b16 %v50
  %v649 = vunpack.c.h.b16 %v50
  %v650 = vunpack.c.l.b16 %v51
  %v651 = vunpack.c.h.b16 %v51
  %v652 = vunpack.c.l.b16 %v52
  %v653 = vunpack.c.h.b16 %v52
  %v654 = vunpack.c.l.b16 %v53
  %v655 = vunpack.c.h.b16 %v53
  %v656 = vunpack.c.l.b16 %v54
  %v657 = vunpack.c.h.b16 %v54
  %v658 = vunpack.c.l.b16 %v55
  %v659 = vunpack.c.h.b16 %v55
  %v660 = vunpack.c.l.b16 %v56
  %v661 = vunpack.c.h.b16 %v56
  %v662 = vunpack.c.l.b16 %v57
  %v663 = vunpack.c.h.b16 %v57
  %v664 = vunpack.c.l.b16 %v58
  %v665 = vunpack.c.h.b16 %v58
  %v666 = vunpack.c.l.b16 %v59
  %v667 = vunpack.c.h.b16 %v59
  %v668 = vunpack.c.l.b16 %v60
  %v669 = vunpack.c.h.b16 %v60
  %v670 = vunpack.c.l.b16 %v61
  %v671 = vunpack.c.h.b16 %v61
  %v672 = vpack.c.b16 %v612, %v608
  %v673 = vpack.c.b16 %v613, %v609
  %v674 = vpack.c.b16 %v614, %v610
  %v675 = vpack.c.b16 %v615, %v611
  %v676 = vpack.c.b16 %v620, %v616
  %v677 = vpack.c.b16 %v621, %v617
  %v678 = vpack.c.b16 %v622, %v618
  %v679 = vpack.c.b16 %v623, %v619
  %v680 = vpack.c.b16 %v628, %v624
  %v681 = vpack.c.b16 %v629, %v625
  %v682 = vpack.c.b16 %v630, %v626
  %v683 = vpack.c.b16 %v631, %v627
  %v684 = vpack.c.b16 %v636, %v632
  %v685 = vpack.c.b16 %v637, %v633
  %v686 = vpack.c.b16 %v638, %v634
  %v687 = vpack.c.b16 %v639, %v635
  %v688 = vpack.c.b16 %v644, %v640
  %v689 = vpack.c.b16 %v645, %v641
  %v690 = vpack.c.b16 %v646, %v642
  %v691 = vpack.c.b16 %v647, %v643
  %v692 = vpack.c.b16 %v652, %v648
  %v693 = vpack.c.b16 %v653, %v649
  %v694 = vpack.c.b16 %v654, %v650
  %v695 = vpack.c.b16 %v655, %v651
  %v696 = vpack.c.b16 %v660, %v656
  %v697 = vpack.c.b16 %v661, %v657
  %v698 = vpack.c.b16 %v662, %v658
  %v699 = vpack.c.b16 %v663, %v659
  %v700 = vpack.c.b16 %v668, %v664
  %v701 = vpack.c.b16 %v669, %v665
  %v702 = vpack.c.b16 %v670, %v666
  %v703 = vpack.c.b16 %v671, %v667
  %736 = vmatprep.subr.bf16.mxu0 %v701
  %737 = vmatpush1.bf16.msra.mxu0 %v700
  %738 = vmatprep.subr.bf16.mxu0 %v697
  %739 = vmatpush1.bf16.msra.mxu0 %v696
  %740 = vmatprep.subr.bf16.mxu0 %v693
  %741 = vmatpush1.bf16.msra.mxu0 %v692
  %742 = vmatprep.subr.bf16.mxu0 %v689
  %743 = vmatpush1.bf16.msra.mxu0 %v688
  %744 = vmatprep.subr.bf16.mxu0 %v685
  %745 = vmatpush1.bf16.msra.mxu0 %v684
  %746 = vmatprep.subr.bf16.mxu0 %v681
  %747 = vmatpush1.bf16.msra.mxu0 %v680
  %748 = vmatprep.subr.bf16.mxu0 %v677
  %749 = vmatpush1.bf16.msra.mxu0 %v676
  %750 = vmatprep.subr.bf16.mxu0 %v673
  %751 = vmatpush1.bf16.msra.mxu0 %v672
  %752 = vmatprep.subr.bf16.mxu0 0
  %753 = vmatpush2.bf16.msra.mxu0 0
  %754 = vmatprep.subr.bf16.mxu0 0
  %755 = vmatpush2.bf16.msra.mxu0 0
  %756 = vmatprep.subr.bf16.mxu0 0
  %757 = vmatpush2.bf16.msra.mxu0 0
  %758 = vmatprep.subr.bf16.mxu0 0
  %759 = vmatpush2.bf16.msra.mxu0 0
  %760 = vmatprep.subr.bf16.mxu0 0
  %761 = vmatpush2.bf16.msra.mxu0 0
  %762 = vmatprep.subr.bf16.mxu0 0
  %763 = vmatpush2.bf16.msra.mxu0 0
  %764 = vmatprep.subr.bf16.mxu0 0
  %765 = vmatpush2.bf16.msra.mxu0 0
  %766 = vmatprep.subr.bf16.mxu0 0
  %767 = vmatpush2.bf16.msra.mxu0 0
  %768 = vmatprep.mubr.bf16.mxu0 0
  %769 = vmatmul.mubr.bf16.gmra.mxu0 0
  %v770 = vpop.f32.mrf.mxu0
  %v771 = vadd.f32 0.0, %v770
  %v772 = vpop.f32.mrf.mxu0
  %v773 = vadd.f32 0.0, %v772
  %v774 = vpop.f32.mrf.mxu0
  %v775 = vpop.f32.mrf.mxu0
  %776 = vdwg.mxu0
  %777 = vmatprep.subr.bf16.mxu0 %v703
  %778 = vmatpush1.bf16.msra.mxu0 %v702
  %779 = vmatprep.subr.bf16.mxu0 %v699
  %780 = vmatpush1.bf16.msra.mxu0 %v698
  %781 = vmatprep.subr.bf16.mxu0 %v695
  %782 = vmatpush1.bf16.msra.mxu0 %v694
  %783 = vmatprep.subr.bf16.mxu0 %v691
  %784 = vmatpush1.bf16.msra.mxu0 %v690
  %785 = vmatprep.subr.bf16.mxu0 %v687
  %786 = vmatpush1.bf16.msra.mxu0 %v686
  %787 = vmatprep.subr.bf16.mxu0 %v683
  %788 = vmatpush1.bf16.msra.mxu0 %v682
  %789 = vmatprep.subr.bf16.mxu0 %v679
  %790 = vmatpush1.bf16.msra.mxu0 %v678
  %791 = vmatprep.subr.bf16.mxu0 %v675
  %792 = vmatpush1.bf16.msra.mxu0 %v674
  %793 = vmatprep.subr.bf16.mxu0 0
  %794 = vmatpush2.bf16.msra.mxu0 0
  %795 = vmatprep.subr.bf16.mxu0 0
  %796 = vmatpush2.bf16.msra.mxu0 0
  %797 = vmatprep.subr.bf16.mxu0 0
  %798 = vmatpush2.bf16.msra.mxu0 0
  %799 = vmatprep.subr.bf16.mxu0 0
  %800 = vmatpush2.bf16.msra.mxu0 0
  %801 = vmatprep.subr.bf16.mxu0 0
  %802 = vmatpush2.bf16.msra.mxu0 0
  %803 = vmatprep.subr.bf16.mxu0 0
  %804 = vmatpush2.bf16.msra.mxu0 0
  %805 = vmatprep.subr.bf16.mxu0 0
  %806 = vmatpush2.bf16.msra.mxu0 0
  %807 = vmatprep.subr.bf16.mxu0 0
  %808 = vmatpush2.bf16.msra.mxu0 0
  %809 = vmatprep.mubr.bf16.mxu0 0
  %810 = vmatmul.mubr.bf16.gmra.mxu0 0
  %v811 = vpop.f32.mrf.mxu0
  %v812 = vadd.f32 0.0, %v811
  %v813 = vpop.f32.mrf.mxu0
  %v814 = vadd.f32 0.0, %v813
  %v815 = vpop.f32.mrf.mxu0
  %v816 = vpop.f32.mrf.mxu0
  %817 = vdwg.mxu0
  %v818 = vadd.f32 %v572, %v771
  %v819 = vadd.f32 %v573, %v773
  %v820 = vadd.f32 %v574, %v812
  %v821 = vadd.f32 %v575, %v814
  %v822 = vxor.u32 %v818, 2147483648
  %v823 = vxor.u32 %v819, 2147483648
  %v824 = vxor.u32 %v820, 2147483648
  %v825 = vmul.f32 %v822, 1.442695
  %v826 = vpow.pop %v825
  %v827 = vmul.f32 %v823, 1.442695
  %v828 = vpow.pop %v827
  %v829 = vmul.f32 %v824, 1.442695
  %v830 = vpow.pop %v829
  %v831 = vadd.f32 %v826, 1.0
  %v832 = vadd.f32 %v828, 1.0
  %v833 = vadd.f32 %v830, 1.0
  %v834 = vrcp.pop %v831
  %v835 = vmul.f32 1.0, %v834
  %v836 = vrcp.pop %v832
  %v837 = vmul.f32 1.0, %v836
  %v838 = vrcp.pop %v833
  %v839 = vmul.f32 1.0, %v838
  %v840 = vtanh.pop %v821
  %v841 = vmul.f32 %v837, 0.0
  %v842 = vmul.f32 %v835, %v840
  %v843 = vadd.f32 %v841, %v842
  %v844 = vtanh.pop %v843
  %v845 = vmul.f32 %v839, %v844
  %v846 = vpack.c.bf16 %v845, %v845
  %v847 = vpack.c.bf16 0.0, 0.0
  %v912 = vunpack.c.l.b16 %v62
  %v913 = vunpack.c.h.b16 %v62
  %v914 = vunpack.c.l.b16 %v63
  %v915 = vunpack.c.h.b16 %v63
  %v916 = vunpack.c.l.b16 %v64
  %v917 = vunpack.c.h.b16 %v64
  %v918 = vunpack.c.l.b16 %v65
  %v919 = vunpack.c.h.b16 %v65
  %v920 = vunpack.c.l.b16 %v66
  %v921 = vunpack.c.h.b16 %v66
  %v922 = vunpack.c.l.b16 %v67
  %v923 = vunpack.c.h.b16 %v67
  %v924 = vunpack.c.l.b16 %v68
  %v925 = vunpack.c.h.b16 %v68
  %v926 = vunpack.c.l.b16 %v69
  %v927 = vunpack.c.h.b16 %v69
  %v928 = vunpack.c.l.b16 %v70
  %v929 = vunpack.c.h.b16 %v70
  %v930 = vunpack.c.l.b16 %v71
  %v931 = vunpack.c.h.b16 %v71
  %v932 = vunpack.c.l.b16 %v72
  %v933 = vunpack.c.h.b16 %v72
  %v934 = vunpack.c.l.b16 %v73
  %v935 = vunpack.c.h.b16 %v73
  %v936 = vunpack.c.l.b16 %v74
  %v937 = vunpack.c.h.b16 %v74
  %v938 = vunpack.c.l.b16 %v75
  %v939 = vunpack.c.h.b16 %v75
  %v940 = vunpack.c.l.b16 %v76
  %v941 = vunpack.c.h.b16 %v76
  %v942 = vunpack.c.l.b16 %v77
  %v943 = vunpack.c.h.b16 %v77
  %v944 = vunpack.c.l.b16 %v78
  %v945 = vunpack.c.h.b16 %v78
  %v946 = vunpack.c.l.b16 %v79
  %v947 = vunpack.c.h.b16 %v79
  %v948 = vunpack.c.l.b16 %v80
  %v949 = vunpack.c.h.b16 %v80
  %v950 = vunpack.c.l.b16 %v81
  %v951 = vunpack.c.h.b16 %v81
  %v952 = vunpack.c.l.b16 %v82
  %v953 = vunpack.c.h.b16 %v82
  %v954 = vunpack.c.l.b16 %v83
  %v955 = vunpack.c.h.b16 %v83
  %v956 = vunpack.c.l.b16 %v84
  %v957 = vunpack.c.h.b16 %v84
  %v958 = vunpack.c.l.b16 %v85
  %v959 = vunpack.c.h.b16 %v85
  %v960 = vunpack.c.l.b16 %v86
  %v961 = vunpack.c.h.b16 %v86
  %v962 = vunpack.c.l.b16 %v87
  %v963 = vunpack.c.h.b16 %v87
  %v964 = vunpack.c.l.b16 %v88
  %v965 = vunpack.c.h.b16 %v88
  %v966 = vunpack.c.l.b16 %v89
  %v967 = vunpack.c.h.b16 %v89
  %v968 = vunpack.c.l.b16 %v90
  %v969 = vunpack.c.h.b16 %v90
  %v970 = vunpack.c.l.b16 %v91
  %v971 = vunpack.c.h.b16 %v91
  %v972 = vunpack.c.l.b16 %v92
  %v973 = vunpack.c.h.b16 %v92
  %v974 = vunpack.c.l.b16 %v93
  %v975 = vunpack.c.h.b16 %v93
  %v976 = vunpack.c.l.b16 %v94
  %v977 = vunpack.c.h.b16 %v94
  %v978 = vunpack.c.l.b16 %v95
  %v979 = vunpack.c.h.b16 %v95
  %v980 = vunpack.c.l.b16 %v96
  %v981 = vunpack.c.h.b16 %v96
  %v982 = vunpack.c.l.b16 %v97
  %v983 = vunpack.c.h.b16 %v97
  %v984 = vunpack.c.l.b16 %v98
  %v985 = vunpack.c.h.b16 %v98
  %v986 = vunpack.c.l.b16 %v99
  %v987 = vunpack.c.h.b16 %v99
  %v988 = vunpack.c.l.b16 %v100
  %v989 = vunpack.c.h.b16 %v100
  %v990 = vunpack.c.l.b16 %v101
  %v991 = vunpack.c.h.b16 %v101
  %v992 = vunpack.c.l.b16 %v102
  %v993 = vunpack.c.h.b16 %v102
  %v994 = vunpack.c.l.b16 %v103
  %v995 = vunpack.c.h.b16 %v103
  %v996 = vunpack.c.l.b16 %v104
  %v997 = vunpack.c.h.b16 %v104
  %v998 = vunpack.c.l.b16 %v105
  %v999 = vunpack.c.h.b16 %v105
  %v1000 = vunpack.c.l.b16 %v106
  %v1001 = vunpack.c.h.b16 %v106
  %v1002 = vunpack.c.l.b16 %v107
  %v1003 = vunpack.c.h.b16 %v107
  %v1004 = vunpack.c.l.b16 %v108
  %v1005 = vunpack.c.h.b16 %v108
  %v1006 = vunpack.c.l.b16 %v109
  %v1007 = vunpack.c.h.b16 %v109
  %v1008 = vunpack.c.l.b16 %v110
  %v1009 = vunpack.c.h.b16 %v110
  %v1010 = vunpack.c.l.b16 %v111
  %v1011 = vunpack.c.h.b16 %v111
  %v1012 = vunpack.c.l.b16 %v112
  %v1013 = vunpack.c.h.b16 %v112
  %v1014 = vunpack.c.l.b16 %v113
  %v1015 = vunpack.c.h.b16 %v113
  %v1016 = vunpack.c.l.b16 %v114
  %v1017 = vunpack.c.h.b16 %v114
  %v1018 = vunpack.c.l.b16 %v115
  %v1019 = vunpack.c.h.b16 %v115
  %v1020 = vunpack.c.l.b16 %v116
  %v1021 = vunpack.c.h.b16 %v116
  %v1022 = vunpack.c.l.b16 %v117
  %v1023 = vunpack.c.h.b16 %v117
  %v1024 = vunpack.c.l.b16 %v118
  %v1025 = vunpack.c.h.b16 %v118
  %v1026 = vunpack.c.l.b16 %v119
  %v1027 = vunpack.c.h.b16 %v119
  %v1028 = vunpack.c.l.b16 %v120
  %v1029 = vunpack.c.h.b16 %v120
  %v1030 = vunpack.c.l.b16 %v121
  %v1031 = vunpack.c.h.b16 %v121
  %v1032 = vunpack.c.l.b16 %v122
  %v1033 = vunpack.c.h.b16 %v122
  %v1034 = vunpack.c.l.b16 %v123
  %v1035 = vunpack.c.h.b16 %v123
  %v1036 = vunpack.c.l.b16 %v124
  %v1037 = vunpack.c.h.b16 %v124
  %v1038 = vunpack.c.l.b16 %v125
  %v1039 = vunpack.c.h.b16 %v125
  %v1040 = vpack.c.b16 %v916, %v912
  %v1041 = vpack.c.b16 %v917, %v913
  %v1042 = vpack.c.b16 %v918, %v914
  %v1043 = vpack.c.b16 %v919, %v915
  %v1044 = vpack.c.b16 %v924, %v920
  %v1045 = vpack.c.b16 %v925, %v921
  %v1046 = vpack.c.b16 %v926, %v922
  %v1047 = vpack.c.b16 %v927, %v923
  %v1048 = vpack.c.b16 %v932, %v928
  %v1049 = vpack.c.b16 %v933, %v929
  %v1050 = vpack.c.b16 %v934, %v930
  %v1051 = vpack.c.b16 %v935, %v931
  %v1052 = vpack.c.b16 %v940, %v936
  %v1053 = vpack.c.b16 %v941, %v937
  %v1054 = vpack.c.b16 %v942, %v938
  %v1055 = vpack.c.b16 %v943, %v939
  %v1056 = vpack.c.b16 %v948, %v944
  %v1057 = vpack.c.b16 %v949, %v945
  %v1058 = vpack.c.b16 %v950, %v946
  %v1059 = vpack.c.b16 %v951, %v947
  %v1060 = vpack.c.b16 %v956, %v952
  %v1061 = vpack.c.b16 %v957, %v953
  %v1062 = vpack.c.b16 %v958, %v954
  %v1063 = vpack.c.b16 %v959, %v955
  %v1064 = vpack.c.b16 %v964, %v960
  %v1065 = vpack.c.b16 %v965, %v961
  %v1066 = vpack.c.b16 %v966, %v962
  %v1067 = vpack.c.b16 %v967, %v963
  %v1068 = vpack.c.b16 %v972, %v968
  %v1069 = vpack.c.b16 %v973, %v969
  %v1070 = vpack.c.b16 %v974, %v970
  %v1071 = vpack.c.b16 %v975, %v971
  %v1072 = vpack.c.b16 %v980, %v976
  %v1073 = vpack.c.b16 %v981, %v977
  %v1074 = vpack.c.b16 %v982, %v978
  %v1075 = vpack.c.b16 %v983, %v979
  %v1076 = vpack.c.b16 %v988, %v984
  %v1077 = vpack.c.b16 %v989, %v985
  %v1078 = vpack.c.b16 %v990, %v986
  %v1079 = vpack.c.b16 %v991, %v987
  %v1080 = vpack.c.b16 %v996, %v992
  %v1081 = vpack.c.b16 %v997, %v993
  %v1082 = vpack.c.b16 %v998, %v994
  %v1083 = vpack.c.b16 %v999, %v995
  %v1084 = vpack.c.b16 %v1004, %v1000
  %v1085 = vpack.c.b16 %v1005, %v1001
  %v1086 = vpack.c.b16 %v1006, %v1002
  %v1087 = vpack.c.b16 %v1007, %v1003
  %v1088 = vpack.c.b16 %v1012, %v1008
  %v1089 = vpack.c.b16 %v1013, %v1009
  %v1090 = vpack.c.b16 %v1014, %v1010
  %v1091 = vpack.c.b16 %v1015, %v1011
  %v1092 = vpack.c.b16 %v1020, %v1016
  %v1093 = vpack.c.b16 %v1021, %v1017
  %v1094 = vpack.c.b16 %v1022, %v1018
  %v1095 = vpack.c.b16 %v1023, %v1019
  %v1096 = vpack.c.b16 %v1028, %v1024
  %v1097 = vpack.c.b16 %v1029, %v1025
  %v1098 = vpack.c.b16 %v1030, %v1026
  %v1099 = vpack.c.b16 %v1031, %v1027
  %v1100 = vpack.c.b16 %v1036, %v1032
  %v1101 = vpack.c.b16 %v1037, %v1033
  %v1102 = vpack.c.b16 %v1038, %v1034
  %v1103 = vpack.c.b16 %v1039, %v1035
  %1168 = vmatprep.subr.bf16.mxu0 %v1069
  %1169 = vmatpush1.bf16.msra.mxu0 %v1068
  %1170 = vmatprep.subr.bf16.mxu0 %v1065
  %1171 = vmatpush1.bf16.msra.mxu0 %v1064
  %1172 = vmatprep.subr.bf16.mxu0 %v1061
  %1173 = vmatpush1.bf16.msra.mxu0 %v1060
  %1174 = vmatprep.subr.bf16.mxu0 %v1057
  %1175 = vmatpush1.bf16.msra.mxu0 %v1056
  %1176 = vmatprep.subr.bf16.mxu0 %v1053
  %1177 = vmatpush1.bf16.msra.mxu0 %v1052
  %1178 = vmatprep.subr.bf16.mxu0 %v1049
  %1179 = vmatpush1.bf16.msra.mxu0 %v1048
  %1180 = vmatprep.subr.bf16.mxu0 %v1045
  %1181 = vmatpush1.bf16.msra.mxu0 %v1044
  %1182 = vmatprep.subr.bf16.mxu0 %v1041
  %1183 = vmatpush1.bf16.msra.mxu0 %v1040
  %1184 = vmatprep.subr.bf16.mxu0 %v1101
  %1185 = vmatpush2.bf16.msra.mxu0 %v1100
  %1186 = vmatprep.subr.bf16.mxu0 %v1097
  %1187 = vmatpush2.bf16.msra.mxu0 %v1096
  %1188 = vmatprep.subr.bf16.mxu0 %v1093
  %1189 = vmatpush2.bf16.msra.mxu0 %v1092
  %1190 = vmatprep.subr.bf16.mxu0 %v1089
  %1191 = vmatpush2.bf16.msra.mxu0 %v1088
  %1192 = vmatprep.subr.bf16.mxu0 %v1085
  %1193 = vmatpush2.bf16.msra.mxu0 %v1084
  %1194 = vmatprep.subr.bf16.mxu0 %v1081
  %1195 = vmatpush2.bf16.msra.mxu0 %v1080
  %1196 = vmatprep.subr.bf16.mxu0 %v1077
  %1197 = vmatpush2.bf16.msra.mxu0 %v1076
  %1198 = vmatprep.subr.bf16.mxu0 %v1073
  %1199 = vmatpush2.bf16.msra.mxu0 %v1072
  %1200 = vmatprep.mubr.bf16.mxu0 %v847
  %1201 = vmatmul.mubr.bf16.gmra.mxu0 %v846
  %v1202 = vpop.f32.mrf.mxu0
  %v1203 = vadd.f32 %v131, %v1202
  %v1204 = vpop.f32.mrf.mxu0
  %v1205 = vadd.f32 %v135, %v1204
  %v1206 = vpop.f32.mrf.mxu0
  %v1207 = vpop.f32.mrf.mxu0
  %1208 = vdwg.mxu0
  %1209 = vmatprep.subr.bf16.mxu0 %v1071
  %1210 = vmatpush1.bf16.msra.mxu0 %v1070
  %1211 = vmatprep.subr.bf16.mxu0 %v1067
  %1212 = vmatpush1.bf16.msra.mxu0 %v1066
  %1213 = vmatprep.subr.bf16.mxu0 %v1063
  %1214 = vmatpush1.bf16.msra.mxu0 %v1062
  %1215 = vmatprep.subr.bf16.mxu0 %v1059
  %1216 = vmatpush1.bf16.msra.mxu0 %v1058
  %1217 = vmatprep.subr.bf16.mxu0 %v1055
  %1218 = vmatpush1.bf16.msra.mxu0 %v1054
  %1219 = vmatprep.subr.bf16.mxu0 %v1051
  %1220 = vmatpush1.bf16.msra.mxu0 %v1050
  %1221 = vmatprep.subr.bf16.mxu0 %v1047
  %1222 = vmatpush1.bf16.msra.mxu0 %v1046
  %1223 = vmatprep.subr.bf16.mxu0 %v1043
  %1224 = vmatpush1.bf16.msra.mxu0 %v1042
  %1225 = vmatprep.subr.bf16.mxu0 %v1103
  %1226 = vmatpush2.bf16.msra.mxu0 %v1102
  %1227 = vmatprep.subr.bf16.mxu0 %v1099
  %1228 = vmatpush2.bf16.msra.mxu0 %v1098
  %1229 = vmatprep.subr.bf16.mxu0 %v1095
  %1230 = vmatpush2.bf16.msra.mxu0 %v1094
  %1231 = vmatprep.subr.bf16.mxu0 %v1091
  %1232 = vmatpush2.bf16.msra.mxu0 %v1090
  %1233 = vmatprep.subr.bf16.mxu0 %v1087
  %1234 = vmatpush2.bf16.msra.mxu0 %v1086
  %1235 = vmatprep.subr.bf16.mxu0 %v1083
  %1236 = vmatpush2.bf16.msra.mxu0 %v1082
  %1237 = vmatprep.subr.bf16.mxu0 %v1079
  %1238 = vmatpush2.bf16.msra.mxu0 %v1078
  %1239 = vmatprep.subr.bf16.mxu0 %v1075
  %1240 = vmatpush2.bf16.msra.mxu0 %v1074
  %1241 = vmatprep.mubr.bf16.mxu0 %v847
  %1242 = vmatmul.mubr.bf16.gmra.mxu0 %v846
  %v1243 = vpop.f32.mrf.mxu0
  %v1244 = vadd.f32 %v139, %v1243
  %v1245 = vpop.f32.mrf.mxu0
  %v1246 = vadd.f32 %v143, %v1245
  %v1247 = vpop.f32.mrf.mxu0
  %v1248 = vpop.f32.mrf.mxu0
  %1249 = vdwg.mxu0
  %v1250 = vxor.u32 %v1203, 2147483648
  %v1251 = vxor.u32 %v1205, 2147483648
  %v1252 = vxor.u32 %v1244, 2147483648
  %v1253 = vmul.f32 %v1250, 1.442695
  %v1254 = vpow.pop %v1253
  %v1255 = vmul.f32 %v1251, 1.442695
  %v1256 = vpow.pop %v1255
  %v1257 = vmul.f32 %v1252, 1.442695
  %v1258 = vpow.pop %v1257
  %v1259 = vadd.f32 %v1254, 1.0
  %v1260 = vadd.f32 %v1256, 1.0
  %v1261 = vadd.f32 %v1258, 1.0
  %v1262 = vrcp.pop %v1259
  %v1263 = vmul.f32 1.0, %v1262
  %v1264 = vrcp.pop %v1260
  %v1265 = vmul.f32 1.0, %v1264
  %v1266 = vrcp.pop %v1261
  %v1267 = vmul.f32 1.0, %v1266
  %v1268 = vtanh.pop %v1246
  %v1269 = vmul.f32 %v1265, 0.0
  %v1270 = vmul.f32 %v1263, %v1268
  %v1271 = vadd.f32 %v1269, %v1270
  %v1272 = vtanh.pop %v1271
  %v1273 = vmul.f32 %v1267, %v1272
  %v1274 = vld [vmem:[#allocation2 + $0x20] sm:$0xff]
  %v1275 = vld [vmem:[#allocation2 + $0x28] sm:$0xff]
  %v1276 = vld [vmem:[#allocation2 + $0x30] sm:$0xff]
  %v1277 = vld [vmem:[#allocation2 + $0x38] sm:$0xff]
  %1278 = vmatprep.subr.bf16.mxu0 %v701
  %1279 = vmatpush1.bf16.msra.mxu0 %v700
  %1280 = vmatprep.subr.bf16.mxu0 %v697
  %1281 = vmatpush1.bf16.msra.mxu0 %v696
  %1282 = vmatprep.subr.bf16.mxu0 %v693
  %1283 = vmatpush1.bf16.msra.mxu0 %v692
  %1284 = vmatprep.subr.bf16.mxu0 %v689
  %1285 = vmatpush1.bf16.msra.mxu0 %v688
  %1286 = vmatprep.subr.bf16.mxu0 %v685
  %1287 = vmatpush1.bf16.msra.mxu0 %v684
  %1288 = vmatprep.subr.bf16.mxu0 %v681
  %1289 = vmatpush1.bf16.msra.mxu0 %v680
  %1290 = vmatprep.subr.bf16.mxu0 %v677
  %1291 = vmatpush1.bf16.msra.mxu0 %v676
  %1292 = vmatprep.subr.bf16.mxu0 %v673
  %1293 = vmatpush1.bf16.msra.mxu0 %v672
  %1294 = vmatprep.subr.bf16.mxu0 0
  %1295 = vmatpush2.bf16.msra.mxu0 0
  %1296 = vmatprep.subr.bf16.mxu0 0
  %1297 = vmatpush2.bf16.msra.mxu0 0
  %1298 = vmatprep.subr.bf16.mxu0 0
  %1299 = vmatpush2.bf16.msra.mxu0 0
  %1300 = vmatprep.subr.bf16.mxu0 0
  %1301 = vmatpush2.bf16.msra.mxu0 0
  %1302 = vmatprep.subr.bf16.mxu0 0
  %1303 = vmatpush2.bf16.msra.mxu0 0
  %1304 = vmatprep.subr.bf16.mxu0 0
  %1305 = vmatpush2.bf16.msra.mxu0 0
  %1306 = vmatprep.subr.bf16.mxu0 0
  %1307 = vmatpush2.bf16.msra.mxu0 0
  %1308 = vmatprep.subr.bf16.mxu0 0
  %1309 = vmatpush2.bf16.msra.mxu0 0
  %1310 = vmatprep.mubr.bf16.mxu0 0
  %1311 = vmatmul.mubr.bf16.gmra.mxu0 %v846
  %v1312 = vpop.f32.mrf.mxu0
  %v1313 = vadd.f32 0.0, %v1312
  %v1314 = vpop.f32.mrf.mxu0
  %v1315 = vadd.f32 0.0, %v1314
  %v1316 = vpop.f32.mrf.mxu0
  %v1317 = vpop.f32.mrf.mxu0
  %1318 = vdwg.mxu0
  %1319 = vmatprep.subr.bf16.mxu0 %v703
  %1320 = vmatpush1.bf16.msra.mxu0 %v702
  %1321 = vmatprep.subr.bf16.mxu0 %v699
  %1322 = vmatpush1.bf16.msra.mxu0 %v698
  %1323 = vmatprep.subr.bf16.mxu0 %v695
  %1324 = vmatpush1.bf16.msra.mxu0 %v694
  %1325 = vmatprep.subr.bf16.mxu0 %v691
  %1326 = vmatpush1.bf16.msra.mxu0 %v690
  %1327 = vmatprep.subr.bf16.mxu0 %v687
  %1328 = vmatpush1.bf16.msra.mxu0 %v686
  %1329 = vmatprep.subr.bf16.mxu0 %v683
  %1330 = vmatpush1.bf16.msra.mxu0 %v682
  %1331 = vmatprep.subr.bf16.mxu0 %v679
  %1332 = vmatpush1.bf16.msra.mxu0 %v678
  %1333 = vmatprep.subr.bf16.mxu0 %v675
  %1334 = vmatpush1.bf16.msra.mxu0 %v674
  %1335 = vmatprep.subr.bf16.mxu0 0
  %1336 = vmatpush2.bf16.msra.mxu0 0
  %1337 = vmatprep.subr.bf16.mxu0 0
  %1338 = vmatpush2.bf16.msra.mxu0 0
  %1339 = vmatprep.subr.bf16.mxu0 0
  %1340 = vmatpush2.bf16.msra.mxu0 0
  %1341 = vmatprep.subr.bf16.mxu0 0
  %1342 = vmatpush2.bf16.msra.mxu0 0
  %1343 = vmatprep.subr.bf16.mxu0 0
  %1344 = vmatpush2.bf16.msra.mxu0 0
  %1345 = vmatprep.subr.bf16.mxu0 0
  %1346 = vmatpush2.bf16.msra.mxu0 0
  %1347 = vmatprep.subr.bf16.mxu0 0
  %1348 = vmatpush2.bf16.msra.mxu0 0
  %1349 = vmatprep.subr.bf16.mxu0 0
  %1350 = vmatpush2.bf16.msra.mxu0 0
  %1351 = vmatprep.mubr.bf16.mxu0 0
  %1352 = vmatmul.mubr.bf16.gmra.mxu0 %v846
  %v1353 = vpop.f32.mrf.mxu0
  %v1354 = vadd.f32 0.0, %v1353
  %v1355 = vpop.f32.mrf.mxu0
  %v1356 = vadd.f32 0.0, %v1355
  %v1357 = vpop.f32.mrf.mxu0
  %v1358 = vpop.f32.mrf.mxu0
  %1359 = vdwg.mxu0
  %v1360 = vadd.f32 %v1274, %v1313
  %v1361 = vadd.f32 %v1275, %v1315
  %v1362 = vadd.f32 %v1276, %v1354
  %v1363 = vadd.f32 %v1277, %v1356
  %v1364 = vxor.u32 %v1360, 2147483648
  %v1365 = vxor.u32 %v1361, 2147483648
  %v1366 = vxor.u32 %v1362, 2147483648
  %v1367 = vmul.f32 %v1364, 1.442695
  %v1368 = vpow.pop %v1367
  %v1369 = vmul.f32 %v1365, 1.442695
  %v1370 = vpow.pop %v1369
  %v1371 = vmul.f32 %v1366, 1.442695
  %v1372 = vpow.pop %v1371
  %v1373 = vadd.f32 %v1368, 1.0
  %v1374 = vadd.f32 %v1370, 1.0
  %v1375 = vadd.f32 %v1372, 1.0
  %v1376 = vrcp.pop %v1373
  %v1377 = vmul.f32 1.0, %v1376
  %v1378 = vrcp.pop %v1374
  %v1379 = vmul.f32 1.0, %v1378
  %v1380 = vrcp.pop %v1375
  %v1381 = vmul.f32 1.0, %v1380
  %v1382 = vtanh.pop %v1363
  %v1383 = vmul.f32 %v1379, %v843
  %v1384 = vmul.f32 %v1377, %v1382
  %v1385 = vadd.f32 %v1383, %v1384
  %v1386 = vtanh.pop %v1385
  %v1387 = vmul.f32 %v1381, %v1386
  %v1388 = vpack.c.bf16 %v1387, %v1387
  %v1389 = vpack.c.bf16 %v1273, %v1273
  %1390 = vmatprep.subr.bf16.mxu0 %v1069
  %1391 = vmatpush1.bf16.msra.mxu0 %v1068
  %1392 = vmatprep.subr.bf16.mxu0 %v1065
  %1393 = vmatpush1.bf16.msra.mxu0 %v1064
  %1394 = vmatprep.subr.bf16.mxu0 %v1061
  %1395 = vmatpush1.bf16.msra.mxu0 %v1060
  %1396 = vmatprep.subr.bf16.mxu0 %v1057
  %1397 = vmatpush1.bf16.msra.mxu0 %v1056
  %1398 = vmatprep.subr.bf16.mxu0 %v1053
  %1399 = vmatpush1.bf16.msra.mxu0 %v1052
  %1400 = vmatprep.subr.bf16.mxu0 %v1049
  %1401 = vmatpush1.bf16.msra.mxu0 %v1048
  %1402 = vmatprep.subr.bf16.mxu0 %v1045
  %1403 = vmatpush1.bf16.msra.mxu0 %v1044
  %1404 = vmatprep.subr.bf16.mxu0 %v1041
  %1405 = vmatpush1.bf16.msra.mxu0 %v1040
  %1406 = vmatprep.subr.bf16.mxu0 %v1101
  %1407 = vmatpush2.bf16.msra.mxu0 %v1100
  %1408 = vmatprep.subr.bf16.mxu0 %v1097
  %1409 = vmatpush2.bf16.msra.mxu0 %v1096
  %1410 = vmatprep.subr.bf16.mxu0 %v1093
  %1411 = vmatpush2.bf16.msra.mxu0 %v1092
  %1412 = vmatprep.subr.bf16.mxu0 %v1089
  %1413 = vmatpush2.bf16.msra.mxu0 %v1088
  %1414 = vmatprep.subr.bf16.mxu0 %v1085
  %1415 = vmatpush2.bf16.msra.mxu0 %v1084
  %1416 = vmatprep.subr.bf16.mxu0 %v1081
  %1417 = vmatpush2.bf16.msra.mxu0 %v1080
  %1418 = vmatprep.subr.bf16.mxu0 %v1077
  %1419 = vmatpush2.bf16.msra.mxu0 %v1076
  %1420 = vmatprep.subr.bf16.mxu0 %v1073
  %1421 = vmatpush2.bf16.msra.mxu0 %v1072
  %1422 = vmatprep.mubr.bf16.mxu0 %v1389
  %1423 = vmatmul.mubr.bf16.gmra.mxu0 %v1388
  %v1424 = vpop.f32.mrf.mxu0
  %v1425 = vadd.f32 %v131, %v1424
  %v1426 = vpop.f32.mrf.mxu0
  %v1427 = vadd.f32 %v135, %v1426
  %v1428 = vpop.f32.mrf.mxu0
  %v1429 = vpop.f32.mrf.mxu0
  %1430 = vdwg.mxu0
  %1431 = vmatprep.subr.bf16.mxu0 %v1071
  %1432 = vmatpush1.bf16.msra.mxu0 %v1070
  %1433 = vmatprep.subr.bf16.mxu0 %v1067
  %1434 = vmatpush1.bf16.msra.mxu0 %v1066
  %1435 = vmatprep.subr.bf16.mxu0 %v1063
  %1436 = vmatpush1.bf16.msra.mxu0 %v1062
  %1437 = vmatprep.subr.bf16.mxu0 %v1059
  %1438 = vmatpush1.bf16.msra.mxu0 %v1058
  %1439 = vmatprep.subr.bf16.mxu0 %v1055
  %1440 = vmatpush1.bf16.msra.mxu0 %v1054
  %1441 = vmatprep.subr.bf16.mxu0 %v1051
  %1442 = vmatpush1.bf16.msra.mxu0 %v1050
  %1443 = vmatprep.subr.bf16.mxu0 %v1047
  %1444 = vmatpush1.bf16.msra.mxu0 %v1046
  %1445 = vmatprep.subr.bf16.mxu0 %v1043
  %1446 = vmatpush1.bf16.msra.mxu0 %v1042
  %1447 = vmatprep.subr.bf16.mxu0 %v1103
  %1448 = vmatpush2.bf16.msra.mxu0 %v1102
  %1449 = vmatprep.subr.bf16.mxu0 %v1099
  %1450 = vmatpush2.bf16.msra.mxu0 %v1098
  %1451 = vmatprep.subr.bf16.mxu0 %v1095
  %1452 = vmatpush2.bf16.msra.mxu0 %v1094
  %1453 = vmatprep.subr.bf16.mxu0 %v1091
  %1454 = vmatpush2.bf16.msra.mxu0 %v1090
  %1455 = vmatprep.subr.bf16.mxu0 %v1087
  %1456 = vmatpush2.bf16.msra.mxu0 %v1086
  %1457 = vmatprep.subr.bf16.mxu0 %v1083
  %1458 = vmatpush2.bf16.msra.mxu0 %v1082
  %1459 = vmatprep.subr.bf16.mxu0 %v1079
  %1460 = vmatpush2.bf16.msra.mxu0 %v1078
  %1461 = vmatprep.subr.bf16.mxu0 %v1075
  %1462 = vmatpush2.bf16.msra.mxu0 %v1074
  %1463 = vmatprep.mubr.bf16.mxu0 %v1389
  %1464 = vmatmul.mubr.bf16.gmra.mxu0 %v1388
  %v1465 = vpop.f32.mrf.mxu0
  %v1466 = vadd.f32 %v139, %v1465
  %v1467 = vpop.f32.mrf.mxu0
  %v1468 = vadd.f32 %v143, %v1467
  %v1469 = vpop.f32.mrf.mxu0
  %v1470 = vpop.f32.mrf.mxu0
  %1471 = vdwg.mxu0
  %v1472 = vxor.u32 %v1425, 2147483648
  %v1473 = vxor.u32 %v1427, 2147483648
  %v1474 = vxor.u32 %v1466, 2147483648
  %v1475 = vmul.f32 %v1472, 1.442695
  %v1476 = vpow.pop %v1475
  %v1477 = vmul.f32 %v1473, 1.442695
  %v1478 = vpow.pop %v1477
  %v1479 = vmul.f32 %v1474, 1.442695
  %v1480 = vpow.pop %v1479
  %v1481 = vadd.f32 %v1476, 1.0
  %v1482 = vadd.f32 %v1478, 1.0
  %v1483 = vadd.f32 %v1480, 1.0
  %v1484 = vrcp.pop %v1481
  %v1485 = vmul.f32 1.0, %v1484
  %v1486 = vrcp.pop %v1482
  %v1487 = vmul.f32 1.0, %v1486
  %v1488 = vrcp.pop %v1483
  %v1489 = vmul.f32 1.0, %v1488
  %v1490 = vtanh.pop %v1468
  %v1491 = vmul.f32 %v1487, %v1271
  %v1492 = vmul.f32 %v1485, %v1490
  %v1493 = vadd.f32 %v1491, %v1492
  %v1494 = vtanh.pop %v1493
  %v1495 = vmul.f32 %v1489, %v1494
  %v1496 = vld [vmem:[#allocation2 + $0x40] sm:$0xff]
  %v1497 = vld [vmem:[#allocation2 + $0x48] sm:$0xff]
  %v1498 = vld [vmem:[#allocation2 + $0x50] sm:$0xff]
  %v1499 = vld [vmem:[#allocation2 + $0x58] sm:$0xff]
  %1500 = vmatprep.subr.bf16.mxu0 %v701
  %1501 = vmatpush1.bf16.msra.mxu0 %v700
  %1502 = vmatprep.subr.bf16.mxu0 %v697
  %1503 = vmatpush1.bf16.msra.mxu0 %v696
  %1504 = vmatprep.subr.bf16.mxu0 %v693
  %1505 = vmatpush1.bf16.msra.mxu0 %v692
  %1506 = vmatprep.subr.bf16.mxu0 %v689
  %1507 = vmatpush1.bf16.msra.mxu0 %v688
  %1508 = vmatprep.subr.bf16.mxu0 %v685
  %1509 = vmatpush1.bf16.msra.mxu0 %v684
  %1510 = vmatprep.subr.bf16.mxu0 %v681
  %1511 = vmatpush1.bf16.msra.mxu0 %v680
  %1512 = vmatprep.subr.bf16.mxu0 %v677
  %1513 = vmatpush1.bf16.msra.mxu0 %v676
  %1514 = vmatprep.subr.bf16.mxu0 %v673
  %1515 = vmatpush1.bf16.msra.mxu0 %v672
  %1516 = vmatprep.subr.bf16.mxu0 0
  %1517 = vmatpush2.bf16.msra.mxu0 0
  %1518 = vmatprep.subr.bf16.mxu0 0
  %1519 = vmatpush2.bf16.msra.mxu0 0
  %1520 = vmatprep.subr.bf16.mxu0 0
  %1521 = vmatpush2.bf16.msra.mxu0 0
  %1522 = vmatprep.subr.bf16.mxu0 0
  %1523 = vmatpush2.bf16.msra.mxu0 0
  %1524 = vmatprep.subr.bf16.mxu0 0
  %1525 = vmatpush2.bf16.msra.mxu0 0
  %1526 = vmatprep.subr.bf16.mxu0 0
  %1527 = vmatpush2.bf16.msra.mxu0 0
  %1528 = vmatprep.subr.bf16.mxu0 0
  %1529 = vmatpush2.bf16.msra.mxu0 0
  %1530 = vmatprep.subr.bf16.mxu0 0
  %1531 = vmatpush2.bf16.msra.mxu0 0
  %1532 = vmatprep.mubr.bf16.mxu0 0
  %1533 = vmatmul.mubr.bf16.gmra.mxu0 %v1388
  %v1534 = vpop.f32.mrf.mxu0
  %v1535 = vadd.f32 0.0, %v1534
  %v1536 = vpop.f32.mrf.mxu0
  %v1537 = vadd.f32 0.0, %v1536
  %v1538 = vpop.f32.mrf.mxu0
  %v1539 = vpop.f32.mrf.mxu0
  %1540 = vdwg.mxu0
  %1541 = vmatprep.subr.bf16.mxu0 %v703
  %1542 = vmatpush1.bf16.msra.mxu0 %v702
  %1543 = vmatprep.subr.bf16.mxu0 %v699
  %1544 = vmatpush1.bf16.msra.mxu0 %v698
  %1545 = vmatprep.subr.bf16.mxu0 %v695
  %1546 = vmatpush1.bf16.msra.mxu0 %v694
  %1547 = vmatprep.subr.bf16.mxu0 %v691
  %1548 = vmatpush1.bf16.msra.mxu0 %v690
  %1549 = vmatprep.subr.bf16.mxu0 %v687
  %1550 = vmatpush1.bf16.msra.mxu0 %v686
  %1551 = vmatprep.subr.bf16.mxu0 %v683
  %1552 = vmatpush1.bf16.msra.mxu0 %v682
  %1553 = vmatprep.subr.bf16.mxu0 %v679
  %1554 = vmatpush1.bf16.msra.mxu0 %v678
  %1555 = vmatprep.subr.bf16.mxu0 %v675
  %1556 = vmatpush1.bf16.msra.mxu0 %v674
  %1557 = vmatprep.subr.bf16.mxu0 0
  %1558 = vmatpush2.bf16.msra.mxu0 0
  %1559 = vmatprep.subr.bf16.mxu0 0
  %1560 = vmatpush2.bf16.msra.mxu0 0
  %1561 = vmatprep.subr.bf16.mxu0 0
  %1562 = vmatpush2.bf16.msra.mxu0 0
  %1563 = vmatprep.subr.bf16.mxu0 0
  %1564 = vmatpush2.bf16.msra.mxu0 0
  %1565 = vmatprep.subr.bf16.mxu0 0
  %1566 = vmatpush2.bf16.msra.mxu0 0
  %1567 = vmatprep.subr.bf16.mxu0 0
  %1568 = vmatpush2.bf16.msra.mxu0 0
  %1569 = vmatprep.subr.bf16.mxu0 0
  %1570 = vmatpush2.bf16.msra.mxu0 0
  %1571 = vmatprep.subr.bf16.mxu0 0
  %1572 = vmatpush2.bf16.msra.mxu0 0
  %1573 = vmatprep.mubr.bf16.mxu0 0
  %1574 = vmatmul.mubr.bf16.gmra.mxu0 %v1388
  %v1575 = vpop.f32.mrf.mxu0
  %v1576 = vadd.f32 0.0, %v1575
  %v1577 = vpop.f32.mrf.mxu0
  %v1578 = vadd.f32 0.0, %v1577
  %v1579 = vpop.f32.mrf.mxu0
  %v1580 = vpop.f32.mrf.mxu0
  %1581 = vdwg.mxu0
  %v1582 = vadd.f32 %v1496, %v1535
  %v1583 = vadd.f32 %v1497, %v1537
  %v1584 = vadd.f32 %v1498, %v1576
  %v1585 = vadd.f32 %v1499, %v1578
  %v1586 = vxor.u32 %v1582, 2147483648
  %v1587 = vxor.u32 %v1583, 2147483648
  %v1588 = vxor.u32 %v1584, 2147483648
  %v1589 = vmul.f32 %v1586, 1.442695
  %v1590 = vpow.pop %v1589
  %v1591 = vmul.f32 %v1587, 1.442695
  %v1592 = vpow.pop %v1591
  %v1593 = vmul.f32 %v1588, 1.442695
  %v1594 = vpow.pop %v1593
  %v1595 = vadd.f32 %v1590, 1.0
  %v1596 = vadd.f32 %v1592, 1.0
  %v1597 = vadd.f32 %v1594, 1.0
  %v1598 = vrcp.pop %v1595
  %v1599 = vmul.f32 1.0, %v1598
  %v1600 = vrcp.pop %v1596
  %v1601 = vmul.f32 1.0, %v1600
  %v1602 = vrcp.pop %v1597
  %v1603 = vmul.f32 1.0, %v1602
  %v1604 = vtanh.pop %v1585
  %v1605 = vmul.f32 %v1601, %v1385
  %v1606 = vmul.f32 %v1599, %v1604
  %v1607 = vadd.f32 %v1605, %v1606
  %v1608 = vtanh.pop %v1607
  %v1609 = vmul.f32 %v1603, %v1608
  %v1610 = vpack.c.bf16 %v1609, %v1609
  %v1611 = vpack.c.bf16 %v1495, %v1495
  %1612 = vmatprep.subr.bf16.mxu0 %v1069
  %1613 = vmatpush1.bf16.msra.mxu0 %v1068
  %1614 = vmatprep.subr.bf16.mxu0 %v1065
  %1615 = vmatpush1.bf16.msra.mxu0 %v1064
  %1616 = vmatprep.subr.bf16.mxu0 %v1061
  %1617 = vmatpush1.bf16.msra.mxu0 %v1060
  %1618 = vmatprep.subr.bf16.mxu0 %v1057
  %1619 = vmatpush1.bf16.msra.mxu0 %v1056
  %1620 = vmatprep.subr.bf16.mxu0 %v1053
  %1621 = vmatpush1.bf16.msra.mxu0 %v1052
  %1622 = vmatprep.subr.bf16.mxu0 %v1049
  %1623 = vmatpush1.bf16.msra.mxu0 %v1048
  %1624 = vmatprep.subr.bf16.mxu0 %v1045
  %1625 = vmatpush1.bf16.msra.mxu0 %v1044
  %1626 = vmatprep.subr.bf16.mxu0 %v1041
  %1627 = vmatpush1.bf16.msra.mxu0 %v1040
  %1628 = vmatprep.subr.bf16.mxu0 %v1101
  %1629 = vmatpush2.bf16.msra.mxu0 %v1100
  %1630 = vmatprep.subr.bf16.mxu0 %v1097
  %1631 = vmatpush2.bf16.msra.mxu0 %v1096
  %1632 = vmatprep.subr.bf16.mxu0 %v1093
  %1633 = vmatpush2.bf16.msra.mxu0 %v1092
  %1634 = vmatprep.subr.bf16.mxu0 %v1089
  %1635 = vmatpush2.bf16.msra.mxu0 %v1088
  %1636 = vmatprep.subr.bf16.mxu0 %v1085
  %1637 = vmatpush2.bf16.msra.mxu0 %v1084
  %1638 = vmatprep.subr.bf16.mxu0 %v1081
  %1639 = vmatpush2.bf16.msra.mxu0 %v1080
  %1640 = vmatprep.subr.bf16.mxu0 %v1077
  %1641 = vmatpush2.bf16.msra.mxu0 %v1076
  %1642 = vmatprep.subr.bf16.mxu0 %v1073
  %1643 = vmatpush2.bf16.msra.mxu0 %v1072
  %1644 = vmatprep.mubr.bf16.mxu0 %v1611
  %1645 = vmatmul.mubr.bf16.gmra.mxu0 %v1610
  %v1646 = vpop.f32.mrf.mxu0
  %v1647 = vadd.f32 %v131, %v1646
  %v1648 = vpop.f32.mrf.mxu0
  %v1649 = vadd.f32 %v135, %v1648
  %v1650 = vpop.f32.mrf.mxu0
  %v1651 = vpop.f32.mrf.mxu0
  %1652 = vdwg.mxu0
  %1653 = vmatprep.subr.bf16.mxu0 %v1071
  %1654 = vmatpush1.bf16.msra.mxu0 %v1070
  %1655 = vmatprep.subr.bf16.mxu0 %v1067
  %1656 = vmatpush1.bf16.msra.mxu0 %v1066
  %1657 = vmatprep.subr.bf16.mxu0 %v1063
  %1658 = vmatpush1.bf16.msra.mxu0 %v1062
  %1659 = vmatprep.subr.bf16.mxu0 %v1059
  %1660 = vmatpush1.bf16.msra.mxu0 %v1058
  %1661 = vmatprep.subr.bf16.mxu0 %v1055
  %1662 = vmatpush1.bf16.msra.mxu0 %v1054
  %1663 = vmatprep.subr.bf16.mxu0 %v1051
  %1664 = vmatpush1.bf16.msra.mxu0 %v1050
  %1665 = vmatprep.subr.bf16.mxu0 %v1047
  %1666 = vmatpush1.bf16.msra.mxu0 %v1046
  %1667 = vmatprep.subr.bf16.mxu0 %v1043
  %1668 = vmatpush1.bf16.msra.mxu0 %v1042
  %1669 = vmatprep.subr.bf16.mxu0 %v1103
  %1670 = vmatpush2.bf16.msra.mxu0 %v1102
  %1671 = vmatprep.subr.bf16.mxu0 %v1099
  %1672 = vmatpush2.bf16.msra.mxu0 %v1098
  %1673 = vmatprep.subr.bf16.mxu0 %v1095
  %1674 = vmatpush2.bf16.msra.mxu0 %v1094
  %1675 = vmatprep.subr.bf16.mxu0 %v1091
  %1676 = vmatpush2.bf16.msra.mxu0 %v1090
  %1677 = vmatprep.subr.bf16.mxu0 %v1087
  %1678 = vmatpush2.bf16.msra.mxu0 %v1086
  %1679 = vmatprep.subr.bf16.mxu0 %v1083
  %1680 = vmatpush2.bf16.msra.mxu0 %v1082
  %1681 = vmatprep.subr.bf16.mxu0 %v1079
  %1682 = vmatpush2.bf16.msra.mxu0 %v1078
  %1683 = vmatprep.subr.bf16.mxu0 %v1075
  %1684 = vmatpush2.bf16.msra.mxu0 %v1074
  %1685 = vmatprep.mubr.bf16.mxu0 %v1611
  %1686 = vmatmul.mubr.bf16.gmra.mxu0 %v1610
  %v1687 = vpop.f32.mrf.mxu0
  %v1688 = vadd.f32 %v139, %v1687
  %v1689 = vpop.f32.mrf.mxu0
  %v1690 = vadd.f32 %v143, %v1689
  %v1691 = vpop.f32.mrf.mxu0
  %v1692 = vpop.f32.mrf.mxu0
  %1693 = vdwg.mxu0
  %v1694 = vxor.u32 %v1647, 2147483648
  %v1695 = vxor.u32 %v1649, 2147483648
  %v1696 = vxor.u32 %v1688, 2147483648
  %v1697 = vmul.f32 %v1694, 1.442695
  %v1698 = vpow.pop %v1697
  %v1699 = vmul.f32 %v1695, 1.442695
  %v1700 = vpow.pop %v1699
  %v1701 = vmul.f32 %v1696, 1.442695
  %v1702 = vpow.pop %v1701
  %v1703 = vadd.f32 %v1698, 1.0
  %v1704 = vadd.f32 %v1700, 1.0
  %v1705 = vadd.f32 %v1702, 1.0
  %v1706 = vrcp.pop %v1703
  %v1707 = vmul.f32 1.0, %v1706
  %v1708 = vrcp.pop %v1704
  %v1709 = vmul.f32 1.0, %v1708
  %v1710 = vrcp.pop %v1705
  %v1711 = vmul.f32 1.0, %v1710
  %v1712 = vtanh.pop %v1690
  %v1713 = vmul.f32 %v1709, %v1493
  %v1714 = vmul.f32 %v1707, %v1712
  %v1715 = vadd.f32 %v1713, %v1714
  %v1716 = vtanh.pop %v1715
  %v1717 = vmul.f32 %v1711, %v1716
  %v1718 = vld [vmem:[#allocation2 + $0x60] sm:$0xff]
  %v1719 = vld [vmem:[#allocation2 + $0x68] sm:$0xff]
  %v1720 = vld [vmem:[#allocation2 + $0x70] sm:$0xff]
  %v1721 = vld [vmem:[#allocation2 + $0x78] sm:$0xff]
  %1722 = vmatprep.subr.bf16.mxu0 %v701
  %1723 = vmatpush1.bf16.msra.mxu0 %v700
  %1724 = vmatprep.subr.bf16.mxu0 %v697
  %1725 = vmatpush1.bf16.msra.mxu0 %v696
  %1726 = vmatprep.subr.bf16.mxu0 %v693
  %1727 = vmatpush1.bf16.msra.mxu0 %v692
  %1728 = vmatprep.subr.bf16.mxu0 %v689
  %1729 = vmatpush1.bf16.msra.mxu0 %v688
  %1730 = vmatprep.subr.bf16.mxu0 %v685
  %1731 = vmatpush1.bf16.msra.mxu0 %v684
  %1732 = vmatprep.subr.bf16.mxu0 %v681
  %1733 = vmatpush1.bf16.msra.mxu0 %v680
  %1734 = vmatprep.subr.bf16.mxu0 %v677
  %1735 = vmatpush1.bf16.msra.mxu0 %v676
  %1736 = vmatprep.subr.bf16.mxu0 %v673
  %1737 = vmatpush1.bf16.msra.mxu0 %v672
  %1738 = vmatprep.subr.bf16.mxu0 0
  %1739 = vmatpush2.bf16.msra.mxu0 0
  %1740 = vmatprep.subr.bf16.mxu0 0
  %1741 = vmatpush2.bf16.msra.mxu0 0
  %1742 = vmatprep.subr.bf16.mxu0 0
  %1743 = vmatpush2.bf16.msra.mxu0 0
  %1744 = vmatprep.subr.bf16.mxu0 0
  %1745 = vmatpush2.bf16.msra.mxu0 0
  %1746 = vmatprep.subr.bf16.mxu0 0
  %1747 = vmatpush2.bf16.msra.mxu0 0
  %1748 = vmatprep.subr.bf16.mxu0 0
  %1749 = vmatpush2.bf16.msra.mxu0 0
  %1750 = vmatprep.subr.bf16.mxu0 0
  %1751 = vmatpush2.bf16.msra.mxu0 0
  %1752 = vmatprep.subr.bf16.mxu0 0
  %1753 = vmatpush2.bf16.msra.mxu0 0
  %1754 = vmatprep.mubr.bf16.mxu0 0
  %1755 = vmatmul.mubr.bf16.gmra.mxu0 %v1610
  %v1756 = vpop.f32.mrf.mxu0
  %v1757 = vadd.f32 0.0, %v1756
  %v1758 = vpop.f32.mrf.mxu0
  %v1759 = vadd.f32 0.0, %v1758
  %v1760 = vpop.f32.mrf.mxu0
  %v1761 = vpop.f32.mrf.mxu0
  %1762 = vdwg.mxu0
  %1763 = vmatprep.subr.bf16.mxu0 %v703
  %1764 = vmatpush1.bf16.msra.mxu0 %v702
  %1765 = vmatprep.subr.bf16.mxu0 %v699
  %1766 = vmatpush1.bf16.msra.mxu0 %v698
  %1767 = vmatprep.subr.bf16.mxu0 %v695
  %1768 = vmatpush1.bf16.msra.mxu0 %v694
  %1769 = vmatprep.subr.bf16.mxu0 %v691
  %1770 = vmatpush1.bf16.msra.mxu0 %v690
  %1771 = vmatprep.subr.bf16.mxu0 %v687
  %1772 = vmatpush1.bf16.msra.mxu0 %v686
  %1773 = vmatprep.subr.bf16.mxu0 %v683
  %1774 = vmatpush1.bf16.msra.mxu0 %v682
  %1775 = vmatprep.subr.bf16.mxu0 %v679
  %1776 = vmatpush1.bf16.msra.mxu0 %v678
  %1777 = vmatprep.subr.bf16.mxu0 %v675
  %1778 = vmatpush1.bf16.msra.mxu0 %v674
  %1779 = vmatprep.subr.bf16.mxu0 0
  %1780 = vmatpush2.bf16.msra.mxu0 0
  %1781 = vmatprep.subr.bf16.mxu0 0
  %1782 = vmatpush2.bf16.msra.mxu0 0
  %1783 = vmatprep.subr.bf16.mxu0 0
  %1784 = vmatpush2.bf16.msra.mxu0 0
  %1785 = vmatprep.subr.bf16.mxu0 0
  %1786 = vmatpush2.bf16.msra.mxu0 0
  %1787 = vmatprep.subr.bf16.mxu0 0
  %1788 = vmatpush2.bf16.msra.mxu0 0
  %1789 = vmatprep.subr.bf16.mxu0 0
  %1790 = vmatpush2.bf16.msra.mxu0 0
  %1791 = vmatprep.subr.bf16.mxu0 0
  %1792 = vmatpush2.bf16.msra.mxu0 0
  %1793 = vmatprep.subr.bf16.mxu0 0
  %1794 = vmatpush2.bf16.msra.mxu0 0
  %1795 = vmatprep.mubr.bf16.mxu0 0
  %1796 = vmatmul.mubr.bf16.gmra.mxu0 %v1610
  %v1797 = vpop.f32.mrf.mxu0
  %v1798 = vadd.f32 0.0, %v1797
  %v1799 = vpop.f32.mrf.mxu0
  %v1800 = vadd.f32 0.0, %v1799
  %v1801 = vpop.f32.mrf.mxu0
  %v1802 = vpop.f32.mrf.mxu0
  %1803 = vdwg.mxu0
  %v1804 = vadd.f32 %v1718, %v1757
  %v1805 = vadd.f32 %v1719, %v1759
  %v1806 = vadd.f32 %v1720, %v1798
  %v1807 = vadd.f32 %v1721, %v1800
  %v1808 = vxor.u32 %v1804, 2147483648
  %v1809 = vxor.u32 %v1805, 2147483648
  %v1810 = vxor.u32 %v1806, 2147483648
  %v1811 = vmul.f32 %v1808, 1.442695
  %v1812 = vpow.pop %v1811
  %v1813 = vmul.f32 %v1809, 1.442695
  %v1814 = vpow.pop %v1813
  %v1815 = vmul.f32 %v1810, 1.442695
  %v1816 = vpow.pop %v1815
  %v1817 = vadd.f32 %v1812, 1.0
  %v1818 = vadd.f32 %v1814, 1.0
  %v1819 = vadd.f32 %v1816, 1.0
  %v1820 = vrcp.pop %v1817
  %v1821 = vmul.f32 1.0, %v1820
  %v1822 = vrcp.pop %v1818
  %v1823 = vmul.f32 1.0, %v1822
  %v1824 = vrcp.pop %v1819
  %v1825 = vmul.f32 1.0, %v1824
  %v1826 = vtanh.pop %v1807
  %v1827 = vmul.f32 %v1823, %v1607
  %v1828 = vmul.f32 %v1821, %v1826
  %v1829 = vadd.f32 %v1827, %v1828
  %v1830 = vtanh.pop %v1829
  %v1831 = vmul.f32 %v1825, %v1830
  %v1832 = vpack.c.bf16 %v1831, %v1831
  %v1833 = vpack.c.bf16 %v1717, %v1717
  %1834 = vmatprep.subr.bf16.mxu0 %v1069
  %1835 = vmatpush1.bf16.msra.mxu0 %v1068
  %1836 = vmatprep.subr.bf16.mxu0 %v1065
  %1837 = vmatpush1.bf16.msra.mxu0 %v1064
  %1838 = vmatprep.subr.bf16.mxu0 %v1061
  %1839 = vmatpush1.bf16.msra.mxu0 %v1060
  %1840 = vmatprep.subr.bf16.mxu0 %v1057
  %1841 = vmatpush1.bf16.msra.mxu0 %v1056
  %1842 = vmatprep.subr.bf16.mxu0 %v1053
  %1843 = vmatpush1.bf16.msra.mxu0 %v1052
  %1844 = vmatprep.subr.bf16.mxu0 %v1049
  %1845 = vmatpush1.bf16.msra.mxu0 %v1048
  %1846 = vmatprep.subr.bf16.mxu0 %v1045
  %1847 = vmatpush1.bf16.msra.mxu0 %v1044
  %1848 = vmatprep.subr.bf16.mxu0 %v1041
  %1849 = vmatpush1.bf16.msra.mxu0 %v1040
  %1850 = vmatprep.subr.bf16.mxu0 %v1101
  %1851 = vmatpush2.bf16.msra.mxu0 %v1100
  %1852 = vmatprep.subr.bf16.mxu0 %v1097
  %1853 = vmatpush2.bf16.msra.mxu0 %v1096
  %1854 = vmatprep.subr.bf16.mxu0 %v1093
  %1855 = vmatpush2.bf16.msra.mxu0 %v1092
  %1856 = vmatprep.subr.bf16.mxu0 %v1089
  %1857 = vmatpush2.bf16.msra.mxu0 %v1088
  %1858 = vmatprep.subr.bf16.mxu0 %v1085
  %1859 = vmatpush2.bf16.msra.mxu0 %v1084
  %1860 = vmatprep.subr.bf16.mxu0 %v1081
  %1861 = vmatpush2.bf16.msra.mxu0 %v1080
  %1862 = vmatprep.subr.bf16.mxu0 %v1077
  %1863 = vmatpush2.bf16.msra.mxu0 %v1076
  %1864 = vmatprep.subr.bf16.mxu0 %v1073
  %1865 = vmatpush2.bf16.msra.mxu0 %v1072
  %1866 = vmatprep.mubr.bf16.mxu0 %v1833
  %1867 = vmatmul.mubr.bf16.gmra.mxu0 %v1832
  %v1868 = vpop.f32.mrf.mxu0
  %v1869 = vadd.f32 %v131, %v1868
  %v1870 = vpop.f32.mrf.mxu0
  %v1871 = vadd.f32 %v135, %v1870
  %v1872 = vpop.f32.mrf.mxu0
  %v1873 = vpop.f32.mrf.mxu0
  %1874 = vdwg.mxu0
  %1875 = vmatprep.subr.bf16.mxu0 %v1071
  %1876 = vmatpush1.bf16.msra.mxu0 %v1070
  %1877 = vmatprep.subr.bf16.mxu0 %v1067
  %1878 = vmatpush1.bf16.msra.mxu0 %v1066
  %1879 = vmatprep.subr.bf16.mxu0 %v1063
  %1880 = vmatpush1.bf16.msra.mxu0 %v1062
  %1881 = vmatprep.subr.bf16.mxu0 %v1059
  %1882 = vmatpush1.bf16.msra.mxu0 %v1058
  %1883 = vmatprep.subr.bf16.mxu0 %v1055
  %1884 = vmatpush1.bf16.msra.mxu0 %v1054
  %1885 = vmatprep.subr.bf16.mxu0 %v1051
  %1886 = vmatpush1.bf16.msra.mxu0 %v1050
  %1887 = vmatprep.subr.bf16.mxu0 %v1047
  %1888 = vmatpush1.bf16.msra.mxu0 %v1046
  %1889 = vmatprep.subr.bf16.mxu0 %v1043
  %1890 = vmatpush1.bf16.msra.mxu0 %v1042
  %1891 = vmatprep.subr.bf16.mxu0 %v1103
  %1892 = vmatpush2.bf16.msra.mxu0 %v1102
  %1893 = vmatprep.subr.bf16.mxu0 %v1099
  %1894 = vmatpush2.bf16.msra.mxu0 %v1098
  %1895 = vmatprep.subr.bf16.mxu0 %v1095
  %1896 = vmatpush2.bf16.msra.mxu0 %v1094
  %1897 = vmatprep.subr.bf16.mxu0 %v1091
  %1898 = vmatpush2.bf16.msra.mxu0 %v1090
  %1899 = vmatprep.subr.bf16.mxu0 %v1087
  %1900 = vmatpush2.bf16.msra.mxu0 %v1086
  %1901 = vmatprep.subr.bf16.mxu0 %v1083
  %1902 = vmatpush2.bf16.msra.mxu0 %v1082
  %1903 = vmatprep.subr.bf16.mxu0 %v1079
  %1904 = vmatpush2.bf16.msra.mxu0 %v1078
  %1905 = vmatprep.subr.bf16.mxu0 %v1075
  %1906 = vmatpush2.bf16.msra.mxu0 %v1074
  %1907 = vmatprep.mubr.bf16.mxu0 %v1833
  %1908 = vmatmul.mubr.bf16.gmra.mxu0 %v1832
  %v1909 = vpop.f32.mrf.mxu0
  %v1910 = vadd.f32 %v139, %v1909
  %v1911 = vpop.f32.mrf.mxu0
  %v1912 = vadd.f32 %v143, %v1911
  %v1913 = vpop.f32.mrf.mxu0
  %v1914 = vpop.f32.mrf.mxu0
  %1915 = vdwg.mxu0
  %v1916 = vxor.u32 %v1869, 2147483648
  %v1917 = vxor.u32 %v1871, 2147483648
  %v1918 = vxor.u32 %v1910, 2147483648
  %v1919 = vmul.f32 %v1916, 1.442695
  %v1920 = vpow.pop %v1919
  %v1921 = vmul.f32 %v1917, 1.442695
  %v1922 = vpow.pop %v1921
  %v1923 = vmul.f32 %v1918, 1.442695
  %v1924 = vpow.pop %v1923
  %v1925 = vadd.f32 %v1920, 1.0
  %v1926 = vadd.f32 %v1922, 1.0
  %v1927 = vadd.f32 %v1924, 1.0
  %v1928 = vrcp.pop %v1925
  %v1929 = vmul.f32 1.0, %v1928
  %v1930 = vrcp.pop %v1926
  %v1931 = vmul.f32 1.0, %v1930
  %v1932 = vrcp.pop %v1927
  %v1933 = vmul.f32 1.0, %v1932
  %v1934 = vtanh.pop %v1912
  %v1935 = vmul.f32 %v1931, %v1715
  %v1936 = vmul.f32 %v1929, %v1934
  %v1937 = vadd.f32 %v1935, %v1936
  %v1938 = vtanh.pop %v1937
  %v1939 = vmul.f32 %v1933, %v1938
  %v1940 = vld [vmem:[#allocation2 + $0x80] sm:$0xff]
  %v1941 = vld [vmem:[#allocation2 + $0x88] sm:$0xff]
  %v1942 = vld [vmem:[#allocation2 + $0x90] sm:$0xff]
  %v1943 = vld [vmem:[#allocation2 + $0x98] sm:$0xff]
  %1944 = vmatprep.subr.bf16.mxu0 %v701
  %1945 = vmatpush1.bf16.msra.mxu0 %v700
  %1946 = vmatprep.subr.bf16.mxu0 %v697
  %1947 = vmatpush1.bf16.msra.mxu0 %v696
  %1948 = vmatprep.subr.bf16.mxu0 %v693
  %1949 = vmatpush1.bf16.msra.mxu0 %v692
  %1950 = vmatprep.subr.bf16.mxu0 %v689
  %1951 = vmatpush1.bf16.msra.mxu0 %v688
  %1952 = vmatprep.subr.bf16.mxu0 %v685
  %1953 = vmatpush1.bf16.msra.mxu0 %v684
  %1954 = vmatprep.subr.bf16.mxu0 %v681
  %1955 = vmatpush1.bf16.msra.mxu0 %v680
  %1956 = vmatprep.subr.bf16.mxu0 %v677
  %1957 = vmatpush1.bf16.msra.mxu0 %v676
  %1958 = vmatprep.subr.bf16.mxu0 %v673
  %1959 = vmatpush1.bf16.msra.mxu0 %v672
  %1960 = vmatprep.subr.bf16.mxu0 0
  %1961 = vmatpush2.bf16.msra.mxu0 0
  %1962 = vmatprep.subr.bf16.mxu0 0
  %1963 = vmatpush2.bf16.msra.mxu0 0
  %1964 = vmatprep.subr.bf16.mxu0 0
  %1965 = vmatpush2.bf16.msra.mxu0 0
  %1966 = vmatprep.subr.bf16.mxu0 0
  %1967 = vmatpush2.bf16.msra.mxu0 0
  %1968 = vmatprep.subr.bf16.mxu0 0
  %1969 = vmatpush2.bf16.msra.mxu0 0
  %1970 = vmatprep.subr.bf16.mxu0 0
  %1971 = vmatpush2.bf16.msra.mxu0 0
  %1972 = vmatprep.subr.bf16.mxu0 0
  %1973 = vmatpush2.bf16.msra.mxu0 0
  %1974 = vmatprep.subr.bf16.mxu0 0
  %1975 = vmatpush2.bf16.msra.mxu0 0
  %1976 = vmatprep.mubr.bf16.mxu0 0
  %1977 = vmatmul.mubr.bf16.gmra.mxu0 %v1832
  %v1978 = vpop.f32.mrf.mxu0
  %v1979 = vadd.f32 0.0, %v1978
  %v1980 = vpop.f32.mrf.mxu0
  %v1981 = vadd.f32 0.0, %v1980
  %v1982 = vpop.f32.mrf.mxu0
  %v1983 = vpop.f32.mrf.mxu0
  %1984 = vdwg.mxu0
  %1985 = vmatprep.subr.bf16.mxu0 %v703
  %1986 = vmatpush1.bf16.msra.mxu0 %v702
  %1987 = vmatprep.subr.bf16.mxu0 %v699
  %1988 = vmatpush1.bf16.msra.mxu0 %v698
  %1989 = vmatprep.subr.bf16.mxu0 %v695
  %1990 = vmatpush1.bf16.msra.mxu0 %v694
  %1991 = vmatprep.subr.bf16.mxu0 %v691
  %1992 = vmatpush1.bf16.msra.mxu0 %v690
  %1993 = vmatprep.subr.bf16.mxu0 %v687
  %1994 = vmatpush1.bf16.msra.mxu0 %v686
  %1995 = vmatprep.subr.bf16.mxu0 %v683
  %1996 = vmatpush1.bf16.msra.mxu0 %v682
  %1997 = vmatprep.subr.bf16.mxu0 %v679
  %1998 = vmatpush1.bf16.msra.mxu0 %v678
  %1999 = vmatprep.subr.bf16.mxu0 %v675
  %2000 = vmatpush1.bf16.msra.mxu0 %v674
  %2001 = vmatprep.subr.bf16.mxu0 0
  %2002 = vmatpush2.bf16.msra.mxu0 0
  %2003 = vmatprep.subr.bf16.mxu0 0
  %2004 = vmatpush2.bf16.msra.mxu0 0
  %2005 = vmatprep.subr.bf16.mxu0 0
  %2006 = vmatpush2.bf16.msra.mxu0 0
  %2007 = vmatprep.subr.bf16.mxu0 0
  %2008 = vmatpush2.bf16.msra.mxu0 0
  %2009 = vmatprep.subr.bf16.mxu0 0
  %2010 = vmatpush2.bf16.msra.mxu0 0
  %2011 = vmatprep.subr.bf16.mxu0 0
  %2012 = vmatpush2.bf16.msra.mxu0 0
  %2013 = vmatprep.subr.bf16.mxu0 0
  %2014 = vmatpush2.bf16.msra.mxu0 0
  %2015 = vmatprep.subr.bf16.mxu0 0
  %2016 = vmatpush2.bf16.msra.mxu0 0
  %2017 = vmatprep.mubr.bf16.mxu0 0
  %2018 = vmatmul.mubr.bf16.gmra.mxu0 %v1832
  %v2019 = vpop.f32.mrf.mxu0
  %v2020 = vadd.f32 0.0, %v2019
  %v2021 = vpop.f32.mrf.mxu0
  %v2022 = vadd.f32 0.0, %v2021
  %v2023 = vpop.f32.mrf.mxu0
  %v2024 = vpop.f32.mrf.mxu0
  %2025 = vdwg.mxu0
  %v2026 = vadd.f32 %v1940, %v1979
  %v2027 = vadd.f32 %v1941, %v1981
  %v2028 = vadd.f32 %v1942, %v2020
  %v2029 = vadd.f32 %v1943, %v2022
  %v2030 = vxor.u32 %v2026, 2147483648
  %v2031 = vxor.u32 %v2027, 2147483648
  %v2032 = vxor.u32 %v2028, 2147483648
  %v2033 = vmul.f32 %v2030, 1.442695
  %v2034 = vpow.pop %v2033
  %v2035 = vmul.f32 %v2031, 1.442695
  %v2036 = vpow.pop %v2035
  %v2037 = vmul.f32 %v2032, 1.442695
  %v2038 = vpow.pop %v2037
  %v2039 = vadd.f32 %v2034, 1.0
  %v2040 = vadd.f32 %v2036, 1.0
  %v2041 = vadd.f32 %v2038, 1.0
  %v2042 = vrcp.pop %v2039
  %v2043 = vmul.f32 1.0, %v2042
  %v2044 = vrcp.pop %v2040
  %v2045 = vmul.f32 1.0, %v2044
  %v2046 = vrcp.pop %v2041
  %v2047 = vmul.f32 1.0, %v2046
  %v2048 = vtanh.pop %v2029
  %v2049 = vmul.f32 %v2045, %v1829
  %v2050 = vmul.f32 %v2043, %v2048
  %v2051 = vadd.f32 %v2049, %v2050
  %v2052 = vtanh.pop %v2051
  %v2053 = vmul.f32 %v2047, %v2052
  %v2054 = vpack.c.bf16 %v2053, %v2053
  %v2055 = vpack.c.bf16 %v1939, %v1939
  %2056 = vmatprep.subr.bf16.mxu0 %v1069
  %2057 = vmatpush1.bf16.msra.mxu0 %v1068
  %2058 = vmatprep.subr.bf16.mxu0 %v1065
  %2059 = vmatpush1.bf16.msra.mxu0 %v1064
  %2060 = vmatprep.subr.bf16.mxu0 %v1061
  %2061 = vmatpush1.bf16.msra.mxu0 %v1060
  %2062 = vmatprep.subr.bf16.mxu0 %v1057
  %2063 = vmatpush1.bf16.msra.mxu0 %v1056
  %2064 = vmatprep.subr.bf16.mxu0 %v1053
  %2065 = vmatpush1.bf16.msra.mxu0 %v1052
  %2066 = vmatprep.subr.bf16.mxu0 %v1049
  %2067 = vmatpush1.bf16.msra.mxu0 %v1048
  %2068 = vmatprep.subr.bf16.mxu0 %v1045
  %2069 = vmatpush1.bf16.msra.mxu0 %v1044
  %2070 = vmatprep.subr.bf16.mxu0 %v1041
  %2071 = vmatpush1.bf16.msra.mxu0 %v1040
  %2072 = vmatprep.subr.bf16.mxu0 %v1101
  %2073 = vmatpush2.bf16.msra.mxu0 %v1100
  %2074 = vmatprep.subr.bf16.mxu0 %v1097
  %2075 = vmatpush2.bf16.msra.mxu0 %v1096
  %2076 = vmatprep.subr.bf16.mxu0 %v1093
  %2077 = vmatpush2.bf16.msra.mxu0 %v1092
  %2078 = vmatprep.subr.bf16.mxu0 %v1089
  %2079 = vmatpush2.bf16.msra.mxu0 %v1088
  %2080 = vmatprep.subr.bf16.mxu0 %v1085
  %2081 = vmatpush2.bf16.msra.mxu0 %v1084
  %2082 = vmatprep.subr.bf16.mxu0 %v1081
  %2083 = vmatpush2.bf16.msra.mxu0 %v1080
  %2084 = vmatprep.subr.bf16.mxu0 %v1077
  %2085 = vmatpush2.bf16.msra.mxu0 %v1076
  %2086 = vmatprep.subr.bf16.mxu0 %v1073
  %2087 = vmatpush2.bf16.msra.mxu0 %v1072
  %2088 = vmatprep.mubr.bf16.mxu0 %v2055
  %2089 = vmatmul.mubr.bf16.gmra.mxu0 %v2054
  %v2090 = vpop.f32.mrf.mxu0
  %v2091 = vadd.f32 %v131, %v2090
  %v2092 = vpop.f32.mrf.mxu0
  %v2093 = vadd.f32 %v135, %v2092
  %v2094 = vpop.f32.mrf.mxu0
  %v2095 = vpop.f32.mrf.mxu0
  %2096 = vdwg.mxu0
  %2097 = vmatprep.subr.bf16.mxu0 %v1071
  %2098 = vmatpush1.bf16.msra.mxu0 %v1070
  %2099 = vmatprep.subr.bf16.mxu0 %v1067
  %2100 = vmatpush1.bf16.msra.mxu0 %v1066
  %2101 = vmatprep.subr.bf16.mxu0 %v1063
  %2102 = vmatpush1.bf16.msra.mxu0 %v1062
  %2103 = vmatprep.subr.bf16.mxu0 %v1059
  %2104 = vmatpush1.bf16.msra.mxu0 %v1058
  %2105 = vmatprep.subr.bf16.mxu0 %v1055
  %2106 = vmatpush1.bf16.msra.mxu0 %v1054
  %2107 = vmatprep.subr.bf16.mxu0 %v1051
  %2108 = vmatpush1.bf16.msra.mxu0 %v1050
  %2109 = vmatprep.subr.bf16.mxu0 %v1047
  %2110 = vmatpush1.bf16.msra.mxu0 %v1046
  %2111 = vmatprep.subr.bf16.mxu0 %v1043
  %2112 = vmatpush1.bf16.msra.mxu0 %v1042
  %2113 = vmatprep.subr.bf16.mxu0 %v1103
  %2114 = vmatpush2.bf16.msra.mxu0 %v1102
  %2115 = vmatprep.subr.bf16.mxu0 %v1099
  %2116 = vmatpush2.bf16.msra.mxu0 %v1098
  %2117 = vmatprep.subr.bf16.mxu0 %v1095
  %2118 = vmatpush2.bf16.msra.mxu0 %v1094
  %2119 = vmatprep.subr.bf16.mxu0 %v1091
  %2120 = vmatpush2.bf16.msra.mxu0 %v1090
  %2121 = vmatprep.subr.bf16.mxu0 %v1087
  %2122 = vmatpush2.bf16.msra.mxu0 %v1086
  %2123 = vmatprep.subr.bf16.mxu0 %v1083
  %2124 = vmatpush2.bf16.msra.mxu0 %v1082
  %2125 = vmatprep.subr.bf16.mxu0 %v1079
  %2126 = vmatpush2.bf16.msra.mxu0 %v1078
  %2127 = vmatprep.subr.bf16.mxu0 %v1075
  %2128 = vmatpush2.bf16.msra.mxu0 %v1074
  %2129 = vmatprep.mubr.bf16.mxu0 %v2055
  %2130 = vmatmul.mubr.bf16.gmra.mxu0 %v2054
  %v2131 = vpop.f32.mrf.mxu0
  %v2132 = vadd.f32 %v139, %v2131
  %v2133 = vpop.f32.mrf.mxu0
  %v2134 = vadd.f32 %v143, %v2133
  %v2135 = vpop.f32.mrf.mxu0
  %v2136 = vpop.f32.mrf.mxu0
  %2137 = vdwg.mxu0
  %v2138 = vxor.u32 %v2091, 2147483648
  %v2139 = vxor.u32 %v2093, 2147483648
  %v2140 = vxor.u32 %v2132, 2147483648
  %v2141 = vmul.f32 %v2138, 1.442695
  %v2142 = vpow.pop %v2141
  %v2143 = vmul.f32 %v2139, 1.442695
  %v2144 = vpow.pop %v2143
  %v2145 = vmul.f32 %v2140, 1.442695
  %v2146 = vpow.pop %v2145
  %v2147 = vadd.f32 %v2142, 1.0
  %v2148 = vadd.f32 %v2144, 1.0
  %v2149 = vadd.f32 %v2146, 1.0
  %v2150 = vrcp.pop %v2147
  %v2151 = vmul.f32 1.0, %v2150
  %v2152 = vrcp.pop %v2148
  %v2153 = vmul.f32 1.0, %v2152
  %v2154 = vrcp.pop %v2149
  %v2155 = vmul.f32 1.0, %v2154
  %v2156 = vtanh.pop %v2134
  %v2157 = vmul.f32 %v2153, %v1937
  %v2158 = vmul.f32 %v2151, %v2156
  %v2159 = vadd.f32 %v2157, %v2158
  %v2160 = vtanh.pop %v2159
  %v2161 = vmul.f32 %v2155, %v2160
  %v2162 = vld [vmem:[#allocation2 + $0xa0] sm:$0xff]
  %v2163 = vld [vmem:[#allocation2 + $0xa8] sm:$0xff]
  %v2164 = vld [vmem:[#allocation2 + $0xb0] sm:$0xff]
  %v2165 = vld [vmem:[#allocation2 + $0xb8] sm:$0xff]
  %2166 = vmatprep.subr.bf16.mxu0 %v701
  %2167 = vmatpush1.bf16.msra.mxu0 %v700
  %2168 = vmatprep.subr.bf16.mxu0 %v697
  %2169 = vmatpush1.bf16.msra.mxu0 %v696
  %2170 = vmatprep.subr.bf16.mxu0 %v693
  %2171 = vmatpush1.bf16.msra.mxu0 %v692
  %2172 = vmatprep.subr.bf16.mxu0 %v689
  %2173 = vmatpush1.bf16.msra.mxu0 %v688
  %2174 = vmatprep.subr.bf16.mxu0 %v685
  %2175 = vmatpush1.bf16.msra.mxu0 %v684
  %2176 = vmatprep.subr.bf16.mxu0 %v681
  %2177 = vmatpush1.bf16.msra.mxu0 %v680
  %2178 = vmatprep.subr.bf16.mxu0 %v677
  %2179 = vmatpush1.bf16.msra.mxu0 %v676
  %2180 = vmatprep.subr.bf16.mxu0 %v673
  %2181 = vmatpush1.bf16.msra.mxu0 %v672
  %2182 = vmatprep.subr.bf16.mxu0 0
  %2183 = vmatpush2.bf16.msra.mxu0 0
  %2184 = vmatprep.subr.bf16.mxu0 0
  %2185 = vmatpush2.bf16.msra.mxu0 0
  %2186 = vmatprep.subr.bf16.mxu0 0
  %2187 = vmatpush2.bf16.msra.mxu0 0
  %2188 = vmatprep.subr.bf16.mxu0 0
  %2189 = vmatpush2.bf16.msra.mxu0 0
  %2190 = vmatprep.subr.bf16.mxu0 0
  %2191 = vmatpush2.bf16.msra.mxu0 0
  %2192 = vmatprep.subr.bf16.mxu0 0
  %2193 = vmatpush2.bf16.msra.mxu0 0
  %2194 = vmatprep.subr.bf16.mxu0 0
  %2195 = vmatpush2.bf16.msra.mxu0 0
  %2196 = vmatprep.subr.bf16.mxu0 0
  %2197 = vmatpush2.bf16.msra.mxu0 0
  %2198 = vmatprep.mubr.bf16.mxu0 0
  %2199 = vmatmul.mubr.bf16.gmra.mxu0 %v2054
  %v2200 = vpop.f32.mrf.mxu0
  %v2201 = vadd.f32 0.0, %v2200
  %v2202 = vpop.f32.mrf.mxu0
  %v2203 = vadd.f32 0.0, %v2202
  %v2204 = vpop.f32.mrf.mxu0
  %v2205 = vpop.f32.mrf.mxu0
  %2206 = vdwg.mxu0
  %2207 = vmatprep.subr.bf16.mxu0 %v703
  %2208 = vmatpush1.bf16.msra.mxu0 %v702
  %2209 = vmatprep.subr.bf16.mxu0 %v699
  %2210 = vmatpush1.bf16.msra.mxu0 %v698
  %2211 = vmatprep.subr.bf16.mxu0 %v695
  %2212 = vmatpush1.bf16.msra.mxu0 %v694
  %2213 = vmatprep.subr.bf16.mxu0 %v691
  %2214 = vmatpush1.bf16.msra.mxu0 %v690
  %2215 = vmatprep.subr.bf16.mxu0 %v687
  %2216 = vmatpush1.bf16.msra.mxu0 %v686
  %2217 = vmatprep.subr.bf16.mxu0 %v683
  %2218 = vmatpush1.bf16.msra.mxu0 %v682
  %2219 = vmatprep.subr.bf16.mxu0 %v679
  %2220 = vmatpush1.bf16.msra.mxu0 %v678
  %2221 = vmatprep.subr.bf16.mxu0 %v675
  %2222 = vmatpush1.bf16.msra.mxu0 %v674
  %2223 = vmatprep.subr.bf16.mxu0 0
  %2224 = vmatpush2.bf16.msra.mxu0 0
  %2225 = vmatprep.subr.bf16.mxu0 0
  %2226 = vmatpush2.bf16.msra.mxu0 0
  %2227 = vmatprep.subr.bf16.mxu0 0
  %2228 = vmatpush2.bf16.msra.mxu0 0
  %2229 = vmatprep.subr.bf16.mxu0 0
  %2230 = vmatpush2.bf16.msra.mxu0 0
  %2231 = vmatprep.subr.bf16.mxu0 0
  %2232 = vmatpush2.bf16.msra.mxu0 0
  %2233 = vmatprep.subr.bf16.mxu0 0
  %2234 = vmatpush2.bf16.msra.mxu0 0
  %2235 = vmatprep.subr.bf16.mxu0 0
  %2236 = vmatpush2.bf16.msra.mxu0 0
  %2237 = vmatprep.subr.bf16.mxu0 0
  %2238 = vmatpush2.bf16.msra.mxu0 0
  %2239 = vmatprep.mubr.bf16.mxu0 0
  %2240 = vmatmul.mubr.bf16.gmra.mxu0 %v2054
  %v2241 = vpop.f32.mrf.mxu0
  %v2242 = vadd.f32 0.0, %v2241
  %v2243 = vpop.f32.mrf.mxu0
  %v2244 = vadd.f32 0.0, %v2243
  %v2245 = vpop.f32.mrf.mxu0
  %v2246 = vpop.f32.mrf.mxu0
  %2247 = vdwg.mxu0
  %v2248 = vadd.f32 %v2162, %v2201
  %v2249 = vadd.f32 %v2163, %v2203
  %v2250 = vadd.f32 %v2164, %v2242
  %v2251 = vadd.f32 %v2165, %v2244
  %v2252 = vxor.u32 %v2248, 2147483648
  %v2253 = vxor.u32 %v2249, 2147483648
  %v2254 = vxor.u32 %v2250, 2147483648
  %v2255 = vmul.f32 %v2252, 1.442695
  %v2256 = vpow.pop %v2255
  %v2257 = vmul.f32 %v2253, 1.442695
  %v2258 = vpow.pop %v2257
  %v2259 = vmul.f32 %v2254, 1.442695
  %v2260 = vpow.pop %v2259
  %v2261 = vadd.f32 %v2256, 1.0
  %v2262 = vadd.f32 %v2258, 1.0
  %v2263 = vadd.f32 %v2260, 1.0
  %v2264 = vrcp.pop %v2261
  %v2265 = vmul.f32 1.0, %v2264
  %v2266 = vrcp.pop %v2262
  %v2267 = vmul.f32 1.0, %v2266
  %v2268 = vrcp.pop %v2263
  %v2269 = vmul.f32 1.0, %v2268
  %v2270 = vtanh.pop %v2251
  %v2271 = vmul.f32 %v2267, %v2051
  %v2272 = vmul.f32 %v2265, %v2270
  %v2273 = vadd.f32 %v2271, %v2272
  %v2274 = vtanh.pop %v2273
  %v2275 = vmul.f32 %v2269, %v2274
  %v2276 = vpack.c.bf16 %v2275, %v2275
  %v2277 = vpack.c.bf16 %v2161, %v2161
  %2278 = vmatprep.subr.bf16.mxu0 %v1069
  %2279 = vmatpush1.bf16.msra.mxu0 %v1068
  %2280 = vmatprep.subr.bf16.mxu0 %v1065
  %2281 = vmatpush1.bf16.msra.mxu0 %v1064
  %2282 = vmatprep.subr.bf16.mxu0 %v1061
  %2283 = vmatpush1.bf16.msra.mxu0 %v1060
  %2284 = vmatprep.subr.bf16.mxu0 %v1057
  %2285 = vmatpush1.bf16.msra.mxu0 %v1056
  %2286 = vmatprep.subr.bf16.mxu0 %v1053
  %2287 = vmatpush1.bf16.msra.mxu0 %v1052
  %2288 = vmatprep.subr.bf16.mxu0 %v1049
  %2289 = vmatpush1.bf16.msra.mxu0 %v1048
  %2290 = vmatprep.subr.bf16.mxu0 %v1045
  %2291 = vmatpush1.bf16.msra.mxu0 %v1044
  %2292 = vmatprep.subr.bf16.mxu0 %v1041
  %2293 = vmatpush1.bf16.msra.mxu0 %v1040
  %2294 = vmatprep.subr.bf16.mxu0 %v1101
  %2295 = vmatpush2.bf16.msra.mxu0 %v1100
  %2296 = vmatprep.subr.bf16.mxu0 %v1097
  %2297 = vmatpush2.bf16.msra.mxu0 %v1096
  %2298 = vmatprep.subr.bf16.mxu0 %v1093
  %2299 = vmatpush2.bf16.msra.mxu0 %v1092
  %2300 = vmatprep.subr.bf16.mxu0 %v1089
  %2301 = vmatpush2.bf16.msra.mxu0 %v1088
  %2302 = vmatprep.subr.bf16.mxu0 %v1085
  %2303 = vmatpush2.bf16.msra.mxu0 %v1084
  %2304 = vmatprep.subr.bf16.mxu0 %v1081
  %2305 = vmatpush2.bf16.msra.mxu0 %v1080
  %2306 = vmatprep.subr.bf16.mxu0 %v1077
  %2307 = vmatpush2.bf16.msra.mxu0 %v1076
  %2308 = vmatprep.subr.bf16.mxu0 %v1073
  %2309 = vmatpush2.bf16.msra.mxu0 %v1072
  %2310 = vmatprep.mubr.bf16.mxu0 %v2277
  %2311 = vmatmul.mubr.bf16.gmra.mxu0 %v2276
  %v2312 = vpop.f32.mrf.mxu0
  %v2313 = vadd.f32 %v131, %v2312
  %v2314 = vpop.f32.mrf.mxu0
  %v2315 = vadd.f32 %v135, %v2314
  %v2316 = vpop.f32.mrf.mxu0
  %v2317 = vpop.f32.mrf.mxu0
  %2318 = vdwg.mxu0
  %2319 = vmatprep.subr.bf16.mxu0 %v1071
  %2320 = vmatpush1.bf16.msra.mxu0 %v1070
  %2321 = vmatprep.subr.bf16.mxu0 %v1067
  %2322 = vmatpush1.bf16.msra.mxu0 %v1066
  %2323 = vmatprep.subr.bf16.mxu0 %v1063
  %2324 = vmatpush1.bf16.msra.mxu0 %v1062
  %2325 = vmatprep.subr.bf16.mxu0 %v1059
  %2326 = vmatpush1.bf16.msra.mxu0 %v1058
  %2327 = vmatprep.subr.bf16.mxu0 %v1055
  %2328 = vmatpush1.bf16.msra.mxu0 %v1054
  %2329 = vmatprep.subr.bf16.mxu0 %v1051
  %2330 = vmatpush1.bf16.msra.mxu0 %v1050
  %2331 = vmatprep.subr.bf16.mxu0 %v1047
  %2332 = vmatpush1.bf16.msra.mxu0 %v1046
  %2333 = vmatprep.subr.bf16.mxu0 %v1043
  %2334 = vmatpush1.bf16.msra.mxu0 %v1042
  %2335 = vmatprep.subr.bf16.mxu0 %v1103
  %2336 = vmatpush2.bf16.msra.mxu0 %v1102
  %2337 = vmatprep.subr.bf16.mxu0 %v1099
  %2338 = vmatpush2.bf16.msra.mxu0 %v1098
  %2339 = vmatprep.subr.bf16.mxu0 %v1095
  %2340 = vmatpush2.bf16.msra.mxu0 %v1094
  %2341 = vmatprep.subr.bf16.mxu0 %v1091
  %2342 = vmatpush2.bf16.msra.mxu0 %v1090
  %2343 = vmatprep.subr.bf16.mxu0 %v1087
  %2344 = vmatpush2.bf16.msra.mxu0 %v1086
  %2345 = vmatprep.subr.bf16.mxu0 %v1083
  %2346 = vmatpush2.bf16.msra.mxu0 %v1082
  %2347 = vmatprep.subr.bf16.mxu0 %v1079
  %2348 = vmatpush2.bf16.msra.mxu0 %v1078
  %2349 = vmatprep.subr.bf16.mxu0 %v1075
  %2350 = vmatpush2.bf16.msra.mxu0 %v1074
  %2351 = vmatprep.mubr.bf16.mxu0 %v2277
  %2352 = vmatmul.mubr.bf16.gmra.mxu0 %v2276
  %v2353 = vpop.f32.mrf.mxu0
  %v2354 = vadd.f32 %v139, %v2353
  %v2355 = vpop.f32.mrf.mxu0
  %v2356 = vadd.f32 %v143, %v2355
  %v2357 = vpop.f32.mrf.mxu0
  %v2358 = vpop.f32.mrf.mxu0
  %2359 = vdwg.mxu0
  %v2360 = vxor.u32 %v2313, 2147483648
  %v2361 = vxor.u32 %v2315, 2147483648
  %v2362 = vxor.u32 %v2354, 2147483648
  %v2363 = vmul.f32 %v2360, 1.442695
  %v2364 = vpow.pop %v2363
  %v2365 = vmul.f32 %v2361, 1.442695
  %v2366 = vpow.pop %v2365
  %v2367 = vmul.f32 %v2362, 1.442695
  %v2368 = vpow.pop %v2367
  %v2369 = vadd.f32 %v2364, 1.0
  %v2370 = vadd.f32 %v2366, 1.0
  %v2371 = vadd.f32 %v2368, 1.0
  %v2372 = vrcp.pop %v2369
  %v2373 = vmul.f32 1.0, %v2372
  %v2374 = vrcp.pop %v2370
  %v2375 = vmul.f32 1.0, %v2374
  %v2376 = vrcp.pop %v2371
  %v2377 = vmul.f32 1.0, %v2376
  %v2378 = vtanh.pop %v2356
  %v2379 = vmul.f32 %v2375, %v2159
  %v2380 = vmul.f32 %v2373, %v2378
  %v2381 = vadd.f32 %v2379, %v2380
  %v2382 = vtanh.pop %v2381
  %v2383 = vmul.f32 %v2377, %v2382
  %v2384 = vld [vmem:[#allocation2 + $0xc0] sm:$0xff]
  %v2385 = vld [vmem:[#allocation2 + $0xc8] sm:$0xff]
  %v2386 = vld [vmem:[#allocation2 + $0xd0] sm:$0xff]
  %v2387 = vld [vmem:[#allocation2 + $0xd8] sm:$0xff]
  %2388 = vmatprep.subr.bf16.mxu0 %v701
  %2389 = vmatpush1.bf16.msra.mxu0 %v700
  %2390 = vmatprep.subr.bf16.mxu0 %v697
  %2391 = vmatpush1.bf16.msra.mxu0 %v696
  %2392 = vmatprep.subr.bf16.mxu0 %v693
  %2393 = vmatpush1.bf16.msra.mxu0 %v692
  %2394 = vmatprep.subr.bf16.mxu0 %v689
  %2395 = vmatpush1.bf16.msra.mxu0 %v688
  %2396 = vmatprep.subr.bf16.mxu0 %v685
  %2397 = vmatpush1.bf16.msra.mxu0 %v684
  %2398 = vmatprep.subr.bf16.mxu0 %v681
  %2399 = vmatpush1.bf16.msra.mxu0 %v680
  %2400 = vmatprep.subr.bf16.mxu0 %v677
  %2401 = vmatpush1.bf16.msra.mxu0 %v676
  %2402 = vmatprep.subr.bf16.mxu0 %v673
  %2403 = vmatpush1.bf16.msra.mxu0 %v672
  %2404 = vmatprep.subr.bf16.mxu0 0
  %2405 = vmatpush2.bf16.msra.mxu0 0
  %2406 = vmatprep.subr.bf16.mxu0 0
  %2407 = vmatpush2.bf16.msra.mxu0 0
  %2408 = vmatprep.subr.bf16.mxu0 0
  %2409 = vmatpush2.bf16.msra.mxu0 0
  %2410 = vmatprep.subr.bf16.mxu0 0
  %2411 = vmatpush2.bf16.msra.mxu0 0
  %2412 = vmatprep.subr.bf16.mxu0 0
  %2413 = vmatpush2.bf16.msra.mxu0 0
  %2414 = vmatprep.subr.bf16.mxu0 0
  %2415 = vmatpush2.bf16.msra.mxu0 0
  %2416 = vmatprep.subr.bf16.mxu0 0
  %2417 = vmatpush2.bf16.msra.mxu0 0
  %2418 = vmatprep.subr.bf16.mxu0 0
  %2419 = vmatpush2.bf16.msra.mxu0 0
  %2420 = vmatprep.mubr.bf16.mxu0 0
  %2421 = vmatmul.mubr.bf16.gmra.mxu0 %v2276
  %v2422 = vpop.f32.mrf.mxu0
  %v2423 = vadd.f32 0.0, %v2422
  %v2424 = vpop.f32.mrf.mxu0
  %v2425 = vadd.f32 0.0, %v2424
  %v2426 = vpop.f32.mrf.mxu0
  %v2427 = vpop.f32.mrf.mxu0
  %2428 = vdwg.mxu0
  %2429 = vmatprep.subr.bf16.mxu0 %v703
  %2430 = vmatpush1.bf16.msra.mxu0 %v702
  %2431 = vmatprep.subr.bf16.mxu0 %v699
  %2432 = vmatpush1.bf16.msra.mxu0 %v698
  %2433 = vmatprep.subr.bf16.mxu0 %v695
  %2434 = vmatpush1.bf16.msra.mxu0 %v694
  %2435 = vmatprep.subr.bf16.mxu0 %v691
  %2436 = vmatpush1.bf16.msra.mxu0 %v690
  %2437 = vmatprep.subr.bf16.mxu0 %v687
  %2438 = vmatpush1.bf16.msra.mxu0 %v686
  %2439 = vmatprep.subr.bf16.mxu0 %v683
  %2440 = vmatpush1.bf16.msra.mxu0 %v682
  %2441 = vmatprep.subr.bf16.mxu0 %v679
  %2442 = vmatpush1.bf16.msra.mxu0 %v678
  %2443 = vmatprep.subr.bf16.mxu0 %v675
  %2444 = vmatpush1.bf16.msra.mxu0 %v674
  %2445 = vmatprep.subr.bf16.mxu0 0
  %2446 = vmatpush2.bf16.msra.mxu0 0
  %2447 = vmatprep.subr.bf16.mxu0 0
  %2448 = vmatpush2.bf16.msra.mxu0 0
  %2449 = vmatprep.subr.bf16.mxu0 0
  %2450 = vmatpush2.bf16.msra.mxu0 0
  %2451 = vmatprep.subr.bf16.mxu0 0
  %2452 = vmatpush2.bf16.msra.mxu0 0
  %2453 = vmatprep.subr.bf16.mxu0 0
  %2454 = vmatpush2.bf16.msra.mxu0 0
  %2455 = vmatprep.subr.bf16.mxu0 0
  %2456 = vmatpush2.bf16.msra.mxu0 0
  %2457 = vmatprep.subr.bf16.mxu0 0
  %2458 = vmatpush2.bf16.msra.mxu0 0
  %2459 = vmatprep.subr.bf16.mxu0 0
  %2460 = vmatpush2.bf16.msra.mxu0 0
  %2461 = vmatprep.mubr.bf16.mxu0 0
  %2462 = vmatmul.mubr.bf16.gmra.mxu0 %v2276
  %v2463 = vpop.f32.mrf.mxu0
  %v2464 = vadd.f32 0.0, %v2463
  %v2465 = vpop.f32.mrf.mxu0
  %v2466 = vadd.f32 0.0, %v2465
  %v2467 = vpop.f32.mrf.mxu0
  %v2468 = vpop.f32.mrf.mxu0
  %2469 = vdwg.mxu0
  %v2470 = vadd.f32 %v2384, %v2423
  %v2471 = vadd.f32 %v2385, %v2425
  %v2472 = vadd.f32 %v2386, %v2464
  %v2473 = vadd.f32 %v2387, %v2466
  %v2474 = vxor.u32 %v2470, 2147483648
  %v2475 = vxor.u32 %v2471, 2147483648
  %v2476 = vxor.u32 %v2472, 2147483648
  %v2477 = vmul.f32 %v2474, 1.442695
  %v2478 = vpow.pop %v2477
  %v2479 = vmul.f32 %v2475, 1.442695
  %v2480 = vpow.pop %v2479
  %v2481 = vmul.f32 %v2476, 1.442695
  %v2482 = vpow.pop %v2481
  %v2483 = vadd.f32 %v2478, 1.0
  %v2484 = vadd.f32 %v2480, 1.0
  %v2485 = vadd.f32 %v2482, 1.0
  %v2486 = vrcp.pop %v2483
  %v2487 = vmul.f32 1.0, %v2486
  %v2488 = vrcp.pop %v2484
  %v2489 = vmul.f32 1.0, %v2488
  %v2490 = vrcp.pop %v2485
  %v2491 = vmul.f32 1.0, %v2490
  %v2492 = vtanh.pop %v2473
  %v2493 = vmul.f32 %v2489, %v2273
  %v2494 = vmul.f32 %v2487, %v2492
  %v2495 = vadd.f32 %v2493, %v2494
  %v2496 = vtanh.pop %v2495
  %v2497 = vmul.f32 %v2491, %v2496
  %v2498 = vpack.c.bf16 %v2497, %v2497
  %v2499 = vpack.c.bf16 %v2383, %v2383
  %2500 = vmatprep.subr.bf16.mxu0 %v1069
  %2501 = vmatpush1.bf16.msra.mxu0 %v1068
  %2502 = vmatprep.subr.bf16.mxu0 %v1065
  %2503 = vmatpush1.bf16.msra.mxu0 %v1064
  %2504 = vmatprep.subr.bf16.mxu0 %v1061
  %2505 = vmatpush1.bf16.msra.mxu0 %v1060
  %2506 = vmatprep.subr.bf16.mxu0 %v1057
  %2507 = vmatpush1.bf16.msra.mxu0 %v1056
  %2508 = vmatprep.subr.bf16.mxu0 %v1053
  %2509 = vmatpush1.bf16.msra.mxu0 %v1052
  %2510 = vmatprep.subr.bf16.mxu0 %v1049
  %2511 = vmatpush1.bf16.msra.mxu0 %v1048
  %2512 = vmatprep.subr.bf16.mxu0 %v1045
  %2513 = vmatpush1.bf16.msra.mxu0 %v1044
  %2514 = vmatprep.subr.bf16.mxu0 %v1041
  %2515 = vmatpush1.bf16.msra.mxu0 %v1040
  %2516 = vmatprep.subr.bf16.mxu0 %v1101
  %2517 = vmatpush2.bf16.msra.mxu0 %v1100
  %2518 = vmatprep.subr.bf16.mxu0 %v1097
  %2519 = vmatpush2.bf16.msra.mxu0 %v1096
  %2520 = vmatprep.subr.bf16.mxu0 %v1093
  %2521 = vmatpush2.bf16.msra.mxu0 %v1092
  %2522 = vmatprep.subr.bf16.mxu0 %v1089
  %2523 = vmatpush2.bf16.msra.mxu0 %v1088
  %2524 = vmatprep.subr.bf16.mxu0 %v1085
  %2525 = vmatpush2.bf16.msra.mxu0 %v1084
  %2526 = vmatprep.subr.bf16.mxu0 %v1081
  %2527 = vmatpush2.bf16.msra.mxu0 %v1080
  %2528 = vmatprep.subr.bf16.mxu0 %v1077
  %2529 = vmatpush2.bf16.msra.mxu0 %v1076
  %2530 = vmatprep.subr.bf16.mxu0 %v1073
  %2531 = vmatpush2.bf16.msra.mxu0 %v1072
  %2532 = vmatprep.mubr.bf16.mxu0 %v2499
  %2533 = vmatmul.mubr.bf16.gmra.mxu0 %v2498
  %v2534 = vpop.f32.mrf.mxu0
  %v2535 = vadd.f32 %v131, %v2534
  %v2536 = vpop.f32.mrf.mxu0
  %v2537 = vadd.f32 %v135, %v2536
  %v2538 = vpop.f32.mrf.mxu0
  %v2539 = vpop.f32.mrf.mxu0
  %2540 = vdwg.mxu0
  %2541 = vmatprep.subr.bf16.mxu0 %v1071
  %2542 = vmatpush1.bf16.msra.mxu0 %v1070
  %2543 = vmatprep.subr.bf16.mxu0 %v1067
  %2544 = vmatpush1.bf16.msra.mxu0 %v1066
  %2545 = vmatprep.subr.bf16.mxu0 %v1063
  %2546 = vmatpush1.bf16.msra.mxu0 %v1062
  %2547 = vmatprep.subr.bf16.mxu0 %v1059
  %2548 = vmatpush1.bf16.msra.mxu0 %v1058
  %2549 = vmatprep.subr.bf16.mxu0 %v1055
  %2550 = vmatpush1.bf16.msra.mxu0 %v1054
  %2551 = vmatprep.subr.bf16.mxu0 %v1051
  %2552 = vmatpush1.bf16.msra.mxu0 %v1050
  %2553 = vmatprep.subr.bf16.mxu0 %v1047
  %2554 = vmatpush1.bf16.msra.mxu0 %v1046
  %2555 = vmatprep.subr.bf16.mxu0 %v1043
  %2556 = vmatpush1.bf16.msra.mxu0 %v1042
  %2557 = vmatprep.subr.bf16.mxu0 %v1103
  %2558 = vmatpush2.bf16.msra.mxu0 %v1102
  %2559 = vmatprep.subr.bf16.mxu0 %v1099
  %2560 = vmatpush2.bf16.msra.mxu0 %v1098
  %2561 = vmatprep.subr.bf16.mxu0 %v1095
  %2562 = vmatpush2.bf16.msra.mxu0 %v1094
  %2563 = vmatprep.subr.bf16.mxu0 %v1091
  %2564 = vmatpush2.bf16.msra.mxu0 %v1090
  %2565 = vmatprep.subr.bf16.mxu0 %v1087
  %2566 = vmatpush2.bf16.msra.mxu0 %v1086
  %2567 = vmatprep.subr.bf16.mxu0 %v1083
  %2568 = vmatpush2.bf16.msra.mxu0 %v1082
  %2569 = vmatprep.subr.bf16.mxu0 %v1079
  %2570 = vmatpush2.bf16.msra.mxu0 %v1078
  %2571 = vmatprep.subr.bf16.mxu0 %v1075
  %2572 = vmatpush2.bf16.msra.mxu0 %v1074
  %2573 = vmatprep.mubr.bf16.mxu0 %v2499
  %2574 = vmatmul.mubr.bf16.gmra.mxu0 %v2498
  %v2575 = vpop.f32.mrf.mxu0
  %v2576 = vadd.f32 %v139, %v2575
  %v2577 = vpop.f32.mrf.mxu0
  %v2578 = vadd.f32 %v143, %v2577
  %v2579 = vpop.f32.mrf.mxu0
  %v2580 = vpop.f32.mrf.mxu0
  %2581 = vdwg.mxu0
  %v2582 = vxor.u32 %v2535, 2147483648
  %v2583 = vxor.u32 %v2537, 2147483648
  %v2584 = vxor.u32 %v2576, 2147483648
  %v2585 = vmul.f32 %v2582, 1.442695
  %v2586 = vpow.pop %v2585
  %v2587 = vmul.f32 %v2583, 1.442695
  %v2588 = vpow.pop %v2587
  %v2589 = vmul.f32 %v2584, 1.442695
  %v2590 = vpow.pop %v2589
  %v2591 = vadd.f32 %v2586, 1.0
  %v2592 = vadd.f32 %v2588, 1.0
  %v2593 = vadd.f32 %v2590, 1.0
  %v2594 = vrcp.pop %v2591
  %v2595 = vmul.f32 1.0, %v2594
  %v2596 = vrcp.pop %v2592
  %v2597 = vmul.f32 1.0, %v2596
  %v2598 = vrcp.pop %v2593
  %v2599 = vmul.f32 1.0, %v2598
  %v2600 = vtanh.pop %v2578
  %v2601 = vmul.f32 %v2597, %v2381
  %v2602 = vmul.f32 %v2595, %v2600
  %v2603 = vadd.f32 %v2601, %v2602
  %v2604 = vtanh.pop %v2603
  %v2605 = vmul.f32 %v2599, %v2604
  %v2606 = vld [vmem:[#allocation2 + $0xe0] sm:$0xff]
  %v2607 = vld [vmem:[#allocation2 + $0xe8] sm:$0xff]
  %v2608 = vld [vmem:[#allocation2 + $0xf0] sm:$0xff]
  %v2609 = vld [vmem:[#allocation2 + $0xf8] sm:$0xff]
  %2610 = vmatprep.subr.bf16.mxu0 %v701
  %2611 = vmatpush1.bf16.msra.mxu0 %v700
  %2612 = vmatprep.subr.bf16.mxu0 %v697
  %2613 = vmatpush1.bf16.msra.mxu0 %v696
  %2614 = vmatprep.subr.bf16.mxu0 %v693
  %2615 = vmatpush1.bf16.msra.mxu0 %v692
  %2616 = vmatprep.subr.bf16.mxu0 %v689
  %2617 = vmatpush1.bf16.msra.mxu0 %v688
  %2618 = vmatprep.subr.bf16.mxu0 %v685
  %2619 = vmatpush1.bf16.msra.mxu0 %v684
  %2620 = vmatprep.subr.bf16.mxu0 %v681
  %2621 = vmatpush1.bf16.msra.mxu0 %v680
  %2622 = vmatprep.subr.bf16.mxu0 %v677
  %2623 = vmatpush1.bf16.msra.mxu0 %v676
  %2624 = vmatprep.subr.bf16.mxu0 %v673
  %2625 = vmatpush1.bf16.msra.mxu0 %v672
  %2626 = vmatprep.subr.bf16.mxu0 0
  %2627 = vmatpush2.bf16.msra.mxu0 0
  %2628 = vmatprep.subr.bf16.mxu0 0
  %2629 = vmatpush2.bf16.msra.mxu0 0
  %2630 = vmatprep.subr.bf16.mxu0 0
  %2631 = vmatpush2.bf16.msra.mxu0 0
  %2632 = vmatprep.subr.bf16.mxu0 0
  %2633 = vmatpush2.bf16.msra.mxu0 0
  %2634 = vmatprep.subr.bf16.mxu0 0
  %2635 = vmatpush2.bf16.msra.mxu0 0
  %2636 = vmatprep.subr.bf16.mxu0 0
  %2637 = vmatpush2.bf16.msra.mxu0 0
  %2638 = vmatprep.subr.bf16.mxu0 0
  %2639 = vmatpush2.bf16.msra.mxu0 0
  %2640 = vmatprep.subr.bf16.mxu0 0
  %2641 = vmatpush2.bf16.msra.mxu0 0
  %2642 = vmatprep.mubr.bf16.mxu0 0
  %2643 = vmatmul.mubr.bf16.gmra.mxu0 %v2498
  %v2644 = vpop.f32.mrf.mxu0
  %v2645 = vadd.f32 0.0, %v2644
  %v2646 = vpop.f32.mrf.mxu0
  %v2647 = vadd.f32 0.0, %v2646
  %v2648 = vpop.f32.mrf.mxu0
  %v2649 = vpop.f32.mrf.mxu0
  %2650 = vdwg.mxu0
  %2651 = vmatprep.subr.bf16.mxu0 %v703
  %2652 = vmatpush1.bf16.msra.mxu0 %v702
  %2653 = vmatprep.subr.bf16.mxu0 %v699
  %2654 = vmatpush1.bf16.msra.mxu0 %v698
  %2655 = vmatprep.subr.bf16.mxu0 %v695
  %2656 = vmatpush1.bf16.msra.mxu0 %v694
  %2657 = vmatprep.subr.bf16.mxu0 %v691
  %2658 = vmatpush1.bf16.msra.mxu0 %v690
  %2659 = vmatprep.subr.bf16.mxu0 %v687
  %2660 = vmatpush1.bf16.msra.mxu0 %v686
  %2661 = vmatprep.subr.bf16.mxu0 %v683
  %2662 = vmatpush1.bf16.msra.mxu0 %v682
  %2663 = vmatprep.subr.bf16.mxu0 %v679
  %2664 = vmatpush1.bf16.msra.mxu0 %v678
  %2665 = vmatprep.subr.bf16.mxu0 %v675
  %2666 = vmatpush1.bf16.msra.mxu0 %v674
  %2667 = vmatprep.subr.bf16.mxu0 0
  %2668 = vmatpush2.bf16.msra.mxu0 0
  %2669 = vmatprep.subr.bf16.mxu0 0
  %2670 = vmatpush2.bf16.msra.mxu0 0
  %2671 = vmatprep.subr.bf16.mxu0 0
  %2672 = vmatpush2.bf16.msra.mxu0 0
  %2673 = vmatprep.subr.bf16.mxu0 0
  %2674 = vmatpush2.bf16.msra.mxu0 0
  %2675 = vmatprep.subr.bf16.mxu0 0
  %2676 = vmatpush2.bf16.msra.mxu0 0
  %2677 = vmatprep.subr.bf16.mxu0 0
  %2678 = vmatpush2.bf16.msra.mxu0 0
  %2679 = vmatprep.subr.bf16.mxu0 0
  %2680 = vmatpush2.bf16.msra.mxu0 0
  %2681 = vmatprep.subr.bf16.mxu0 0
  %2682 = vmatpush2.bf16.msra.mxu0 0
  %2683 = vmatprep.mubr.bf16.mxu0 0
  %2684 = vmatmul.mubr.bf16.gmra.mxu0 %v2498
  %v2685 = vpop.f32.mrf.mxu0
  %v2686 = vadd.f32 0.0, %v2685
  %v2687 = vpop.f32.mrf.mxu0
  %v2688 = vadd.f32 0.0, %v2687
  %v2689 = vpop.f32.mrf.mxu0
  %v2690 = vpop.f32.mrf.mxu0
  %2691 = vdwg.mxu0
  %v2692 = vadd.f32 %v2606, %v2645
  %v2693 = vadd.f32 %v2607, %v2647
  %v2694 = vadd.f32 %v2608, %v2686
  %v2695 = vadd.f32 %v2609, %v2688
  %v2696 = vxor.u32 %v2692, 2147483648
  %v2697 = vxor.u32 %v2693, 2147483648
  %v2698 = vxor.u32 %v2694, 2147483648
  %v2699 = vmul.f32 %v2696, 1.442695
  %v2700 = vpow.pop %v2699
  %v2701 = vmul.f32 %v2697, 1.442695
  %v2702 = vpow.pop %v2701
  %v2703 = vmul.f32 %v2698, 1.442695
  %v2704 = vpow.pop %v2703
  %v2705 = vadd.f32 %v2700, 1.0
  %v2706 = vadd.f32 %v2702, 1.0
  %v2707 = vadd.f32 %v2704, 1.0
  %v2708 = vrcp.pop %v2705
  %v2709 = vmul.f32 1.0, %v2708
  %v2710 = vrcp.pop %v2706
  %v2711 = vmul.f32 1.0, %v2710
  %v2712 = vrcp.pop %v2707
  %v2713 = vmul.f32 1.0, %v2712
  %v2714 = vtanh.pop %v2695
  %v2715 = vmul.f32 %v2711, %v2495
  %v2716 = vmul.f32 %v2709, %v2714
  %v2717 = vadd.f32 %v2715, %v2716
  %v2718 = vtanh.pop %v2717
  %v2719 = vmul.f32 %v2713, %v2718
  %v2720 = vpack.c.bf16 %v2719, %v2719
  %v2721 = vpack.c.bf16 %v2605, %v2605
  %2722 = vmatprep.subr.bf16.mxu0 %v1069
  %2723 = vmatpush1.bf16.msra.mxu0 %v1068
  %2724 = vmatprep.subr.bf16.mxu0 %v1065
  %2725 = vmatpush1.bf16.msra.mxu0 %v1064
  %2726 = vmatprep.subr.bf16.mxu0 %v1061
  %2727 = vmatpush1.bf16.msra.mxu0 %v1060
  %2728 = vmatprep.subr.bf16.mxu0 %v1057
  %2729 = vmatpush1.bf16.msra.mxu0 %v1056
  %2730 = vmatprep.subr.bf16.mxu0 %v1053
  %2731 = vmatpush1.bf16.msra.mxu0 %v1052
  %2732 = vmatprep.subr.bf16.mxu0 %v1049
  %2733 = vmatpush1.bf16.msra.mxu0 %v1048
  %2734 = vmatprep.subr.bf16.mxu0 %v1045
  %2735 = vmatpush1.bf16.msra.mxu0 %v1044
  %2736 = vmatprep.subr.bf16.mxu0 %v1041
  %2737 = vmatpush1.bf16.msra.mxu0 %v1040
  %2738 = vmatprep.subr.bf16.mxu0 %v1101
  %2739 = vmatpush2.bf16.msra.mxu0 %v1100
  %2740 = vmatprep.subr.bf16.mxu0 %v1097
  %2741 = vmatpush2.bf16.msra.mxu0 %v1096
  %2742 = vmatprep.subr.bf16.mxu0 %v1093
  %2743 = vmatpush2.bf16.msra.mxu0 %v1092
  %2744 = vmatprep.subr.bf16.mxu0 %v1089
  %2745 = vmatpush2.bf16.msra.mxu0 %v1088
  %2746 = vmatprep.subr.bf16.mxu0 %v1085
  %2747 = vmatpush2.bf16.msra.mxu0 %v1084
  %2748 = vmatprep.subr.bf16.mxu0 %v1081
  %2749 = vmatpush2.bf16.msra.mxu0 %v1080
  %2750 = vmatprep.subr.bf16.mxu0 %v1077
  %2751 = vmatpush2.bf16.msra.mxu0 %v1076
  %2752 = vmatprep.subr.bf16.mxu0 %v1073
  %2753 = vmatpush2.bf16.msra.mxu0 %v1072
  %2754 = vmatprep.mubr.bf16.mxu0 %v2721
  %2755 = vmatmul.mubr.bf16.gmra.mxu0 %v2720
  %v2756 = vpop.f32.mrf.mxu0
  %v2757 = vadd.f32 %v131, %v2756
  %v2758 = vpop.f32.mrf.mxu0
  %v2759 = vadd.f32 %v135, %v2758
  %v2760 = vpop.f32.mrf.mxu0
  %v2761 = vpop.f32.mrf.mxu0
  %2762 = vdwg.mxu0
  %2763 = vmatprep.subr.bf16.mxu0 %v1071
  %2764 = vmatpush1.bf16.msra.mxu0 %v1070
  %2765 = vmatprep.subr.bf16.mxu0 %v1067
  %2766 = vmatpush1.bf16.msra.mxu0 %v1066
  %2767 = vmatprep.subr.bf16.mxu0 %v1063
  %2768 = vmatpush1.bf16.msra.mxu0 %v1062
  %2769 = vmatprep.subr.bf16.mxu0 %v1059
  %2770 = vmatpush1.bf16.msra.mxu0 %v1058
  %2771 = vmatprep.subr.bf16.mxu0 %v1055
  %2772 = vmatpush1.bf16.msra.mxu0 %v1054
  %2773 = vmatprep.subr.bf16.mxu0 %v1051
  %2774 = vmatpush1.bf16.msra.mxu0 %v1050
  %2775 = vmatprep.subr.bf16.mxu0 %v1047
  %2776 = vmatpush1.bf16.msra.mxu0 %v1046
  %2777 = vmatprep.subr.bf16.mxu0 %v1043
  %2778 = vmatpush1.bf16.msra.mxu0 %v1042
  %2779 = vmatprep.subr.bf16.mxu0 %v1103
  %2780 = vmatpush2.bf16.msra.mxu0 %v1102
  %2781 = vmatprep.subr.bf16.mxu0 %v1099
  %2782 = vmatpush2.bf16.msra.mxu0 %v1098
  %2783 = vmatprep.subr.bf16.mxu0 %v1095
  %2784 = vmatpush2.bf16.msra.mxu0 %v1094
  %2785 = vmatprep.subr.bf16.mxu0 %v1091
  %2786 = vmatpush2.bf16.msra.mxu0 %v1090
  %2787 = vmatprep.subr.bf16.mxu0 %v1087
  %2788 = vmatpush2.bf16.msra.mxu0 %v1086
  %2789 = vmatprep.subr.bf16.mxu0 %v1083
  %2790 = vmatpush2.bf16.msra.mxu0 %v1082
  %2791 = vmatprep.subr.bf16.mxu0 %v1079
  %2792 = vmatpush2.bf16.msra.mxu0 %v1078
  %2793 = vmatprep.subr.bf16.mxu0 %v1075
  %2794 = vmatpush2.bf16.msra.mxu0 %v1074
  %2795 = vmatprep.mubr.bf16.mxu0 %v2721
  %2796 = vmatmul.mubr.bf16.gmra.mxu0 %v2720
  %v2797 = vpop.f32.mrf.mxu0
  %v2798 = vadd.f32 %v139, %v2797
  %v2799 = vpop.f32.mrf.mxu0
  %v2800 = vadd.f32 %v143, %v2799
  %v2801 = vpop.f32.mrf.mxu0
  %v2802 = vpop.f32.mrf.mxu0
  %2803 = vdwg.mxu0
  %v2804 = vxor.u32 %v2757, 2147483648
  %v2805 = vxor.u32 %v2759, 2147483648
  %v2806 = vxor.u32 %v2798, 2147483648
  %v2807 = vmul.f32 %v2804, 1.442695
  %v2808 = vpow.pop %v2807
  %v2809 = vmul.f32 %v2805, 1.442695
  %v2810 = vpow.pop %v2809
  %v2811 = vmul.f32 %v2806, 1.442695
  %v2812 = vpow.pop %v2811
  %v2813 = vadd.f32 %v2808, 1.0
  %v2814 = vadd.f32 %v2810, 1.0
  %v2815 = vadd.f32 %v2812, 1.0
  %v2816 = vrcp.pop %v2813
  %v2817 = vmul.f32 1.0, %v2816
  %v2818 = vrcp.pop %v2814
  %v2819 = vmul.f32 1.0, %v2818
  %v2820 = vrcp.pop %v2815
  %v2821 = vmul.f32 1.0, %v2820
  %v2822 = vtanh.pop %v2800
  %v2823 = vmul.f32 %v2819, %v2603
  %v2824 = vmul.f32 %v2817, %v2822
  %v2825 = vadd.f32 %v2823, %v2824
  %v2826 = vtanh.pop %v2825
  %v2827 = vmul.f32 %v2821, %v2826
  %v2828 = vpack.c.bf16 %v2827, %v2827
  %v2829 = vld [vmem:[%s6] sm:$0xf]
  %v2830 = vld [vmem:[%s6 + $0x4] sm:$0xf]
  %v2831 = vld [vmem:[%s6 + $0x8] sm:$0xf]
  %v2832 = vld [vmem:[%s6 + $0xc] sm:$0xf]
  %v2833 = vld [vmem:[%s6 + $0x10] sm:$0xf]
  %v2834 = vld [vmem:[%s6 + $0x14] sm:$0xf]
  %v2835 = vld [vmem:[%s6 + $0x18] sm:$0xf]
  %v2836 = vld [vmem:[%s6 + $0x1c] sm:$0xf]
  %v2837 = vld [vmem:[%s6 + $0x20] sm:$0xf]
  %v2838 = vld [vmem:[%s6 + $0x24] sm:$0xf]
  %v2839 = vld [vmem:[%s6 + $0x28] sm:$0xf]
  %v2840 = vld [vmem:[%s6 + $0x2c] sm:$0xf]
  %v2841 = vld [vmem:[%s6 + $0x30] sm:$0xf]
  %v2842 = vld [vmem:[%s6 + $0x34] sm:$0xf]
  %v2843 = vld [vmem:[%s6 + $0x38] sm:$0xf]
  %v2844 = vld [vmem:[%s6 + $0x3c] sm:$0xf]
  %v2845 = vld [vmem:[%s7] sm:$0x1]
  %v2847 = vlaneseq
  %v2848 = vshrl.u32 %v2847, 7
  %v2849 = vsub.s32 0, %v2848
  %v2850 = vrot.slane %v2845, %v2849
  %v2868 = vunpack.c.l.b16 %v2829
  %v2869 = vunpack.c.l.b16 %v2830
  %v2870 = vunpack.c.l.b16 %v2831
  %v2871 = vunpack.c.l.b16 %v2832
  %v2872 = vunpack.c.l.b16 %v2833
  %v2873 = vunpack.c.l.b16 %v2834
  %v2874 = vunpack.c.l.b16 %v2835
  %v2875 = vunpack.c.l.b16 %v2836
  %v2876 = vunpack.c.l.b16 %v2837
  %v2877 = vunpack.c.l.b16 %v2838
  %v2878 = vunpack.c.l.b16 %v2839
  %v2879 = vunpack.c.l.b16 %v2840
  %v2880 = vunpack.c.l.b16 %v2841
  %v2881 = vunpack.c.l.b16 %v2842
  %v2882 = vunpack.c.l.b16 %v2843
  %v2883 = vunpack.c.l.b16 %v2844
  %v2884 = vpack.c.b16 %v2869, %v2868
  %v2885 = vpack.c.b16 %v2871, %v2870
  %v2886 = vpack.c.b16 %v2873, %v2872
  %v2887 = vpack.c.b16 %v2875, %v2874
  %v2888 = vpack.c.b16 %v2877, %v2876
  %v2889 = vpack.c.b16 %v2879, %v2878
  %v2890 = vpack.c.b16 %v2881, %v2880
  %v2891 = vpack.c.b16 %v2883, %v2882
  %2900 = vmatprep.subr.bf16.mxu0 0
  %2901 = vmatpush1.bf16.msra.mxu0 %v2891
  %2902 = vmatprep.subr.bf16.mxu0 0
  %2903 = vmatpush1.bf16.msra.mxu0 %v2890
  %2904 = vmatprep.subr.bf16.mxu0 0
  %2905 = vmatpush1.bf16.msra.mxu0 %v2889
  %2906 = vmatprep.subr.bf16.mxu0 0
  %2907 = vmatpush1.bf16.msra.mxu0 %v2888
  %2908 = vmatprep.subr.bf16.mxu0 0
  %2909 = vmatpush1.bf16.msra.mxu0 %v2887
  %2910 = vmatprep.subr.bf16.mxu0 0
  %2911 = vmatpush1.bf16.msra.mxu0 %v2886
  %2912 = vmatprep.subr.bf16.mxu0 0
  %2913 = vmatpush1.bf16.msra.mxu0 %v2885
  %2914 = vmatprep.subr.bf16.mxu0 0
  %2915 = vmatpush1.bf16.msra.mxu0 %v2884
  %2916 = vmatprep.subr.bf16.mxu0 0
  %2917 = vmatpush2.bf16.msra.mxu0 0
  %2918 = vmatprep.subr.bf16.mxu0 0
  %2919 = vmatpush2.bf16.msra.mxu0 0
  %2920 = vmatprep.subr.bf16.mxu0 0
  %2921 = vmatpush2.bf16.msra.mxu0 0
  %2922 = vmatprep.subr.bf16.mxu0 0
  %2923 = vmatpush2.bf16.msra.mxu0 0
  %2924 = vmatprep.subr.bf16.mxu0 0
  %2925 = vmatpush2.bf16.msra.mxu0 0
  %2926 = vmatprep.subr.bf16.mxu0 0
  %2927 = vmatpush2.bf16.msra.mxu0 0
  %2928 = vmatprep.subr.bf16.mxu0 0
  %2929 = vmatpush2.bf16.msra.mxu0 0
  %2930 = vmatprep.subr.bf16.mxu0 0
  %2931 = vmatpush2.bf16.msra.mxu0 0
  %2932 = vmatprep.mubr.bf16.mxu0 0
  %2933 = vmatmul.mubr.bf16.gmra.mxu0 %v2828
  %v2934 = vpop.f32.mrf.mxu0
  %v2935 = vadd.f32 %v2850, %v2934
  %v2936 = vpop.f32.mrf.mxu0
  %v2937 = vpop.f32.mrf.mxu0
  %v2938 = vpop.f32.mrf.mxu0
  %2939 = vdwg.mxu0
  %2940 = vst [vmem:[%s8] sm:$0xff] %v2935
  // Predicated region
  $region34: #{char_rnn_forward.1} parent=0 // pred_check
    _
  $region35: #{char_rnn_forward.1} parent=0 // pred_check_branch
    %2942 = sbr.rel (0) target = $region37
  $region36: #{char_rnn_forward.1} parent=0 // pred_region
    _
  $region37: #{char_rnn_forward.1} parent=0 // pred_fallthru
    _
  // Predicated region
  $region38: #{char_rnn_forward.1} parent=0 // pred_check
    _
  $region39: #{char_rnn_forward.1} parent=0 // pred_check_branch
    %2944 = sbr.rel (0) target = $region41
  $region40: #{char_rnn_forward.1} parent=0 // pred_region
    _
  $region41: #{char_rnn_forward.1} parent=0 // pred_fallthru
    _

</llo_original>
